<compile_context>
chip_gen: v5e
topology: v5e:2x2
jax: 0.10.0
libtpu: 0.0.40
codegen_flags: <defaults>
</compile_context>

<pallas_src>
import jax
import jax.numpy as jnp
from jax.experimental import pallas as pl
from jax.experimental.pallas import tpu as pltpu


INPUT_DIM = 15
HIDDEN = 1024
OUTPUT_DIM = 144

IN_PAD = 16  # 15 -> 16 (sublane-friendly contraction dim for the first dot)


def fcn_kernel(x_ref, w1_ref, b1_ref, w2_ref, b2_ref, w3_ref, b3_ref, o_ref):
    # Weights/biases are VMEM-resident (constant index_map, single-buffered);
    # only one batch tile of x streams in and one output tile streams out.
    x = x_ref[...]                                                     # (TB, 16) bf16

    h1 = jnp.dot(x, w1_ref[...], preferred_element_type=jnp.float32) + b1_ref[...]
    h1 = jnp.maximum(h1, 0.0).astype(jnp.bfloat16)                     # (TB, 1024)

    h2 = jnp.dot(h1, w2_ref[...], preferred_element_type=jnp.float32) + b2_ref[...]
    h2 = jnp.maximum(h2, 0.0).astype(jnp.bfloat16)                     # (TB, 1024)

    # dropout (eval mode) == identity
    y = jnp.dot(h2, w3_ref[...], preferred_element_type=jnp.float32) + b3_ref[...]
    o_ref[...] = y.astype(o_ref.dtype)                                 # (TB, 144)


def prepare_params(params_f32):
    """Pad + cast the canonical f32 (in, out) params into the kernel layout."""
    w1, b1, w2, b2, w3, b3 = params_f32
    # Input-dim pad 15 -> 16 with zero rows (zeros contribute nothing).
    w1p = jnp.zeros((IN_PAD, HIDDEN), jnp.float32).at[: w1.shape[0], :].set(w1)
    return (
        w1p.astype(jnp.bfloat16), b1.astype(jnp.float32),
        w2.astype(jnp.bfloat16), b2.astype(jnp.float32),
        w3.astype(jnp.bfloat16), b3.astype(jnp.float32),
    )


def _round_up(v, m):
    return ((v + m - 1) // m) * m


def fcn_forward(x, kernel_params):
    """x: (B, 15) f32.  kernel_params: output of prepare_params."""
    w1, b1, w2, b2, w3, b3 = kernel_params
    B = x.shape[0]

    # Batch tile: multiple of 16 (bf16 sublane pack). For B >= 32 guarantee
    # at least 2 grid steps (v7x megacore + x/out pipelining); cap at 512.
    if B >= 32:
        tb = min(512, _round_up(pl.cdiv(B, 2), 16))
    else:
        tb = _round_up(max(B, 1), 16)
    Bp = pl.cdiv(B, tb) * tb

    # Fused pad (batch + feature) and cast to bf16 in one shot.
    xp = jnp.zeros((Bp, IN_PAD), jnp.bfloat16)
    xp = xp.at[:B, : x.shape[1]].set(x.astype(jnp.bfloat16))

    def resident(a):
        # Constant block index across the grid -> single buffer is enough.
        return pl.BlockSpec(a.shape, lambda i: (0,) * a.ndim,
                            pipeline_mode=pl.Buffered(buffer_count=1))

    out = pl.pallas_call(
        fcn_kernel,
        out_shape=jax.ShapeDtypeStruct((Bp, OUTPUT_DIM), jnp.float32),
        grid=(Bp // tb,),
        in_specs=[
            pl.BlockSpec((tb, IN_PAD), lambda i: (i, 0)),   # x: streamed per tile
            resident(w1), resident(b1),
            resident(w2), resident(b2),
            resident(w3), resident(b3),
        ],
        out_specs=pl.BlockSpec((tb, OUTPUT_DIM), lambda i: (i, 0)),
        compiler_params=pltpu.CompilerParams(
            dimension_semantics=("parallel",),
            vmem_limit_bytes=32 << 20,
        ),
    )(xp, w1, b1, w2, b2, w3, b3)

    return out[:B]


def init_params(key, input_dim=INPUT_DIM, hidden=HIDDEN, output_dim=OUTPUT_DIM):
    """Deterministic synthetic init (Kaiming-uniform-ish, like nn.Linear), f32,
    stored as (in_features, out_features)."""
    ks = jax.random.split(key, 6)

    def linear(kw, kb, fan_in, fan_out):
        bound = 1.0 / jnp.sqrt(fan_in)
        w = jax.random.uniform(kw, (fan_in, fan_out), jnp.float32, -bound, bound)
        b = jax.random.uniform(kb, (1, fan_out), jnp.float32, -bound, bound)
        return w, b

    w1, b1 = linear(ks[0], ks[1], input_dim, hidden)
    w2, b2 = linear(ks[2], ks[3], hidden, hidden)
    w3, b3 = linear(ks[4], ks[5], hidden, output_dim)
    return (w1, b1, w2, b2, w3, b3)


if __name__ == "__main__":
    key = jax.random.PRNGKey(0)
    k_x, k_p, k_x2 = jax.random.split(key, 3)

    params_f32 = init_params(k_p)
    kernel_params = prepare_params(params_f32)
    w1p, b1p, w2p, b2p, w3p, b3p = kernel_params
    w1, b1, w2, b2, w3, b3 = params_f32

    def ref_bf16_path(x):
        # Exact bf16-path reference (same casts as the kernel).
        xb = jnp.zeros((x.shape[0], IN_PAD), jnp.bfloat16)
        xb = xb.at[:, :INPUT_DIM].set(x.astype(jnp.bfloat16))
        r = jnp.maximum(jnp.dot(xb, w1p, preferred_element_type=jnp.float32) + b1p, 0.0)
        r = jnp.maximum(jnp.dot(r.astype(jnp.bfloat16), w2p,
                                preferred_element_type=jnp.float32) + b2p, 0.0)
        return jnp.dot(r.astype(jnp.bfloat16), w3p,
                       preferred_element_type=jnp.float32) + b3p

    def ref_f32(x):
        # Pure-f32 module semantics (looser tolerance due to bf16 weights).
        r = jnp.maximum(x @ w1 + b1, 0.0)
        r = jnp.maximum(r @ w2 + b2, 0.0)
        return r @ w3 + b3

    # Small batch: single-tile path.
    x_small = jax.random.normal(k_x, (8, INPUT_DIM), jnp.float32)
    out_small = jax.block_until_ready(fcn_forward(x_small, kernel_params))
    assert out_small.shape == (8, OUTPUT_DIM)
    assert jnp.allclose(out_small, ref_bf16_path(x_small), atol=2e-2, rtol=2e-2)
    assert jnp.allclose(out_small, ref_f32(x_small), atol=8e-2, rtol=8e-2)

    # Mid batch: >= 2 grid steps, batch padding, single-buffered weights.
    x_multi = jax.random.normal(k_x2, (40, INPUT_DIM), jnp.float32)
    out_multi = jax.block_until_ready(fcn_forward(x_multi, kernel_params))
    assert out_multi.shape == (40, OUTPUT_DIM)
    assert jnp.allclose(out_multi, ref_bf16_path(x_multi), atol=2e-2, rtol=2e-2)
    assert jnp.allclose(out_multi, ref_f32(x_multi), atol=8e-2, rtol=8e-2)

    print("KERNEL_OK")
</pallas_src>

<mosaic_0001>
module attributes {stable_mosaic.version = 11 : i64} {
  func.func @fcn_kernel(%arg0: i32, %arg1: memref<16x16xbf16, #tpu.memory_space<vmem>>, %arg2: memref<16x1024xbf16, #tpu.memory_space<vmem>>, %arg3: memref<1x1024xf32, #tpu.memory_space<vmem>>, %arg4: memref<1024x1024xbf16, #tpu.memory_space<vmem>>, %arg5: memref<1x1024xf32, #tpu.memory_space<vmem>>, %arg6: memref<1024x144xbf16, #tpu.memory_space<vmem>>, %arg7: memref<1x144xf32, #tpu.memory_space<vmem>>, %arg8: memref<16x144xf32, #tpu.memory_space<vmem>>) attributes {dimension_semantics = [#tpu.dimension_semantics<parallel>], iteration_bounds = array<i64: 1>, scalar_prefetch = 0 : i64, scratch_operands = 0 : i64, tpu.core_type = #tpu.core_type<tc>, window_params = [{transform_indices = @transform_0, window_bounds = array<i64: 16, 16>}, {pipeline_mode = #tpu.pipeline_mode<synchronous>, transform_indices = @transform_1, window_bounds = array<i64: 16, 1024>}, {pipeline_mode = #tpu.pipeline_mode<synchronous>, transform_indices = @transform_2, window_bounds = array<i64: 1, 1024>}, {pipeline_mode = #tpu.pipeline_mode<synchronous>, transform_indices = @transform_3, window_bounds = array<i64: 1024, 1024>}, {pipeline_mode = #tpu.pipeline_mode<synchronous>, transform_indices = @transform_4, window_bounds = array<i64: 1, 1024>}, {pipeline_mode = #tpu.pipeline_mode<synchronous>, transform_indices = @transform_5, window_bounds = array<i64: 1024, 144>}, {pipeline_mode = #tpu.pipeline_mode<synchronous>, transform_indices = @transform_6, window_bounds = array<i64: 1, 144>}, {transform_indices = @transform_7, window_bounds = array<i64: 16, 144>}]} {
    %c0 = arith.constant 0 : index
    %c0_0 = arith.constant 0 : index
    %0 = vector.load %arg1[%c0, %c0_0] : memref<16x16xbf16, #tpu.memory_space<vmem>>, vector<16x16xbf16>
    %c0_1 = arith.constant 0 : index
    %c0_2 = arith.constant 0 : index
    %1 = vector.load %arg2[%c0_1, %c0_2] : memref<16x1024xbf16, #tpu.memory_space<vmem>>, vector<16x1024xbf16>
    %cst = arith.constant dense<0.000000e+00> : vector<16x1024xf32>
    %2 = tpu.matmul %0, %1, %cst {dimension_numbers = #tpu.dot_dimension_numbers<[1], [0], [0], [1], [0, 0, 1, 1], [], []>} : vector<16x16xbf16>, vector<16x1024xbf16>, vector<16x1024xf32> -> vector<16x1024xf32>
    %c0_3 = arith.constant 0 : index
    %c0_4 = arith.constant 0 : index
    %3 = vector.load %arg3[%c0_3, %c0_4] : memref<1x1024xf32, #tpu.memory_space<vmem>>, vector<1x1024xf32>
    %4 = vector.broadcast %3 : vector<1x1024xf32> to vector<16x1024xf32>
    %5 = arith.addf %2, %4 : vector<16x1024xf32>
    %cst_5 = arith.constant 0.000000e+00 : f32
    %6 = vector.broadcast %cst_5 : f32 to vector<16x1024xf32>
    %7 = arith.maximumf %5, %6 : vector<16x1024xf32>
    %8 = arith.truncf %7 : vector<16x1024xf32> to vector<16x1024xbf16>
    %c0_6 = arith.constant 0 : index
    %c0_7 = arith.constant 0 : index
    %9 = vector.load %arg4[%c0_6, %c0_7] : memref<1024x1024xbf16, #tpu.memory_space<vmem>>, vector<1024x1024xbf16>
    %cst_8 = arith.constant dense<0.000000e+00> : vector<16x1024xf32>
    %10 = tpu.matmul %8, %9, %cst_8 {dimension_numbers = #tpu.dot_dimension_numbers<[1], [0], [0], [1], [0, 0, 1, 1], [], []>} : vector<16x1024xbf16>, vector<1024x1024xbf16>, vector<16x1024xf32> -> vector<16x1024xf32>
    %c0_9 = arith.constant 0 : index
    %c0_10 = arith.constant 0 : index
    %11 = vector.load %arg5[%c0_9, %c0_10] : memref<1x1024xf32, #tpu.memory_space<vmem>>, vector<1x1024xf32>
    %12 = vector.broadcast %11 : vector<1x1024xf32> to vector<16x1024xf32>
    %13 = arith.addf %10, %12 : vector<16x1024xf32>
    %cst_11 = arith.constant 0.000000e+00 : f32
    %14 = vector.broadcast %cst_11 : f32 to vector<16x1024xf32>
    %15 = arith.maximumf %13, %14 : vector<16x1024xf32>
    %16 = arith.truncf %15 : vector<16x1024xf32> to vector<16x1024xbf16>
    %c0_12 = arith.constant 0 : index
    %c0_13 = arith.constant 0 : index
    %17 = vector.load %arg6[%c0_12, %c0_13] : memref<1024x144xbf16, #tpu.memory_space<vmem>>, vector<1024x144xbf16>
    %cst_14 = arith.constant dense<0.000000e+00> : vector<16x144xf32>
    %18 = tpu.matmul %16, %17, %cst_14 {dimension_numbers = #tpu.dot_dimension_numbers<[1], [0], [0], [1], [0, 0, 1, 1], [], []>} : vector<16x1024xbf16>, vector<1024x144xbf16>, vector<16x144xf32> -> vector<16x144xf32>
    %c0_15 = arith.constant 0 : index
    %c0_16 = arith.constant 0 : index
    %19 = vector.load %arg7[%c0_15, %c0_16] : memref<1x144xf32, #tpu.memory_space<vmem>>, vector<1x144xf32>
    %20 = vector.broadcast %19 : vector<1x144xf32> to vector<16x144xf32>
    %21 = arith.addf %18, %20 : vector<16x144xf32>
    %c0_17 = arith.constant 0 : index
    %c0_18 = arith.constant 0 : index
    %22 = vector.load %arg8[%c0_17, %c0_18] : memref<16x144xf32, #tpu.memory_space<vmem>>, vector<16x144xf32>
    tpu.vector_store %arg8[%c0_17, %c0_18], %21 {strides = array<i32>} : memref<16x144xf32, #tpu.memory_space<vmem>>, vector<16x144xf32>,
    return
  }
  func.func @transform_0(%arg0: i32) -> (i32, i32) {
    %c0_i32 = arith.constant 0 : i32
    %c0_i32_0 = arith.constant 0 : i32
    return %arg0, %c0_i32 : i32, i32
  }
  func.func @transform_1(%arg0: i32) -> (i32, i32) {
    %c0_i32 = arith.constant 0 : i32
    %c0_i32_0 = arith.constant 0 : i32
    %c0_i32_1 = arith.constant 0 : i32
    return %c0_i32, %c0_i32_0 : i32, i32
  }
  func.func @transform_2(%arg0: i32) -> (i32, i32) {
    %c0_i32 = arith.constant 0 : i32
    %c0_i32_0 = arith.constant 0 : i32
    %c0_i32_1 = arith.constant 0 : i32
    return %c0_i32, %c0_i32_0 : i32, i32
  }
  func.func @transform_3(%arg0: i32) -> (i32, i32) {
    %c0_i32 = arith.constant 0 : i32
    %c0_i32_0 = arith.constant 0 : i32
    %c0_i32_1 = arith.constant 0 : i32
    return %c0_i32, %c0_i32_0 : i32, i32
  }
  func.func @transform_4(%arg0: i32) -> (i32, i32) {
    %c0_i32 = arith.constant 0 : i32
    %c0_i32_0 = arith.constant 0 : i32
    %c0_i32_1 = arith.constant 0 : i32
    return %c0_i32, %c0_i32_0 : i32, i32
  }
  func.func @transform_5(%arg0: i32) -> (i32, i32) {
    %c0_i32 = arith.constant 0 : i32
    %c0_i32_0 = arith.constant 0 : i32
    %c0_i32_1 = arith.constant 0 : i32
    return %c0_i32, %c0_i32_0 : i32, i32
  }
  func.func @transform_6(%arg0: i32) -> (i32, i32) {
    %c0_i32 = arith.constant 0 : i32
    %c0_i32_0 = arith.constant 0 : i32
    %c0_i32_1 = arith.constant 0 : i32
    return %c0_i32, %c0_i32_0 : i32, i32
  }
  func.func @transform_7(%arg0: i32) -> (i32, i32) {
    %c0_i32 = arith.constant 0 : i32
    %c0_i32_0 = arith.constant 0 : i32
    return %arg0, %c0_i32 : i32, i32
  }
}

</mosaic_0001>

<llo_original>
// kernel: tpu_custom_call.1
$region0: #{tpu_custom_call.1}
  #allocation0 [shape = 'u32[]', space=smem, size = 0x4, offset = 0x4, fixed_abs, tag = 'smem constant byte address 0x4 - core index']
  #allocation1 [shape = 'u32[72,128]{1,0:T(1,128)}', space=vmem, size = 0x9000, scoped, tag = 'internal scratch']
  %s0 = inlined_call_operand.hbm [shape: bf16[16,16], index: 0, kind: input, shape index: {}]
  %s1 = inlined_call_operand.hbm [shape: bf16[16,1024], index: 1, kind: input, shape index: {}]
  %s2 = inlined_call_operand.hbm [shape: f32[1,1024], index: 2, kind: input, shape index: {}]
  %s3 = inlined_call_operand.hbm [shape: bf16[1024,1024], index: 3, kind: input, shape index: {}]
  %s4 = inlined_call_operand.hbm [shape: f32[1,1024], index: 4, kind: input, shape index: {}]
  %s5 = inlined_call_operand.vmem [shape: bf16[1024,144], index: 5, kind: input, shape index: {}]
  %s6 = inlined_call_operand.hbm [shape: f32[1,144], index: 6, kind: input, shape index: {}]
  %s7 = inlined_call_operand.hbm [shape: f32[16,144], index: 7, kind: output, shape index: {}]
  %s8 = sld [smem:[#allocation0]]
  $region62: #{tpu_custom_call.1} parent=0
    _
  %s10 = ssub.s32 1, %s8
  %s11 = scalar_select 0, %s10, %s8
  $region1: #{tpu_custom_call.1} parent=0
    #allocation2 [shape = 'u8[4096]{0}', space=vmem, size = 0x1000, scoped, tag = 'input window, operand 0, single buffered']
    #allocation3 [shape = 's32[1]{0}', space=sflag, size = 0x4, scoped, tag = 'scoped memory for tpu_custom_call.1']
    #allocation4 [shape = 's32[1]{0}', space=sflag, size = 0x4, scoped, tag = 'scoped memory for tpu_custom_call.1']
    #allocation5 [shape = 'u8[32768]{0}', space=vmem, size = 0x8000, scoped, tag = 'input window, operand 1, single buffered']
    #allocation6 [shape = 's32[1]{0}', space=sflag, size = 0x4, scoped, tag = 'scoped memory for tpu_custom_call.1']
    #allocation7 [shape = 'u8[4096]{0}', space=vmem, size = 0x1000, scoped, tag = 'input window, operand 2, single buffered']
    #allocation8 [shape = 'u8[2097152]{0}', space=vmem, size = 0x200000, scoped, tag = 'input window, operand 3, single buffered']
    #allocation9 [shape = 's32[1]{0}', space=sflag, size = 0x4, scoped, tag = 'scoped memory for tpu_custom_call.1']
    #allocation10 [shape = 'u8[4096]{0}', space=vmem, size = 0x1000, scoped, tag = 'input window, operand 4, single buffered']
    #allocation11 [shape = 'u8[1024]{0}', space=vmem, size = 0x400, scoped, tag = 'input window, operand 6, single buffered']
    #allocation12 [shape = 's32[1]{0}', space=sflag, size = 0x4, scoped, tag = 'scoped memory for tpu_custom_call.1']
    #allocation13 [shape = 'u8[16384]{0}', space=vmem, size = 0x4000, scoped, tag = 'output window, operand 0, single buffered']
    %12 = vsyncpa [#allocation3], 0
    %13 = vsyncpa [#allocation6], 0
    %14 = vsyncpa [#allocation9], 0
    %15 = vsyncpa [#allocation12], 0
    %16 = vsyncpa [#allocation4], 0
    // Predicated region
    $region2: #{tpu_custom_call.1} parent=1 // pred_check
      _
    $region3: #{tpu_custom_call.1} parent=1 // pred_check_branch
      %18 = sbr.rel (0) target = $region5
    $region4: #{tpu_custom_call.1} parent=1 // pred_region
      %20 = vsyncadd [#allocation3], 0
      %s21 = sshll.u32 %s0, 4
      %s22 = int_to_ptr.hbm [resolvable:$true] %s21
      %s23 = sshll.u32 [#allocation2], 4
      %s24 = int_to_ptr.vmem [resolvable:$true] %s23
      %29 = dma.hbm_to_vmem [thread:$0]  %s22, 128, %s24, [#allocation3], 64, 64, 4
    $region5: #{tpu_custom_call.1} parent=1 // pred_fallthru
      _
    // Predicated region
    $region6: #{tpu_custom_call.1} parent=1 // pred_check
      _
    $region7: #{tpu_custom_call.1} parent=1 // pred_check_branch
      %31 = sbr.rel (0) target = $region9
    $region8: #{tpu_custom_call.1} parent=1 // pred_region
      %33 = vsyncadd [#allocation6], 0
      %s34 = sshll.u32 %s1, 4
      %s35 = int_to_ptr.hbm [resolvable:$true] %s34
      %s36 = sshll.u32 [#allocation5], 4
      %s37 = int_to_ptr.vmem [resolvable:$true] %s36
      %42 = dma.hbm_to_vmem [thread:$0]  %s35, 1024, %s37, [#allocation6], 512, 512, 32
    $region9: #{tpu_custom_call.1} parent=1 // pred_fallthru
      _
    // Predicated region
    $region10: #{tpu_custom_call.1} parent=1 // pred_check
      _
    $region11: #{tpu_custom_call.1} parent=1 // pred_check_branch
      %44 = sbr.rel (0) target = $region13
    $region12: #{tpu_custom_call.1} parent=1 // pred_region
      %46 = vsyncadd [#allocation6], 0
      %s48 = sshll.u32 %s2, 4
      %s49 = int_to_ptr.hbm [resolvable:$true] %s48
      %s50 = sshll.u32 [#allocation7], 4
      %s51 = int_to_ptr.vmem [resolvable:$true] %s50
      %53 = dma.hbm_to_vmem [thread:$0]  %s49, 128, %s51, [#allocation6]
    $region13: #{tpu_custom_call.1} parent=1 // pred_fallthru
      _
    // Predicated region
    $region14: #{tpu_custom_call.1} parent=1 // pred_check
      _
    $region15: #{tpu_custom_call.1} parent=1 // pred_check_branch
      %55 = sbr.rel (0) target = $region17
    $region16: #{tpu_custom_call.1} parent=1 // pred_region
      %57 = vsyncadd [#allocation9], 0
      %s58 = sshll.u32 %s3, 4
      %s59 = int_to_ptr.hbm [resolvable:$true] %s58
      %s60 = sshll.u32 [#allocation8], 4
      %s61 = int_to_ptr.vmem [resolvable:$true] %s60
      %66 = dma.hbm_to_vmem [thread:$0]  %s59, 65536, %s61, [#allocation9], 512, 512, 32
    $region17: #{tpu_custom_call.1} parent=1 // pred_fallthru
      _
    // Predicated region
    $region18: #{tpu_custom_call.1} parent=1 // pred_check
      _
    $region19: #{tpu_custom_call.1} parent=1 // pred_check_branch
      %68 = sbr.rel (0) target = $region21
    $region20: #{tpu_custom_call.1} parent=1 // pred_region
      %70 = vsyncadd [#allocation9], 0
      %s72 = sshll.u32 %s4, 4
      %s73 = int_to_ptr.hbm [resolvable:$true] %s72
      %s74 = sshll.u32 [#allocation10], 4
      %s75 = int_to_ptr.vmem [resolvable:$true] %s74
      %77 = dma.hbm_to_vmem [thread:$0]  %s73, 128, %s75, [#allocation9]
    $region21: #{tpu_custom_call.1} parent=1 // pred_fallthru
      _
    // Predicated region
    $region22: #{tpu_custom_call.1} parent=1 // pred_check
      _
    $region23: #{tpu_custom_call.1} parent=1 // pred_check_branch
      %79 = sbr.rel (0) target = $region25
    $region24: #{tpu_custom_call.1} parent=1 // pred_region
      _
    $region25: #{tpu_custom_call.1} parent=1 // pred_fallthru
      _
    // Predicated region
    $region26: #{tpu_custom_call.1} parent=1 // pred_check
      _
    $region27: #{tpu_custom_call.1} parent=1 // pred_check_branch
      %81 = sbr.rel (0) target = $region29
    $region28: #{tpu_custom_call.1} parent=1 // pred_region
      %83 = vsyncadd [#allocation12], 0
      %s85 = sshll.u32 %s6, 4
      %s86 = int_to_ptr.hbm [resolvable:$true] %s85
      %s87 = sshll.u32 [#allocation11], 4
      %s88 = int_to_ptr.vmem [resolvable:$true] %s87
      %90 = dma.hbm_to_vmem [thread:$0]  %s86, 32, %s88, [#allocation12]
    $region29: #{tpu_custom_call.1} parent=1 // pred_fallthru
      _
    // Predicated region
    $region30: #{tpu_custom_call.1} parent=1 // pred_check
      _
    $region31: #{tpu_custom_call.1} parent=1 // pred_check_branch
      %92 = sbr.rel (0) target = $region33
    $region32: #{tpu_custom_call.1} parent=1 // pred_region
      %94 = dma.done [#allocation3], 128
    $region33: #{tpu_custom_call.1} parent=1 // pred_fallthru
      _
    // Predicated region
    $region34: #{tpu_custom_call.1} parent=1 // pred_check
      _
    $region35: #{tpu_custom_call.1} parent=1 // pred_check_branch
      %96 = sbr.rel (0) target = $region37
    $region36: #{tpu_custom_call.1} parent=1 // pred_region
      %98 = dma.done [#allocation6], 1024
    $region37: #{tpu_custom_call.1} parent=1 // pred_fallthru
      _
    // Predicated region
    $region38: #{tpu_custom_call.1} parent=1 // pred_check
      _
    $region39: #{tpu_custom_call.1} parent=1 // pred_check_branch
      %100 = sbr.rel (0) target = $region41
    $region40: #{tpu_custom_call.1} parent=1 // pred_region
      %102 = dma.done [#allocation6], 128
    $region41: #{tpu_custom_call.1} parent=1 // pred_fallthru
      _
    // Predicated region
    $region42: #{tpu_custom_call.1} parent=1 // pred_check
      _
    $region43: #{tpu_custom_call.1} parent=1 // pred_check_branch
      %104 = sbr.rel (0) target = $region45
    $region44: #{tpu_custom_call.1} parent=1 // pred_region
      %106 = dma.done [#allocation9], 65536
    $region45: #{tpu_custom_call.1} parent=1 // pred_fallthru
      _
    // Predicated region
    $region46: #{tpu_custom_call.1} parent=1 // pred_check
      _
    $region47: #{tpu_custom_call.1} parent=1 // pred_check_branch
      %108 = sbr.rel (0) target = $region49
    $region48: #{tpu_custom_call.1} parent=1 // pred_region
      %110 = dma.done [#allocation9], 128
    $region49: #{tpu_custom_call.1} parent=1 // pred_fallthru
      _
    // Predicated region
    $region50: #{tpu_custom_call.1} parent=1 // pred_check
      _
    $region51: #{tpu_custom_call.1} parent=1 // pred_check_branch
      %112 = sbr.rel (0) target = $region53
    $region52: #{tpu_custom_call.1} parent=1 // pred_region
      %114 = dma.done [#allocation12], 32
    $region53: #{tpu_custom_call.1} parent=1 // pred_fallthru
      _
    %v116 = vld [vmem:[#allocation2] sm:$0xf]
    %v117 = vld [vmem:[#allocation2 + $0x4] sm:$0xf]
    %v118 = vld [vmem:[#allocation5] sm:$0xff]
    %v119 = vld [vmem:[#allocation5 + $0x8] sm:$0xff]
    %v120 = vld [vmem:[#allocation5 + $0x10] sm:$0xff]
    %v121 = vld [vmem:[#allocation5 + $0x18] sm:$0xff]
    %v122 = vld [vmem:[#allocation5 + $0x20] sm:$0xff]
    %v123 = vld [vmem:[#allocation5 + $0x28] sm:$0xff]
    %v124 = vld [vmem:[#allocation5 + $0x30] sm:$0xff]
    %v125 = vld [vmem:[#allocation5 + $0x38] sm:$0xff]
    %v126 = vld [vmem:[#allocation7] sm:$0xff]
    %v128 = vperm.slane %v126, 0
    %v129 = vperm.slane %v126, 1
    %v130 = vperm.slane %v126, 2
    %v131 = vperm.slane %v126, 3
    %v132 = vperm.slane %v126, 4
    %v133 = vperm.slane %v126, 5
    %v134 = vperm.slane %v126, 6
    %v135 = vperm.slane %v126, 7
    %v146 = vunpack.c.l.b16 %v116
    %v147 = vunpack.c.l.b16 %v117
    %v148 = vpack.c.b16 %v147, %v146
    %v157 = vunpack.c.l.b16 %v118
    %v158 = vunpack.c.h.b16 %v118
    %v159 = vunpack.c.l.b16 %v119
    %v160 = vunpack.c.h.b16 %v119
    %v161 = vunpack.c.l.b16 %v120
    %v162 = vunpack.c.h.b16 %v120
    %v163 = vunpack.c.l.b16 %v121
    %v164 = vunpack.c.h.b16 %v121
    %v165 = vunpack.c.l.b16 %v122
    %v166 = vunpack.c.h.b16 %v122
    %v167 = vunpack.c.l.b16 %v123
    %v168 = vunpack.c.h.b16 %v123
    %v169 = vunpack.c.l.b16 %v124
    %v170 = vunpack.c.h.b16 %v124
    %v171 = vunpack.c.l.b16 %v125
    %v172 = vunpack.c.h.b16 %v125
    %v173 = vpack.c.b16 %v165, %v157
    %v174 = vpack.c.b16 %v166, %v158
    %v175 = vpack.c.b16 %v167, %v159
    %v176 = vpack.c.b16 %v168, %v160
    %v177 = vpack.c.b16 %v169, %v161
    %v178 = vpack.c.b16 %v170, %v162
    %v179 = vpack.c.b16 %v171, %v163
    %v180 = vpack.c.b16 %v172, %v164
    %vm189 = vcmask 130048
    %v191 = vsel %vm189, %v148, 0
    %193 = vmatpush.bf16.msra.mxu0 0
    %194 = vmatpush.bf16.msra.mxu0 0
    %195 = vmatpush.bf16.msra.mxu0 0
    %196 = vmatpush.bf16.msra.mxu0 0
    %197 = vmatpush.bf16.msra.mxu0 0
    %198 = vmatpush.bf16.msra.mxu0 0
    %199 = vmatpush.bf16.msra.mxu0 0
    %200 = vmatpush.bf16.msra.mxu0 %v173
    %201 = vmatmul.bf16.gmra.mxu0 %v191
    %v202 = vpop.f32.mrf.mxu0
    %v203 = vadd.f32 %v128, %v202
    %v204 = vpop.f32.mrf.mxu0
    %v205 = vadd.f32 %v128, %v204
    %206 = vdwg.mxu0
    %207 = vmatpush.bf16.msra.mxu0 0
    %208 = vmatpush.bf16.msra.mxu0 0
    %209 = vmatpush.bf16.msra.mxu0 0
    %210 = vmatpush.bf16.msra.mxu0 0
    %211 = vmatpush.bf16.msra.mxu0 0
    %212 = vmatpush.bf16.msra.mxu0 0
    %213 = vmatpush.bf16.msra.mxu0 0
    %214 = vmatpush.bf16.msra.mxu0 %v174
    %215 = vmatmul.bf16.gmra.mxu0 %v191
    %v216 = vpop.f32.mrf.mxu0
    %v217 = vadd.f32 %v129, %v216
    %v218 = vpop.f32.mrf.mxu0
    %v219 = vadd.f32 %v129, %v218
    %220 = vdwg.mxu0
    %221 = vmatpush.bf16.msra.mxu0 0
    %222 = vmatpush.bf16.msra.mxu0 0
    %223 = vmatpush.bf16.msra.mxu0 0
    %224 = vmatpush.bf16.msra.mxu0 0
    %225 = vmatpush.bf16.msra.mxu0 0
    %226 = vmatpush.bf16.msra.mxu0 0
    %227 = vmatpush.bf16.msra.mxu0 0
    %228 = vmatpush.bf16.msra.mxu0 %v175
    %229 = vmatmul.bf16.gmra.mxu0 %v191
    %v230 = vpop.f32.mrf.mxu0
    %v231 = vadd.f32 %v130, %v230
    %v232 = vpop.f32.mrf.mxu0
    %v233 = vadd.f32 %v130, %v232
    %234 = vdwg.mxu0
    %235 = vmatpush.bf16.msra.mxu0 0
    %236 = vmatpush.bf16.msra.mxu0 0
    %237 = vmatpush.bf16.msra.mxu0 0
    %238 = vmatpush.bf16.msra.mxu0 0
    %239 = vmatpush.bf16.msra.mxu0 0
    %240 = vmatpush.bf16.msra.mxu0 0
    %241 = vmatpush.bf16.msra.mxu0 0
    %242 = vmatpush.bf16.msra.mxu0 %v176
    %243 = vmatmul.bf16.gmra.mxu0 %v191
    %v244 = vpop.f32.mrf.mxu0
    %v245 = vadd.f32 %v131, %v244
    %v246 = vpop.f32.mrf.mxu0
    %v247 = vadd.f32 %v131, %v246
    %248 = vdwg.mxu0
    %249 = vmatpush.bf16.msra.mxu0 0
    %250 = vmatpush.bf16.msra.mxu0 0
    %251 = vmatpush.bf16.msra.mxu0 0
    %252 = vmatpush.bf16.msra.mxu0 0
    %253 = vmatpush.bf16.msra.mxu0 0
    %254 = vmatpush.bf16.msra.mxu0 0
    %255 = vmatpush.bf16.msra.mxu0 0
    %256 = vmatpush.bf16.msra.mxu0 %v177
    %257 = vmatmul.bf16.gmra.mxu0 %v191
    %v258 = vpop.f32.mrf.mxu0
    %v259 = vadd.f32 %v132, %v258
    %v260 = vpop.f32.mrf.mxu0
    %v261 = vadd.f32 %v132, %v260
    %262 = vdwg.mxu0
    %263 = vmatpush.bf16.msra.mxu0 0
    %264 = vmatpush.bf16.msra.mxu0 0
    %265 = vmatpush.bf16.msra.mxu0 0
    %266 = vmatpush.bf16.msra.mxu0 0
    %267 = vmatpush.bf16.msra.mxu0 0
    %268 = vmatpush.bf16.msra.mxu0 0
    %269 = vmatpush.bf16.msra.mxu0 0
    %270 = vmatpush.bf16.msra.mxu0 %v178
    %271 = vmatmul.bf16.gmra.mxu0 %v191
    %v272 = vpop.f32.mrf.mxu0
    %v273 = vadd.f32 %v133, %v272
    %v274 = vpop.f32.mrf.mxu0
    %v275 = vadd.f32 %v133, %v274
    %276 = vdwg.mxu0
    %277 = vmatpush.bf16.msra.mxu0 0
    %278 = vmatpush.bf16.msra.mxu0 0
    %279 = vmatpush.bf16.msra.mxu0 0
    %280 = vmatpush.bf16.msra.mxu0 0
    %281 = vmatpush.bf16.msra.mxu0 0
    %282 = vmatpush.bf16.msra.mxu0 0
    %283 = vmatpush.bf16.msra.mxu0 0
    %284 = vmatpush.bf16.msra.mxu0 %v179
    %285 = vmatmul.bf16.gmra.mxu0 %v191
    %v286 = vpop.f32.mrf.mxu0
    %v287 = vadd.f32 %v134, %v286
    %v288 = vpop.f32.mrf.mxu0
    %v289 = vadd.f32 %v134, %v288
    %290 = vdwg.mxu0
    %291 = vmatpush.bf16.msra.mxu0 0
    %292 = vmatpush.bf16.msra.mxu0 0
    %293 = vmatpush.bf16.msra.mxu0 0
    %294 = vmatpush.bf16.msra.mxu0 0
    %295 = vmatpush.bf16.msra.mxu0 0
    %296 = vmatpush.bf16.msra.mxu0 0
    %297 = vmatpush.bf16.msra.mxu0 0
    %298 = vmatpush.bf16.msra.mxu0 %v180
    %299 = vmatmul.bf16.gmra.mxu0 %v191
    %v300 = vpop.f32.mrf.mxu0
    %v301 = vadd.f32 %v135, %v300
    %v302 = vpop.f32.mrf.mxu0
    %v303 = vadd.f32 %v135, %v302
    %304 = vdwg.mxu0
    %v305 = vmax.f32 %v203, 0.0
    %v306 = vmax.f32 %v217, 0.0
    %v307 = vmax.f32 %v231, 0.0
    %v308 = vmax.f32 %v245, 0.0
    %v309 = vmax.f32 %v259, 0.0
    %v310 = vmax.f32 %v273, 0.0
    %v311 = vmax.f32 %v287, 0.0
    %v312 = vmax.f32 %v301, 0.0
    %v313 = vmax.f32 %v205, 0.0
    %v314 = vmax.f32 %v219, 0.0
    %v315 = vmax.f32 %v233, 0.0
    %v316 = vmax.f32 %v247, 0.0
    %v317 = vmax.f32 %v261, 0.0
    %v318 = vmax.f32 %v275, 0.0
    %v319 = vmax.f32 %v289, 0.0
    %v320 = vmax.f32 %v303, 0.0
    %v321 = vpack.c.bf16 %v313, %v305
    %v322 = vpack.c.bf16 %v314, %v306
    %v323 = vpack.c.bf16 %v315, %v307
    %v324 = vpack.c.bf16 %v316, %v308
    %v325 = vpack.c.bf16 %v317, %v309
    %v326 = vpack.c.bf16 %v318, %v310
    %v327 = vpack.c.bf16 %v319, %v311
    %v328 = vpack.c.bf16 %v320, %v312
    %v329 = vld [vmem:[#allocation8] sm:$0xff]
    %v330 = vld [vmem:[#allocation8 + $0x8] sm:$0xff]
    %v331 = vld [vmem:[#allocation8 + $0x10] sm:$0xff]
    %v332 = vld [vmem:[#allocation8 + $0x18] sm:$0xff]
    %v333 = vld [vmem:[#allocation8 + $0x20] sm:$0xff]
    %v334 = vld [vmem:[#allocation8 + $0x28] sm:$0xff]
    %v335 = vld [vmem:[#allocation8 + $0x30] sm:$0xff]
    %v336 = vld [vmem:[#allocation8 + $0x38] sm:$0xff]
    %v337 = vld [vmem:[#allocation8 + $0x40] sm:$0xff]
    %v338 = vld [vmem:[#allocation8 + $0x48] sm:$0xff]
    %v339 = vld [vmem:[#allocation8 + $0x50] sm:$0xff]
    %v340 = vld [vmem:[#allocation8 + $0x58] sm:$0xff]
    %v341 = vld [vmem:[#allocation8 + $0x60] sm:$0xff]
    %v342 = vld [vmem:[#allocation8 + $0x68] sm:$0xff]
    %v343 = vld [vmem:[#allocation8 + $0x70] sm:$0xff]
    %v344 = vld [vmem:[#allocation8 + $0x78] sm:$0xff]
    %v345 = vld [vmem:[#allocation8 + $0x80] sm:$0xff]
    %v346 = vld [vmem:[#allocation8 + $0x88] sm:$0xff]
    %v347 = vld [vmem:[#allocation8 + $0x90] sm:$0xff]
    %v348 = vld [vmem:[#allocation8 + $0x98] sm:$0xff]
    %v349 = vld [vmem:[#allocation8 + $0xa0] sm:$0xff]
    %v350 = vld [vmem:[#allocation8 + $0xa8] sm:$0xff]
    %v351 = vld [vmem:[#allocation8 + $0xb0] sm:$0xff]
    %v352 = vld [vmem:[#allocation8 + $0xb8] sm:$0xff]
    %v353 = vld [vmem:[#allocation8 + $0xc0] sm:$0xff]
    %v354 = vld [vmem:[#allocation8 + $0xc8] sm:$0xff]
    %v355 = vld [vmem:[#allocation8 + $0xd0] sm:$0xff]
    %v356 = vld [vmem:[#allocation8 + $0xd8] sm:$0xff]
    %v357 = vld [vmem:[#allocation8 + $0xe0] sm:$0xff]
    %v358 = vld [vmem:[#allocation8 + $0xe8] sm:$0xff]
    %v359 = vld [vmem:[#allocation8 + $0xf0] sm:$0xff]
    %v360 = vld [vmem:[#allocation8 + $0xf8] sm:$0xff]
    %v361 = vld [vmem:[#allocation8 + $0x100] sm:$0xff]
    %v362 = vld [vmem:[#allocation8 + $0x108] sm:$0xff]
    %v363 = vld [vmem:[#allocation8 + $0x110] sm:$0xff]
    %v364 = vld [vmem:[#allocation8 + $0x118] sm:$0xff]
    %v365 = vld [vmem:[#allocation8 + $0x120] sm:$0xff]
    %v366 = vld [vmem:[#allocation8 + $0x128] sm:$0xff]
    %v367 = vld [vmem:[#allocation8 + $0x130] sm:$0xff]
    %v368 = vld [vmem:[#allocation8 + $0x138] sm:$0xff]
    %v369 = vld [vmem:[#allocation8 + $0x140] sm:$0xff]
    %v370 = vld [vmem:[#allocation8 + $0x148] sm:$0xff]
    %v371 = vld [vmem:[#allocation8 + $0x150] sm:$0xff]
    %v372 = vld [vmem:[#allocation8 + $0x158] sm:$0xff]
    %v373 = vld [vmem:[#allocation8 + $0x160] sm:$0xff]
    %v374 = vld [vmem:[#allocation8 + $0x168] sm:$0xff]
    %v375 = vld [vmem:[#allocation8 + $0x170] sm:$0xff]
    %v376 = vld [vmem:[#allocation8 + $0x178] sm:$0xff]
    %v377 = vld [vmem:[#allocation8 + $0x180] sm:$0xff]
    %v378 = vld [vmem:[#allocation8 + $0x188] sm:$0xff]
    %v379 = vld [vmem:[#allocation8 + $0x190] sm:$0xff]
    %v380 = vld [vmem:[#allocation8 + $0x198] sm:$0xff]
    %v381 = vld [vmem:[#allocation8 + $0x1a0] sm:$0xff]
    %v382 = vld [vmem:[#allocation8 + $0x1a8] sm:$0xff]
    %v383 = vld [vmem:[#allocation8 + $0x1b0] sm:$0xff]
    %v384 = vld [vmem:[#allocation8 + $0x1b8] sm:$0xff]
    %v385 = vld [vmem:[#allocation8 + $0x1c0] sm:$0xff]
    %v386 = vld [vmem:[#allocation8 + $0x1c8] sm:$0xff]
    %v387 = vld [vmem:[#allocation8 + $0x1d0] sm:$0xff]
    %v388 = vld [vmem:[#allocation8 + $0x1d8] sm:$0xff]
    %v389 = vld [vmem:[#allocation8 + $0x1e0] sm:$0xff]
    %v390 = vld [vmem:[#allocation8 + $0x1e8] sm:$0xff]
    %v391 = vld [vmem:[#allocation8 + $0x1f0] sm:$0xff]
    %v392 = vld [vmem:[#allocation8 + $0x1f8] sm:$0xff]
    %v393 = vld [vmem:[#allocation8 + $0x200] sm:$0xff]
    %v394 = vld [vmem:[#allocation8 + $0x208] sm:$0xff]
    %v395 = vld [vmem:[#allocation8 + $0x210] sm:$0xff]
    %v396 = vld [vmem:[#allocation8 + $0x218] sm:$0xff]
    %v397 = vld [vmem:[#allocation8 + $0x220] sm:$0xff]
    %v398 = vld [vmem:[#allocation8 + $0x228] sm:$0xff]
    %v399 = vld [vmem:[#allocation8 + $0x230] sm:$0xff]
    %v400 = vld [vmem:[#allocation8 + $0x238] sm:$0xff]
    %v401 = vld [vmem:[#allocation8 + $0x240] sm:$0xff]
    %v402 = vld [vmem:[#allocation8 + $0x248] sm:$0xff]
    %v403 = vld [vmem:[#allocation8 + $0x250] sm:$0xff]
    %v404 = vld [vmem:[#allocation8 + $0x258] sm:$0xff]
    %v405 = vld [vmem:[#allocation8 + $0x260] sm:$0xff]
    %v406 = vld [vmem:[#allocation8 + $0x268] sm:$0xff]
    %v407 = vld [vmem:[#allocation8 + $0x270] sm:$0xff]
    %v408 = vld [vmem:[#allocation8 + $0x278] sm:$0xff]
    %v409 = vld [vmem:[#allocation8 + $0x280] sm:$0xff]
    %v410 = vld [vmem:[#allocation8 + $0x288] sm:$0xff]
    %v411 = vld [vmem:[#allocation8 + $0x290] sm:$0xff]
    %v412 = vld [vmem:[#allocation8 + $0x298] sm:$0xff]
    %v413 = vld [vmem:[#allocation8 + $0x2a0] sm:$0xff]
    %v414 = vld [vmem:[#allocation8 + $0x2a8] sm:$0xff]
    %v415 = vld [vmem:[#allocation8 + $0x2b0] sm:$0xff]
    %v416 = vld [vmem:[#allocation8 + $0x2b8] sm:$0xff]
    %v417 = vld [vmem:[#allocation8 + $0x2c0] sm:$0xff]
    %v418 = vld [vmem:[#allocation8 + $0x2c8] sm:$0xff]
    %v419 = vld [vmem:[#allocation8 + $0x2d0] sm:$0xff]
    %v420 = vld [vmem:[#allocation8 + $0x2d8] sm:$0xff]
    %v421 = vld [vmem:[#allocation8 + $0x2e0] sm:$0xff]
    %v422 = vld [vmem:[#allocation8 + $0x2e8] sm:$0xff]
    %v423 = vld [vmem:[#allocation8 + $0x2f0] sm:$0xff]
    %v424 = vld [vmem:[#allocation8 + $0x2f8] sm:$0xff]
    %v425 = vld [vmem:[#allocation8 + $0x300] sm:$0xff]
    %v426 = vld [vmem:[#allocation8 + $0x308] sm:$0xff]
    %v427 = vld [vmem:[#allocation8 + $0x310] sm:$0xff]
    %v428 = vld [vmem:[#allocation8 + $0x318] sm:$0xff]
    %v429 = vld [vmem:[#allocation8 + $0x320] sm:$0xff]
    %v430 = vld [vmem:[#allocation8 + $0x328] sm:$0xff]
    %v431 = vld [vmem:[#allocation8 + $0x330] sm:$0xff]
    %v432 = vld [vmem:[#allocation8 + $0x338] sm:$0xff]
    %v433 = vld [vmem:[#allocation8 + $0x340] sm:$0xff]
    %v434 = vld [vmem:[#allocation8 + $0x348] sm:$0xff]
    %v435 = vld [vmem:[#allocation8 + $0x350] sm:$0xff]
    %v436 = vld [vmem:[#allocation8 + $0x358] sm:$0xff]
    %v437 = vld [vmem:[#allocation8 + $0x360] sm:$0xff]
    %v438 = vld [vmem:[#allocation8 + $0x368] sm:$0xff]
    %v439 = vld [vmem:[#allocation8 + $0x370] sm:$0xff]
    %v440 = vld [vmem:[#allocation8 + $0x378] sm:$0xff]
    %v441 = vld [vmem:[#allocation8 + $0x380] sm:$0xff]
    %v442 = vld [vmem:[#allocation8 + $0x388] sm:$0xff]
    %v443 = vld [vmem:[#allocation8 + $0x390] sm:$0xff]
    %v444 = vld [vmem:[#allocation8 + $0x398] sm:$0xff]
    %v445 = vld [vmem:[#allocation8 + $0x3a0] sm:$0xff]
    %v446 = vld [vmem:[#allocation8 + $0x3a8] sm:$0xff]
    %v447 = vld [vmem:[#allocation8 + $0x3b0] sm:$0xff]
    %v448 = vld [vmem:[#allocation8 + $0x3b8] sm:$0xff]
    %v449 = vld [vmem:[#allocation8 + $0x3c0] sm:$0xff]
    %v450 = vld [vmem:[#allocation8 + $0x3c8] sm:$0xff]
    %v451 = vld [vmem:[#allocation8 + $0x3d0] sm:$0xff]
    %v452 = vld [vmem:[#allocation8 + $0x3d8] sm:$0xff]
    %v453 = vld [vmem:[#allocation8 + $0x3e0] sm:$0xff]
    %v454 = vld [vmem:[#allocation8 + $0x3e8] sm:$0xff]
    %v455 = vld [vmem:[#allocation8 + $0x3f0] sm:$0xff]
    %v456 = vld [vmem:[#allocation8 + $0x3f8] sm:$0xff]
    %v457 = vld [vmem:[#allocation8 + $0x400] sm:$0xff]
    %v458 = vld [vmem:[#allocation8 + $0x408] sm:$0xff]
    %v459 = vld [vmem:[#allocation8 + $0x410] sm:$0xff]
    %v460 = vld [vmem:[#allocation8 + $0x418] sm:$0xff]
    %v461 = vld [vmem:[#allocation8 + $0x420] sm:$0xff]
    %v462 = vld [vmem:[#allocation8 + $0x428] sm:$0xff]
    %v463 = vld [vmem:[#allocation8 + $0x430] sm:$0xff]
    %v464 = vld [vmem:[#allocation8 + $0x438] sm:$0xff]
    %v465 = vld [vmem:[#allocation8 + $0x440] sm:$0xff]
    %v466 = vld [vmem:[#allocation8 + $0x448] sm:$0xff]
    %v467 = vld [vmem:[#allocation8 + $0x450] sm:$0xff]
    %v468 = vld [vmem:[#allocation8 + $0x458] sm:$0xff]
    %v469 = vld [vmem:[#allocation8 + $0x460] sm:$0xff]
    %v470 = vld [vmem:[#allocation8 + $0x468] sm:$0xff]
    %v471 = vld [vmem:[#allocation8 + $0x470] sm:$0xff]
    %v472 = vld [vmem:[#allocation8 + $0x478] sm:$0xff]
    %v473 = vld [vmem:[#allocation8 + $0x480] sm:$0xff]
    %v474 = vld [vmem:[#allocation8 + $0x488] sm:$0xff]
    %v475 = vld [vmem:[#allocation8 + $0x490] sm:$0xff]
    %v476 = vld [vmem:[#allocation8 + $0x498] sm:$0xff]
    %v477 = vld [vmem:[#allocation8 + $0x4a0] sm:$0xff]
    %v478 = vld [vmem:[#allocation8 + $0x4a8] sm:$0xff]
    %v479 = vld [vmem:[#allocation8 + $0x4b0] sm:$0xff]
    %v480 = vld [vmem:[#allocation8 + $0x4b8] sm:$0xff]
    %v481 = vld [vmem:[#allocation8 + $0x4c0] sm:$0xff]
    %v482 = vld [vmem:[#allocation8 + $0x4c8] sm:$0xff]
    %v483 = vld [vmem:[#allocation8 + $0x4d0] sm:$0xff]
    %v484 = vld [vmem:[#allocation8 + $0x4d8] sm:$0xff]
    %v485 = vld [vmem:[#allocation8 + $0x4e0] sm:$0xff]
    %v486 = vld [vmem:[#allocation8 + $0x4e8] sm:$0xff]
    %v487 = vld [vmem:[#allocation8 + $0x4f0] sm:$0xff]
    %v488 = vld [vmem:[#allocation8 + $0x4f8] sm:$0xff]
    %v489 = vld [vmem:[#allocation8 + $0x500] sm:$0xff]
    %v490 = vld [vmem:[#allocation8 + $0x508] sm:$0xff]
    %v491 = vld [vmem:[#allocation8 + $0x510] sm:$0xff]
    %v492 = vld [vmem:[#allocation8 + $0x518] sm:$0xff]
    %v493 = vld [vmem:[#allocation8 + $0x520] sm:$0xff]
    %v494 = vld [vmem:[#allocation8 + $0x528] sm:$0xff]
    %v495 = vld [vmem:[#allocation8 + $0x530] sm:$0xff]
    %v496 = vld [vmem:[#allocation8 + $0x538] sm:$0xff]
    %v497 = vld [vmem:[#allocation8 + $0x540] sm:$0xff]
    %v498 = vld [vmem:[#allocation8 + $0x548] sm:$0xff]
    %v499 = vld [vmem:[#allocation8 + $0x550] sm:$0xff]
    %v500 = vld [vmem:[#allocation8 + $0x558] sm:$0xff]
    %v501 = vld [vmem:[#allocation8 + $0x560] sm:$0xff]
    %v502 = vld [vmem:[#allocation8 + $0x568] sm:$0xff]
    %v503 = vld [vmem:[#allocation8 + $0x570] sm:$0xff]
    %v504 = vld [vmem:[#allocation8 + $0x578] sm:$0xff]
    %v505 = vld [vmem:[#allocation8 + $0x580] sm:$0xff]
    %v506 = vld [vmem:[#allocation8 + $0x588] sm:$0xff]
    %v507 = vld [vmem:[#allocation8 + $0x590] sm:$0xff]
    %v508 = vld [vmem:[#allocation8 + $0x598] sm:$0xff]
    %v509 = vld [vmem:[#allocation8 + $0x5a0] sm:$0xff]
    %v510 = vld [vmem:[#allocation8 + $0x5a8] sm:$0xff]
    %v511 = vld [vmem:[#allocation8 + $0x5b0] sm:$0xff]
    %v512 = vld [vmem:[#allocation8 + $0x5b8] sm:$0xff]
    %v513 = vld [vmem:[#allocation8 + $0x5c0] sm:$0xff]
    %v514 = vld [vmem:[#allocation8 + $0x5c8] sm:$0xff]
    %v515 = vld [vmem:[#allocation8 + $0x5d0] sm:$0xff]
    %v516 = vld [vmem:[#allocation8 + $0x5d8] sm:$0xff]
    %v517 = vld [vmem:[#allocation8 + $0x5e0] sm:$0xff]
    %v518 = vld [vmem:[#allocation8 + $0x5e8] sm:$0xff]
    %v519 = vld [vmem:[#allocation8 + $0x5f0] sm:$0xff]
    %v520 = vld [vmem:[#allocation8 + $0x5f8] sm:$0xff]
    %v521 = vld [vmem:[#allocation8 + $0x600] sm:$0xff]
    %v522 = vld [vmem:[#allocation8 + $0x608] sm:$0xff]
    %v523 = vld [vmem:[#allocation8 + $0x610] sm:$0xff]
    %v524 = vld [vmem:[#allocation8 + $0x618] sm:$0xff]
    %v525 = vld [vmem:[#allocation8 + $0x620] sm:$0xff]
    %v526 = vld [vmem:[#allocation8 + $0x628] sm:$0xff]
    %v527 = vld [vmem:[#allocation8 + $0x630] sm:$0xff]
    %v528 = vld [vmem:[#allocation8 + $0x638] sm:$0xff]
    %v529 = vld [vmem:[#allocation8 + $0x640] sm:$0xff]
    %v530 = vld [vmem:[#allocation8 + $0x648] sm:$0xff]
    %v531 = vld [vmem:[#allocation8 + $0x650] sm:$0xff]
    %v532 = vld [vmem:[#allocation8 + $0x658] sm:$0xff]
    %v533 = vld [vmem:[#allocation8 + $0x660] sm:$0xff]
    %v534 = vld [vmem:[#allocation8 + $0x668] sm:$0xff]
    %v535 = vld [vmem:[#allocation8 + $0x670] sm:$0xff]
    %v536 = vld [vmem:[#allocation8 + $0x678] sm:$0xff]
    %v537 = vld [vmem:[#allocation8 + $0x680] sm:$0xff]
    %v538 = vld [vmem:[#allocation8 + $0x688] sm:$0xff]
    %v539 = vld [vmem:[#allocation8 + $0x690] sm:$0xff]
    %v540 = vld [vmem:[#allocation8 + $0x698] sm:$0xff]
    %v541 = vld [vmem:[#allocation8 + $0x6a0] sm:$0xff]
    %v542 = vld [vmem:[#allocation8 + $0x6a8] sm:$0xff]
    %v543 = vld [vmem:[#allocation8 + $0x6b0] sm:$0xff]
    %v544 = vld [vmem:[#allocation8 + $0x6b8] sm:$0xff]
    %v545 = vld [vmem:[#allocation8 + $0x6c0] sm:$0xff]
    %v546 = vld [vmem:[#allocation8 + $0x6c8] sm:$0xff]
    %v547 = vld [vmem:[#allocation8 + $0x6d0] sm:$0xff]
    %v548 = vld [vmem:[#allocation8 + $0x6d8] sm:$0xff]
    %v549 = vld [vmem:[#allocation8 + $0x6e0] sm:$0xff]
    %v550 = vld [vmem:[#allocation8 + $0x6e8] sm:$0xff]
    %v551 = vld [vmem:[#allocation8 + $0x6f0] sm:$0xff]
    %v552 = vld [vmem:[#allocation8 + $0x6f8] sm:$0xff]
    %v553 = vld [vmem:[#allocation8 + $0x700] sm:$0xff]
    %v554 = vld [vmem:[#allocation8 + $0x708] sm:$0xff]
    %v555 = vld [vmem:[#allocation8 + $0x710] sm:$0xff]
    %v556 = vld [vmem:[#allocation8 + $0x718] sm:$0xff]
    %v557 = vld [vmem:[#allocation8 + $0x720] sm:$0xff]
    %v558 = vld [vmem:[#allocation8 + $0x728] sm:$0xff]
    %v559 = vld [vmem:[#allocation8 + $0x730] sm:$0xff]
    %v560 = vld [vmem:[#allocation8 + $0x738] sm:$0xff]
    %v561 = vld [vmem:[#allocation8 + $0x740] sm:$0xff]
    %v562 = vld [vmem:[#allocation8 + $0x748] sm:$0xff]
    %v563 = vld [vmem:[#allocation8 + $0x750] sm:$0xff]
    %v564 = vld [vmem:[#allocation8 + $0x758] sm:$0xff]
    %v565 = vld [vmem:[#allocation8 + $0x760] sm:$0xff]
    %v566 = vld [vmem:[#allocation8 + $0x768] sm:$0xff]
    %v567 = vld [vmem:[#allocation8 + $0x770] sm:$0xff]
    %v568 = vld [vmem:[#allocation8 + $0x778] sm:$0xff]
    %v569 = vld [vmem:[#allocation8 + $0x780] sm:$0xff]
    %v570 = vld [vmem:[#allocation8 + $0x788] sm:$0xff]
    %v571 = vld [vmem:[#allocation8 + $0x790] sm:$0xff]
    %v572 = vld [vmem:[#allocation8 + $0x798] sm:$0xff]
    %v573 = vld [vmem:[#allocation8 + $0x7a0] sm:$0xff]
    %v574 = vld [vmem:[#allocation8 + $0x7a8] sm:$0xff]
    %v575 = vld [vmem:[#allocation8 + $0x7b0] sm:$0xff]
    %v576 = vld [vmem:[#allocation8 + $0x7b8] sm:$0xff]
    %v577 = vld [vmem:[#allocation8 + $0x7c0] sm:$0xff]
    %v578 = vld [vmem:[#allocation8 + $0x7c8] sm:$0xff]
    %v579 = vld [vmem:[#allocation8 + $0x7d0] sm:$0xff]
    %v580 = vld [vmem:[#allocation8 + $0x7d8] sm:$0xff]
    %v581 = vld [vmem:[#allocation8 + $0x7e0] sm:$0xff]
    %v582 = vld [vmem:[#allocation8 + $0x7e8] sm:$0xff]
    %v583 = vld [vmem:[#allocation8 + $0x7f0] sm:$0xff]
    %v584 = vld [vmem:[#allocation8 + $0x7f8] sm:$0xff]
    %v585 = vld [vmem:[#allocation8 + $0x800] sm:$0xff]
    %v586 = vld [vmem:[#allocation8 + $0x808] sm:$0xff]
    %v587 = vld [vmem:[#allocation8 + $0x810] sm:$0xff]
    %v588 = vld [vmem:[#allocation8 + $0x818] sm:$0xff]
    %v589 = vld [vmem:[#allocation8 + $0x820] sm:$0xff]
    %v590 = vld [vmem:[#allocation8 + $0x828] sm:$0xff]
    %v591 = vld [vmem:[#allocation8 + $0x830] sm:$0xff]
    %v592 = vld [vmem:[#allocation8 + $0x838] sm:$0xff]
    %v593 = vld [vmem:[#allocation8 + $0x840] sm:$0xff]
    %v594 = vld [vmem:[#allocation8 + $0x848] sm:$0xff]
    %v595 = vld [vmem:[#allocation8 + $0x850] sm:$0xff]
    %v596 = vld [vmem:[#allocation8 + $0x858] sm:$0xff]
    %v597 = vld [vmem:[#allocation8 + $0x860] sm:$0xff]
    %v598 = vld [vmem:[#allocation8 + $0x868] sm:$0xff]
    %v599 = vld [vmem:[#allocation8 + $0x870] sm:$0xff]
    %v600 = vld [vmem:[#allocation8 + $0x878] sm:$0xff]
    %v601 = vld [vmem:[#allocation8 + $0x880] sm:$0xff]
    %v602 = vld [vmem:[#allocation8 + $0x888] sm:$0xff]
    %v603 = vld [vmem:[#allocation8 + $0x890] sm:$0xff]
    %v604 = vld [vmem:[#allocation8 + $0x898] sm:$0xff]
    %v605 = vld [vmem:[#allocation8 + $0x8a0] sm:$0xff]
    %v606 = vld [vmem:[#allocation8 + $0x8a8] sm:$0xff]
    %v607 = vld [vmem:[#allocation8 + $0x8b0] sm:$0xff]
    %v608 = vld [vmem:[#allocation8 + $0x8b8] sm:$0xff]
    %v609 = vld [vmem:[#allocation8 + $0x8c0] sm:$0xff]
    %v610 = vld [vmem:[#allocation8 + $0x8c8] sm:$0xff]
    %v611 = vld [vmem:[#allocation8 + $0x8d0] sm:$0xff]
    %v612 = vld [vmem:[#allocation8 + $0x8d8] sm:$0xff]
    %v613 = vld [vmem:[#allocation8 + $0x8e0] sm:$0xff]
    %v614 = vld [vmem:[#allocation8 + $0x8e8] sm:$0xff]
    %v615 = vld [vmem:[#allocation8 + $0x8f0] sm:$0xff]
    %v616 = vld [vmem:[#allocation8 + $0x8f8] sm:$0xff]
    %v617 = vld [vmem:[#allocation8 + $0x900] sm:$0xff]
    %v618 = vld [vmem:[#allocation8 + $0x908] sm:$0xff]
    %v619 = vld [vmem:[#allocation8 + $0x910] sm:$0xff]
    %v620 = vld [vmem:[#allocation8 + $0x918] sm:$0xff]
    %v621 = vld [vmem:[#allocation8 + $0x920] sm:$0xff]
    %v622 = vld [vmem:[#allocation8 + $0x928] sm:$0xff]
    %v623 = vld [vmem:[#allocation8 + $0x930] sm:$0xff]
    %v624 = vld [vmem:[#allocation8 + $0x938] sm:$0xff]
    %v625 = vld [vmem:[#allocation8 + $0x940] sm:$0xff]
    %v626 = vld [vmem:[#allocation8 + $0x948] sm:$0xff]
    %v627 = vld [vmem:[#allocation8 + $0x950] sm:$0xff]
    %v628 = vld [vmem:[#allocation8 + $0x958] sm:$0xff]
    %v629 = vld [vmem:[#allocation8 + $0x960] sm:$0xff]
    %v630 = vld [vmem:[#allocation8 + $0x968] sm:$0xff]
    %v631 = vld [vmem:[#allocation8 + $0x970] sm:$0xff]
    %v632 = vld [vmem:[#allocation8 + $0x978] sm:$0xff]
    %v633 = vld [vmem:[#allocation8 + $0x980] sm:$0xff]
    %v634 = vld [vmem:[#allocation8 + $0x988] sm:$0xff]
    %v635 = vld [vmem:[#allocation8 + $0x990] sm:$0xff]
    %v636 = vld [vmem:[#allocation8 + $0x998] sm:$0xff]
    %v637 = vld [vmem:[#allocation8 + $0x9a0] sm:$0xff]
    %v638 = vld [vmem:[#allocation8 + $0x9a8] sm:$0xff]
    %v639 = vld [vmem:[#allocation8 + $0x9b0] sm:$0xff]
    %v640 = vld [vmem:[#allocation8 + $0x9b8] sm:$0xff]
    %v641 = vld [vmem:[#allocation8 + $0x9c0] sm:$0xff]
    %v642 = vld [vmem:[#allocation8 + $0x9c8] sm:$0xff]
    %v643 = vld [vmem:[#allocation8 + $0x9d0] sm:$0xff]
    %v644 = vld [vmem:[#allocation8 + $0x9d8] sm:$0xff]
    %v645 = vld [vmem:[#allocation8 + $0x9e0] sm:$0xff]
    %v646 = vld [vmem:[#allocation8 + $0x9e8] sm:$0xff]
    %v647 = vld [vmem:[#allocation8 + $0x9f0] sm:$0xff]
    %v648 = vld [vmem:[#allocation8 + $0x9f8] sm:$0xff]
    %v649 = vld [vmem:[#allocation8 + $0xa00] sm:$0xff]
    %v650 = vld [vmem:[#allocation8 + $0xa08] sm:$0xff]
    %v651 = vld [vmem:[#allocation8 + $0xa10] sm:$0xff]
    %v652 = vld [vmem:[#allocation8 + $0xa18] sm:$0xff]
    %v653 = vld [vmem:[#allocation8 + $0xa20] sm:$0xff]
    %v654 = vld [vmem:[#allocation8 + $0xa28] sm:$0xff]
    %v655 = vld [vmem:[#allocation8 + $0xa30] sm:$0xff]
    %v656 = vld [vmem:[#allocation8 + $0xa38] sm:$0xff]
    %v657 = vld [vmem:[#allocation8 + $0xa40] sm:$0xff]
    %v658 = vld [vmem:[#allocation8 + $0xa48] sm:$0xff]
    %v659 = vld [vmem:[#allocation8 + $0xa50] sm:$0xff]
    %v660 = vld [vmem:[#allocation8 + $0xa58] sm:$0xff]
    %v661 = vld [vmem:[#allocation8 + $0xa60] sm:$0xff]
    %v662 = vld [vmem:[#allocation8 + $0xa68] sm:$0xff]
    %v663 = vld [vmem:[#allocation8 + $0xa70] sm:$0xff]
    %v664 = vld [vmem:[#allocation8 + $0xa78] sm:$0xff]
    %v665 = vld [vmem:[#allocation8 + $0xa80] sm:$0xff]
    %v666 = vld [vmem:[#allocation8 + $0xa88] sm:$0xff]
    %v667 = vld [vmem:[#allocation8 + $0xa90] sm:$0xff]
    %v668 = vld [vmem:[#allocation8 + $0xa98] sm:$0xff]
    %v669 = vld [vmem:[#allocation8 + $0xaa0] sm:$0xff]
    %v670 = vld [vmem:[#allocation8 + $0xaa8] sm:$0xff]
    %v671 = vld [vmem:[#allocation8 + $0xab0] sm:$0xff]
    %v672 = vld [vmem:[#allocation8 + $0xab8] sm:$0xff]
    %v673 = vld [vmem:[#allocation8 + $0xac0] sm:$0xff]
    %v674 = vld [vmem:[#allocation8 + $0xac8] sm:$0xff]
    %v675 = vld [vmem:[#allocation8 + $0xad0] sm:$0xff]
    %v676 = vld [vmem:[#allocation8 + $0xad8] sm:$0xff]
    %v677 = vld [vmem:[#allocation8 + $0xae0] sm:$0xff]
    %v678 = vld [vmem:[#allocation8 + $0xae8] sm:$0xff]
    %v679 = vld [vmem:[#allocation8 + $0xaf0] sm:$0xff]
    %v680 = vld [vmem:[#allocation8 + $0xaf8] sm:$0xff]
    %v681 = vld [vmem:[#allocation8 + $0xb00] sm:$0xff]
    %v682 = vld [vmem:[#allocation8 + $0xb08] sm:$0xff]
    %v683 = vld [vmem:[#allocation8 + $0xb10] sm:$0xff]
    %v684 = vld [vmem:[#allocation8 + $0xb18] sm:$0xff]
    %v685 = vld [vmem:[#allocation8 + $0xb20] sm:$0xff]
    %v686 = vld [vmem:[#allocation8 + $0xb28] sm:$0xff]
    %v687 = vld [vmem:[#allocation8 + $0xb30] sm:$0xff]
    %v688 = vld [vmem:[#allocation8 + $0xb38] sm:$0xff]
    %v689 = vld [vmem:[#allocation8 + $0xb40] sm:$0xff]
    %v690 = vld [vmem:[#allocation8 + $0xb48] sm:$0xff]
    %v691 = vld [vmem:[#allocation8 + $0xb50] sm:$0xff]
    %v692 = vld [vmem:[#allocation8 + $0xb58] sm:$0xff]
    %v693 = vld [vmem:[#allocation8 + $0xb60] sm:$0xff]
    %v694 = vld [vmem:[#allocation8 + $0xb68] sm:$0xff]
    %v695 = vld [vmem:[#allocation8 + $0xb70] sm:$0xff]
    %v696 = vld [vmem:[#allocation8 + $0xb78] sm:$0xff]
    %v697 = vld [vmem:[#allocation8 + $0xb80] sm:$0xff]
    %v698 = vld [vmem:[#allocation8 + $0xb88] sm:$0xff]
    %v699 = vld [vmem:[#allocation8 + $0xb90] sm:$0xff]
    %v700 = vld [vmem:[#allocation8 + $0xb98] sm:$0xff]
    %v701 = vld [vmem:[#allocation8 + $0xba0] sm:$0xff]
    %v702 = vld [vmem:[#allocation8 + $0xba8] sm:$0xff]
    %v703 = vld [vmem:[#allocation8 + $0xbb0] sm:$0xff]
    %v704 = vld [vmem:[#allocation8 + $0xbb8] sm:$0xff]
    %v705 = vld [vmem:[#allocation8 + $0xbc0] sm:$0xff]
    %v706 = vld [vmem:[#allocation8 + $0xbc8] sm:$0xff]
    %v707 = vld [vmem:[#allocation8 + $0xbd0] sm:$0xff]
    %v708 = vld [vmem:[#allocation8 + $0xbd8] sm:$0xff]
    %v709 = vld [vmem:[#allocation8 + $0xbe0] sm:$0xff]
    %v710 = vld [vmem:[#allocation8 + $0xbe8] sm:$0xff]
    %v711 = vld [vmem:[#allocation8 + $0xbf0] sm:$0xff]
    %v712 = vld [vmem:[#allocation8 + $0xbf8] sm:$0xff]
    %v713 = vld [vmem:[#allocation8 + $0xc00] sm:$0xff]
    %v714 = vld [vmem:[#allocation8 + $0xc08] sm:$0xff]
    %v715 = vld [vmem:[#allocation8 + $0xc10] sm:$0xff]
    %v716 = vld [vmem:[#allocation8 + $0xc18] sm:$0xff]
    %v717 = vld [vmem:[#allocation8 + $0xc20] sm:$0xff]
    %v718 = vld [vmem:[#allocation8 + $0xc28] sm:$0xff]
    %v719 = vld [vmem:[#allocation8 + $0xc30] sm:$0xff]
    %v720 = vld [vmem:[#allocation8 + $0xc38] sm:$0xff]
    %v721 = vld [vmem:[#allocation8 + $0xc40] sm:$0xff]
    %v722 = vld [vmem:[#allocation8 + $0xc48] sm:$0xff]
    %v723 = vld [vmem:[#allocation8 + $0xc50] sm:$0xff]
    %v724 = vld [vmem:[#allocation8 + $0xc58] sm:$0xff]
    %v725 = vld [vmem:[#allocation8 + $0xc60] sm:$0xff]
    %v726 = vld [vmem:[#allocation8 + $0xc68] sm:$0xff]
    %v727 = vld [vmem:[#allocation8 + $0xc70] sm:$0xff]
    %v728 = vld [vmem:[#allocation8 + $0xc78] sm:$0xff]
    %v729 = vld [vmem:[#allocation8 + $0xc80] sm:$0xff]
    %v730 = vld [vmem:[#allocation8 + $0xc88] sm:$0xff]
    %v731 = vld [vmem:[#allocation8 + $0xc90] sm:$0xff]
    %v732 = vld [vmem:[#allocation8 + $0xc98] sm:$0xff]
    %v733 = vld [vmem:[#allocation8 + $0xca0] sm:$0xff]
    %v734 = vld [vmem:[#allocation8 + $0xca8] sm:$0xff]
    %v735 = vld [vmem:[#allocation8 + $0xcb0] sm:$0xff]
    %v736 = vld [vmem:[#allocation8 + $0xcb8] sm:$0xff]
    %v737 = vld [vmem:[#allocation8 + $0xcc0] sm:$0xff]
    %v738 = vld [vmem:[#allocation8 + $0xcc8] sm:$0xff]
    %v739 = vld [vmem:[#allocation8 + $0xcd0] sm:$0xff]
    %v740 = vld [vmem:[#allocation8 + $0xcd8] sm:$0xff]
    %v741 = vld [vmem:[#allocation8 + $0xce0] sm:$0xff]
    %v742 = vld [vmem:[#allocation8 + $0xce8] sm:$0xff]
    %v743 = vld [vmem:[#allocation8 + $0xcf0] sm:$0xff]
    %v744 = vld [vmem:[#allocation8 + $0xcf8] sm:$0xff]
    %v745 = vld [vmem:[#allocation8 + $0xd00] sm:$0xff]
    %v746 = vld [vmem:[#allocation8 + $0xd08] sm:$0xff]
    %v747 = vld [vmem:[#allocation8 + $0xd10] sm:$0xff]
    %v748 = vld [vmem:[#allocation8 + $0xd18] sm:$0xff]
    %v749 = vld [vmem:[#allocation8 + $0xd20] sm:$0xff]
    %v750 = vld [vmem:[#allocation8 + $0xd28] sm:$0xff]
    %v751 = vld [vmem:[#allocation8 + $0xd30] sm:$0xff]
    %v752 = vld [vmem:[#allocation8 + $0xd38] sm:$0xff]
    %v753 = vld [vmem:[#allocation8 + $0xd40] sm:$0xff]
    %v754 = vld [vmem:[#allocation8 + $0xd48] sm:$0xff]
    %v755 = vld [vmem:[#allocation8 + $0xd50] sm:$0xff]
    %v756 = vld [vmem:[#allocation8 + $0xd58] sm:$0xff]
    %v757 = vld [vmem:[#allocation8 + $0xd60] sm:$0xff]
    %v758 = vld [vmem:[#allocation8 + $0xd68] sm:$0xff]
    %v759 = vld [vmem:[#allocation8 + $0xd70] sm:$0xff]
    %v760 = vld [vmem:[#allocation8 + $0xd78] sm:$0xff]
    %v761 = vld [vmem:[#allocation8 + $0xd80] sm:$0xff]
    %v762 = vld [vmem:[#allocation8 + $0xd88] sm:$0xff]
    %v763 = vld [vmem:[#allocation8 + $0xd90] sm:$0xff]
    %v764 = vld [vmem:[#allocation8 + $0xd98] sm:$0xff]
    %v765 = vld [vmem:[#allocation8 + $0xda0] sm:$0xff]
    %v766 = vld [vmem:[#allocation8 + $0xda8] sm:$0xff]
    %v767 = vld [vmem:[#allocation8 + $0xdb0] sm:$0xff]
    %v768 = vld [vmem:[#allocation8 + $0xdb8] sm:$0xff]
    %v769 = vld [vmem:[#allocation8 + $0xdc0] sm:$0xff]
    %v770 = vld [vmem:[#allocation8 + $0xdc8] sm:$0xff]
    %v771 = vld [vmem:[#allocation8 + $0xdd0] sm:$0xff]
    %v772 = vld [vmem:[#allocation8 + $0xdd8] sm:$0xff]
    %v773 = vld [vmem:[#allocation8 + $0xde0] sm:$0xff]
    %v774 = vld [vmem:[#allocation8 + $0xde8] sm:$0xff]
    %v775 = vld [vmem:[#allocation8 + $0xdf0] sm:$0xff]
    %v776 = vld [vmem:[#allocation8 + $0xdf8] sm:$0xff]
    %v777 = vld [vmem:[#allocation8 + $0xe00] sm:$0xff]
    %v778 = vld [vmem:[#allocation8 + $0xe08] sm:$0xff]
    %v779 = vld [vmem:[#allocation8 + $0xe10] sm:$0xff]
    %v780 = vld [vmem:[#allocation8 + $0xe18] sm:$0xff]
    %v781 = vld [vmem:[#allocation8 + $0xe20] sm:$0xff]
    %v782 = vld [vmem:[#allocation8 + $0xe28] sm:$0xff]
    %v783 = vld [vmem:[#allocation8 + $0xe30] sm:$0xff]
    %v784 = vld [vmem:[#allocation8 + $0xe38] sm:$0xff]
    %v785 = vld [vmem:[#allocation8 + $0xe40] sm:$0xff]
    %v786 = vld [vmem:[#allocation8 + $0xe48] sm:$0xff]
    %v787 = vld [vmem:[#allocation8 + $0xe50] sm:$0xff]
    %v788 = vld [vmem:[#allocation8 + $0xe58] sm:$0xff]
    %v789 = vld [vmem:[#allocation8 + $0xe60] sm:$0xff]
    %v790 = vld [vmem:[#allocation8 + $0xe68] sm:$0xff]
    %v791 = vld [vmem:[#allocation8 + $0xe70] sm:$0xff]
    %v792 = vld [vmem:[#allocation8 + $0xe78] sm:$0xff]
    %v793 = vld [vmem:[#allocation8 + $0xe80] sm:$0xff]
    %v794 = vld [vmem:[#allocation8 + $0xe88] sm:$0xff]
    %v795 = vld [vmem:[#allocation8 + $0xe90] sm:$0xff]
    %v796 = vld [vmem:[#allocation8 + $0xe98] sm:$0xff]
    %v797 = vld [vmem:[#allocation8 + $0xea0] sm:$0xff]
    %v798 = vld [vmem:[#allocation8 + $0xea8] sm:$0xff]
    %v799 = vld [vmem:[#allocation8 + $0xeb0] sm:$0xff]
    %v800 = vld [vmem:[#allocation8 + $0xeb8] sm:$0xff]
    %v801 = vld [vmem:[#allocation8 + $0xec0] sm:$0xff]
    %v802 = vld [vmem:[#allocation8 + $0xec8] sm:$0xff]
    %v803 = vld [vmem:[#allocation8 + $0xed0] sm:$0xff]
    %v804 = vld [vmem:[#allocation8 + $0xed8] sm:$0xff]
    %v805 = vld [vmem:[#allocation8 + $0xee0] sm:$0xff]
    %v806 = vld [vmem:[#allocation8 + $0xee8] sm:$0xff]
    %v807 = vld [vmem:[#allocation8 + $0xef0] sm:$0xff]
    %v808 = vld [vmem:[#allocation8 + $0xef8] sm:$0xff]
    %v809 = vld [vmem:[#allocation8 + $0xf00] sm:$0xff]
    %v810 = vld [vmem:[#allocation8 + $0xf08] sm:$0xff]
    %v811 = vld [vmem:[#allocation8 + $0xf10] sm:$0xff]
    %v812 = vld [vmem:[#allocation8 + $0xf18] sm:$0xff]
    %v813 = vld [vmem:[#allocation8 + $0xf20] sm:$0xff]
    %v814 = vld [vmem:[#allocation8 + $0xf28] sm:$0xff]
    %v815 = vld [vmem:[#allocation8 + $0xf30] sm:$0xff]
    %v816 = vld [vmem:[#allocation8 + $0xf38] sm:$0xff]
    %v817 = vld [vmem:[#allocation8 + $0xf40] sm:$0xff]
    %v818 = vld [vmem:[#allocation8 + $0xf48] sm:$0xff]
    %v819 = vld [vmem:[#allocation8 + $0xf50] sm:$0xff]
    %v820 = vld [vmem:[#allocation8 + $0xf58] sm:$0xff]
    %v821 = vld [vmem:[#allocation8 + $0xf60] sm:$0xff]
    %v822 = vld [vmem:[#allocation8 + $0xf68] sm:$0xff]
    %v823 = vld [vmem:[#allocation8 + $0xf70] sm:$0xff]
    %v824 = vld [vmem:[#allocation8 + $0xf78] sm:$0xff]
    %v825 = vld [vmem:[#allocation8 + $0xf80] sm:$0xff]
    %v826 = vld [vmem:[#allocation8 + $0xf88] sm:$0xff]
    %v827 = vld [vmem:[#allocation8 + $0xf90] sm:$0xff]
    %v828 = vld [vmem:[#allocation8 + $0xf98] sm:$0xff]
    %v829 = vld [vmem:[#allocation8 + $0xfa0] sm:$0xff]
    %v830 = vld [vmem:[#allocation8 + $0xfa8] sm:$0xff]
    %v831 = vld [vmem:[#allocation8 + $0xfb0] sm:$0xff]
    %v832 = vld [vmem:[#allocation8 + $0xfb8] sm:$0xff]
    %v833 = vld [vmem:[#allocation8 + $0xfc0] sm:$0xff]
    %v834 = vld [vmem:[#allocation8 + $0xfc8] sm:$0xff]
    %v835 = vld [vmem:[#allocation8 + $0xfd0] sm:$0xff]
    %v836 = vld [vmem:[#allocation8 + $0xfd8] sm:$0xff]
    %v837 = vld [vmem:[#allocation8 + $0xfe0] sm:$0xff]
    %v838 = vld [vmem:[#allocation8 + $0xfe8] sm:$0xff]
    %v839 = vld [vmem:[#allocation8 + $0xff0] sm:$0xff]
    %v840 = vld [vmem:[#allocation8 + $0xff8] sm:$0xff]
    %v841 = vld [vmem:[#allocation10] sm:$0xff]
    %v843 = vperm.slane %v841, 0
    %v844 = vperm.slane %v841, 1
    %v845 = vperm.slane %v841, 2
    %v846 = vperm.slane %v841, 3
    %v847 = vperm.slane %v841, 4
    %v848 = vperm.slane %v841, 5
    %v849 = vperm.slane %v841, 6
    %v850 = vperm.slane %v841, 7
    %v1371 = vunpack.c.l.b16 %v329
    %v1372 = vunpack.c.h.b16 %v329
    %v1373 = vunpack.c.l.b16 %v330
    %v1374 = vunpack.c.h.b16 %v330
    %v1375 = vunpack.c.l.b16 %v331
    %v1376 = vunpack.c.h.b16 %v331
    %v1377 = vunpack.c.l.b16 %v332
    %v1378 = vunpack.c.h.b16 %v332
    %v1379 = vunpack.c.l.b16 %v333
    %v1380 = vunpack.c.h.b16 %v333
    %v1381 = vunpack.c.l.b16 %v334
    %v1382 = vunpack.c.h.b16 %v334
    %v1383 = vunpack.c.l.b16 %v335
    %v1384 = vunpack.c.h.b16 %v335
    %v1385 = vunpack.c.l.b16 %v336
    %v1386 = vunpack.c.h.b16 %v336
    %v1387 = vunpack.c.l.b16 %v337
    %v1388 = vunpack.c.h.b16 %v337
    %v1389 = vunpack.c.l.b16 %v338
    %v1390 = vunpack.c.h.b16 %v338
    %v1391 = vunpack.c.l.b16 %v339
    %v1392 = vunpack.c.h.b16 %v339
    %v1393 = vunpack.c.l.b16 %v340
    %v1394 = vunpack.c.h.b16 %v340
    %v1395 = vunpack.c.l.b16 %v341
    %v1396 = vunpack.c.h.b16 %v341
    %v1397 = vunpack.c.l.b16 %v342
    %v1398 = vunpack.c.h.b16 %v342
    %v1399 = vunpack.c.l.b16 %v343
    %v1400 = vunpack.c.h.b16 %v343
    %v1401 = vunpack.c.l.b16 %v344
    %v1402 = vunpack.c.h.b16 %v344
    %v1403 = vunpack.c.l.b16 %v345
    %v1404 = vunpack.c.h.b16 %v345
    %v1405 = vunpack.c.l.b16 %v346
    %v1406 = vunpack.c.h.b16 %v346
    %v1407 = vunpack.c.l.b16 %v347
    %v1408 = vunpack.c.h.b16 %v347
    %v1409 = vunpack.c.l.b16 %v348
    %v1410 = vunpack.c.h.b16 %v348
    %v1411 = vunpack.c.l.b16 %v349
    %v1412 = vunpack.c.h.b16 %v349
    %v1413 = vunpack.c.l.b16 %v350
    %v1414 = vunpack.c.h.b16 %v350
    %v1415 = vunpack.c.l.b16 %v351
    %v1416 = vunpack.c.h.b16 %v351
    %v1417 = vunpack.c.l.b16 %v352
    %v1418 = vunpack.c.h.b16 %v352
    %v1419 = vunpack.c.l.b16 %v353
    %v1420 = vunpack.c.h.b16 %v353
    %v1421 = vunpack.c.l.b16 %v354
    %v1422 = vunpack.c.h.b16 %v354
    %v1423 = vunpack.c.l.b16 %v355
    %v1424 = vunpack.c.h.b16 %v355
    %v1425 = vunpack.c.l.b16 %v356
    %v1426 = vunpack.c.h.b16 %v356
    %v1427 = vunpack.c.l.b16 %v357
    %v1428 = vunpack.c.h.b16 %v357
    %v1429 = vunpack.c.l.b16 %v358
    %v1430 = vunpack.c.h.b16 %v358
    %v1431 = vunpack.c.l.b16 %v359
    %v1432 = vunpack.c.h.b16 %v359
    %v1433 = vunpack.c.l.b16 %v360
    %v1434 = vunpack.c.h.b16 %v360
    %v1435 = vunpack.c.l.b16 %v361
    %v1436 = vunpack.c.h.b16 %v361
    %v1437 = vunpack.c.l.b16 %v362
    %v1438 = vunpack.c.h.b16 %v362
    %v1439 = vunpack.c.l.b16 %v363
    %v1440 = vunpack.c.h.b16 %v363
    %v1441 = vunpack.c.l.b16 %v364
    %v1442 = vunpack.c.h.b16 %v364
    %v1443 = vunpack.c.l.b16 %v365
    %v1444 = vunpack.c.h.b16 %v365
    %v1445 = vunpack.c.l.b16 %v366
    %v1446 = vunpack.c.h.b16 %v366
    %v1447 = vunpack.c.l.b16 %v367
    %v1448 = vunpack.c.h.b16 %v367
    %v1449 = vunpack.c.l.b16 %v368
    %v1450 = vunpack.c.h.b16 %v368
    %v1451 = vunpack.c.l.b16 %v369
    %v1452 = vunpack.c.h.b16 %v369
    %v1453 = vunpack.c.l.b16 %v370
    %v1454 = vunpack.c.h.b16 %v370
    %v1455 = vunpack.c.l.b16 %v371
    %v1456 = vunpack.c.h.b16 %v371
    %v1457 = vunpack.c.l.b16 %v372
    %v1458 = vunpack.c.h.b16 %v372
    %v1459 = vunpack.c.l.b16 %v373
    %v1460 = vunpack.c.h.b16 %v373
    %v1461 = vunpack.c.l.b16 %v374
    %v1462 = vunpack.c.h.b16 %v374
    %v1463 = vunpack.c.l.b16 %v375
    %v1464 = vunpack.c.h.b16 %v375
    %v1465 = vunpack.c.l.b16 %v376
    %v1466 = vunpack.c.h.b16 %v376
    %v1467 = vunpack.c.l.b16 %v377
    %v1468 = vunpack.c.h.b16 %v377
    %v1469 = vunpack.c.l.b16 %v378
    %v1470 = vunpack.c.h.b16 %v378
    %v1471 = vunpack.c.l.b16 %v379
    %v1472 = vunpack.c.h.b16 %v379
    %v1473 = vunpack.c.l.b16 %v380
    %v1474 = vunpack.c.h.b16 %v380
    %v1475 = vunpack.c.l.b16 %v381
    %v1476 = vunpack.c.h.b16 %v381
    %v1477 = vunpack.c.l.b16 %v382
    %v1478 = vunpack.c.h.b16 %v382
    %v1479 = vunpack.c.l.b16 %v383
    %v1480 = vunpack.c.h.b16 %v383
    %v1481 = vunpack.c.l.b16 %v384
    %v1482 = vunpack.c.h.b16 %v384
    %v1483 = vunpack.c.l.b16 %v385
    %v1484 = vunpack.c.h.b16 %v385
    %v1485 = vunpack.c.l.b16 %v386
    %v1486 = vunpack.c.h.b16 %v386
    %v1487 = vunpack.c.l.b16 %v387
    %v1488 = vunpack.c.h.b16 %v387
    %v1489 = vunpack.c.l.b16 %v388
    %v1490 = vunpack.c.h.b16 %v388
    %v1491 = vunpack.c.l.b16 %v389
    %v1492 = vunpack.c.h.b16 %v389
    %v1493 = vunpack.c.l.b16 %v390
    %v1494 = vunpack.c.h.b16 %v390
    %v1495 = vunpack.c.l.b16 %v391
    %v1496 = vunpack.c.h.b16 %v391
    %v1497 = vunpack.c.l.b16 %v392
    %v1498 = vunpack.c.h.b16 %v392
    %v1499 = vunpack.c.l.b16 %v393
    %v1500 = vunpack.c.h.b16 %v393
    %v1501 = vunpack.c.l.b16 %v394
    %v1502 = vunpack.c.h.b16 %v394
    %v1503 = vunpack.c.l.b16 %v395
    %v1504 = vunpack.c.h.b16 %v395
    %v1505 = vunpack.c.l.b16 %v396
    %v1506 = vunpack.c.h.b16 %v396
    %v1507 = vunpack.c.l.b16 %v397
    %v1508 = vunpack.c.h.b16 %v397
    %v1509 = vunpack.c.l.b16 %v398
    %v1510 = vunpack.c.h.b16 %v398
    %v1511 = vunpack.c.l.b16 %v399
    %v1512 = vunpack.c.h.b16 %v399
    %v1513 = vunpack.c.l.b16 %v400
    %v1514 = vunpack.c.h.b16 %v400
    %v1515 = vunpack.c.l.b16 %v401
    %v1516 = vunpack.c.h.b16 %v401
    %v1517 = vunpack.c.l.b16 %v402
    %v1518 = vunpack.c.h.b16 %v402
    %v1519 = vunpack.c.l.b16 %v403
    %v1520 = vunpack.c.h.b16 %v403
    %v1521 = vunpack.c.l.b16 %v404
    %v1522 = vunpack.c.h.b16 %v404
    %v1523 = vunpack.c.l.b16 %v405
    %v1524 = vunpack.c.h.b16 %v405
    %v1525 = vunpack.c.l.b16 %v406
    %v1526 = vunpack.c.h.b16 %v406
    %v1527 = vunpack.c.l.b16 %v407
    %v1528 = vunpack.c.h.b16 %v407
    %v1529 = vunpack.c.l.b16 %v408
    %v1530 = vunpack.c.h.b16 %v408
    %v1531 = vunpack.c.l.b16 %v409
    %v1532 = vunpack.c.h.b16 %v409
    %v1533 = vunpack.c.l.b16 %v410
    %v1534 = vunpack.c.h.b16 %v410
    %v1535 = vunpack.c.l.b16 %v411
    %v1536 = vunpack.c.h.b16 %v411
    %v1537 = vunpack.c.l.b16 %v412
    %v1538 = vunpack.c.h.b16 %v412
    %v1539 = vunpack.c.l.b16 %v413
    %v1540 = vunpack.c.h.b16 %v413
    %v1541 = vunpack.c.l.b16 %v414
    %v1542 = vunpack.c.h.b16 %v414
    %v1543 = vunpack.c.l.b16 %v415
    %v1544 = vunpack.c.h.b16 %v415
    %v1545 = vunpack.c.l.b16 %v416
    %v1546 = vunpack.c.h.b16 %v416
    %v1547 = vunpack.c.l.b16 %v417
    %v1548 = vunpack.c.h.b16 %v417
    %v1549 = vunpack.c.l.b16 %v418
    %v1550 = vunpack.c.h.b16 %v418
    %v1551 = vunpack.c.l.b16 %v419
    %v1552 = vunpack.c.h.b16 %v419
    %v1553 = vunpack.c.l.b16 %v420
    %v1554 = vunpack.c.h.b16 %v420
    %v1555 = vunpack.c.l.b16 %v421
    %v1556 = vunpack.c.h.b16 %v421
    %v1557 = vunpack.c.l.b16 %v422
    %v1558 = vunpack.c.h.b16 %v422
    %v1559 = vunpack.c.l.b16 %v423
    %v1560 = vunpack.c.h.b16 %v423
    %v1561 = vunpack.c.l.b16 %v424
    %v1562 = vunpack.c.h.b16 %v424
    %v1563 = vunpack.c.l.b16 %v425
    %v1564 = vunpack.c.h.b16 %v425
    %v1565 = vunpack.c.l.b16 %v426
    %v1566 = vunpack.c.h.b16 %v426
    %v1567 = vunpack.c.l.b16 %v427
    %v1568 = vunpack.c.h.b16 %v427
    %v1569 = vunpack.c.l.b16 %v428
    %v1570 = vunpack.c.h.b16 %v428
    %v1571 = vunpack.c.l.b16 %v429
    %v1572 = vunpack.c.h.b16 %v429
    %v1573 = vunpack.c.l.b16 %v430
    %v1574 = vunpack.c.h.b16 %v430
    %v1575 = vunpack.c.l.b16 %v431
    %v1576 = vunpack.c.h.b16 %v431
    %v1577 = vunpack.c.l.b16 %v432
    %v1578 = vunpack.c.h.b16 %v432
    %v1579 = vunpack.c.l.b16 %v433
    %v1580 = vunpack.c.h.b16 %v433
    %v1581 = vunpack.c.l.b16 %v434
    %v1582 = vunpack.c.h.b16 %v434
    %v1583 = vunpack.c.l.b16 %v435
    %v1584 = vunpack.c.h.b16 %v435
    %v1585 = vunpack.c.l.b16 %v436
    %v1586 = vunpack.c.h.b16 %v436
    %v1587 = vunpack.c.l.b16 %v437
    %v1588 = vunpack.c.h.b16 %v437
    %v1589 = vunpack.c.l.b16 %v438
    %v1590 = vunpack.c.h.b16 %v438
    %v1591 = vunpack.c.l.b16 %v439
    %v1592 = vunpack.c.h.b16 %v439
    %v1593 = vunpack.c.l.b16 %v440
    %v1594 = vunpack.c.h.b16 %v440
    %v1595 = vunpack.c.l.b16 %v441
    %v1596 = vunpack.c.h.b16 %v441
    %v1597 = vunpack.c.l.b16 %v442
    %v1598 = vunpack.c.h.b16 %v442
    %v1599 = vunpack.c.l.b16 %v443
    %v1600 = vunpack.c.h.b16 %v443
    %v1601 = vunpack.c.l.b16 %v444
    %v1602 = vunpack.c.h.b16 %v444
    %v1603 = vunpack.c.l.b16 %v445
    %v1604 = vunpack.c.h.b16 %v445
    %v1605 = vunpack.c.l.b16 %v446
    %v1606 = vunpack.c.h.b16 %v446
    %v1607 = vunpack.c.l.b16 %v447
    %v1608 = vunpack.c.h.b16 %v447
    %v1609 = vunpack.c.l.b16 %v448
    %v1610 = vunpack.c.h.b16 %v448
    %v1611 = vunpack.c.l.b16 %v449
    %v1612 = vunpack.c.h.b16 %v449
    %v1613 = vunpack.c.l.b16 %v450
    %v1614 = vunpack.c.h.b16 %v450
    %v1615 = vunpack.c.l.b16 %v451
    %v1616 = vunpack.c.h.b16 %v451
    %v1617 = vunpack.c.l.b16 %v452
    %v1618 = vunpack.c.h.b16 %v452
    %v1619 = vunpack.c.l.b16 %v453
    %v1620 = vunpack.c.h.b16 %v453
    %v1621 = vunpack.c.l.b16 %v454
    %v1622 = vunpack.c.h.b16 %v454
    %v1623 = vunpack.c.l.b16 %v455
    %v1624 = vunpack.c.h.b16 %v455
    %v1625 = vunpack.c.l.b16 %v456
    %v1626 = vunpack.c.h.b16 %v456
    %v1627 = vunpack.c.l.b16 %v457
    %v1628 = vunpack.c.h.b16 %v457
    %v1629 = vunpack.c.l.b16 %v458
    %v1630 = vunpack.c.h.b16 %v458
    %v1631 = vunpack.c.l.b16 %v459
    %v1632 = vunpack.c.h.b16 %v459
    %v1633 = vunpack.c.l.b16 %v460
    %v1634 = vunpack.c.h.b16 %v460
    %v1635 = vunpack.c.l.b16 %v461
    %v1636 = vunpack.c.h.b16 %v461
    %v1637 = vunpack.c.l.b16 %v462
    %v1638 = vunpack.c.h.b16 %v462
    %v1639 = vunpack.c.l.b16 %v463
    %v1640 = vunpack.c.h.b16 %v463
    %v1641 = vunpack.c.l.b16 %v464
    %v1642 = vunpack.c.h.b16 %v464
    %v1643 = vunpack.c.l.b16 %v465
    %v1644 = vunpack.c.h.b16 %v465
    %v1645 = vunpack.c.l.b16 %v466
    %v1646 = vunpack.c.h.b16 %v466
    %v1647 = vunpack.c.l.b16 %v467
    %v1648 = vunpack.c.h.b16 %v467
    %v1649 = vunpack.c.l.b16 %v468
    %v1650 = vunpack.c.h.b16 %v468
    %v1651 = vunpack.c.l.b16 %v469
    %v1652 = vunpack.c.h.b16 %v469
    %v1653 = vunpack.c.l.b16 %v470
    %v1654 = vunpack.c.h.b16 %v470
    %v1655 = vunpack.c.l.b16 %v471
    %v1656 = vunpack.c.h.b16 %v471
    %v1657 = vunpack.c.l.b16 %v472
    %v1658 = vunpack.c.h.b16 %v472
    %v1659 = vunpack.c.l.b16 %v473
    %v1660 = vunpack.c.h.b16 %v473
    %v1661 = vunpack.c.l.b16 %v474
    %v1662 = vunpack.c.h.b16 %v474
    %v1663 = vunpack.c.l.b16 %v475
    %v1664 = vunpack.c.h.b16 %v475
    %v1665 = vunpack.c.l.b16 %v476
    %v1666 = vunpack.c.h.b16 %v476
    %v1667 = vunpack.c.l.b16 %v477
    %v1668 = vunpack.c.h.b16 %v477
    %v1669 = vunpack.c.l.b16 %v478
    %v1670 = vunpack.c.h.b16 %v478
    %v1671 = vunpack.c.l.b16 %v479
    %v1672 = vunpack.c.h.b16 %v479
    %v1673 = vunpack.c.l.b16 %v480
    %v1674 = vunpack.c.h.b16 %v480
    %v1675 = vunpack.c.l.b16 %v481
    %v1676 = vunpack.c.h.b16 %v481
    %v1677 = vunpack.c.l.b16 %v482
    %v1678 = vunpack.c.h.b16 %v482
    %v1679 = vunpack.c.l.b16 %v483
    %v1680 = vunpack.c.h.b16 %v483
    %v1681 = vunpack.c.l.b16 %v484
    %v1682 = vunpack.c.h.b16 %v484
    %v1683 = vunpack.c.l.b16 %v485
    %v1684 = vunpack.c.h.b16 %v485
    %v1685 = vunpack.c.l.b16 %v486
    %v1686 = vunpack.c.h.b16 %v486
    %v1687 = vunpack.c.l.b16 %v487
    %v1688 = vunpack.c.h.b16 %v487
    %v1689 = vunpack.c.l.b16 %v488
    %v1690 = vunpack.c.h.b16 %v488
    %v1691 = vunpack.c.l.b16 %v489
    %v1692 = vunpack.c.h.b16 %v489
    %v1693 = vunpack.c.l.b16 %v490
    %v1694 = vunpack.c.h.b16 %v490
    %v1695 = vunpack.c.l.b16 %v491
    %v1696 = vunpack.c.h.b16 %v491
    %v1697 = vunpack.c.l.b16 %v492
    %v1698 = vunpack.c.h.b16 %v492
    %v1699 = vunpack.c.l.b16 %v493
    %v1700 = vunpack.c.h.b16 %v493
    %v1701 = vunpack.c.l.b16 %v494
    %v1702 = vunpack.c.h.b16 %v494
    %v1703 = vunpack.c.l.b16 %v495
    %v1704 = vunpack.c.h.b16 %v495
    %v1705 = vunpack.c.l.b16 %v496
    %v1706 = vunpack.c.h.b16 %v496
    %v1707 = vunpack.c.l.b16 %v497
    %v1708 = vunpack.c.h.b16 %v497
    %v1709 = vunpack.c.l.b16 %v498
    %v1710 = vunpack.c.h.b16 %v498
    %v1711 = vunpack.c.l.b16 %v499
    %v1712 = vunpack.c.h.b16 %v499
    %v1713 = vunpack.c.l.b16 %v500
    %v1714 = vunpack.c.h.b16 %v500
    %v1715 = vunpack.c.l.b16 %v501
    %v1716 = vunpack.c.h.b16 %v501
    %v1717 = vunpack.c.l.b16 %v502
    %v1718 = vunpack.c.h.b16 %v502
    %v1719 = vunpack.c.l.b16 %v503
    %v1720 = vunpack.c.h.b16 %v503
    %v1721 = vunpack.c.l.b16 %v504
    %v1722 = vunpack.c.h.b16 %v504
    %v1723 = vunpack.c.l.b16 %v505
    %v1724 = vunpack.c.h.b16 %v505
    %v1725 = vunpack.c.l.b16 %v506
    %v1726 = vunpack.c.h.b16 %v506
    %v1727 = vunpack.c.l.b16 %v507
    %v1728 = vunpack.c.h.b16 %v507
    %v1729 = vunpack.c.l.b16 %v508
    %v1730 = vunpack.c.h.b16 %v508
    %v1731 = vunpack.c.l.b16 %v509
    %v1732 = vunpack.c.h.b16 %v509
    %v1733 = vunpack.c.l.b16 %v510
    %v1734 = vunpack.c.h.b16 %v510
    %v1735 = vunpack.c.l.b16 %v511
    %v1736 = vunpack.c.h.b16 %v511
    %v1737 = vunpack.c.l.b16 %v512
    %v1738 = vunpack.c.h.b16 %v512
    %v1739 = vunpack.c.l.b16 %v513
    %v1740 = vunpack.c.h.b16 %v513
    %v1741 = vunpack.c.l.b16 %v514
    %v1742 = vunpack.c.h.b16 %v514
    %v1743 = vunpack.c.l.b16 %v515
    %v1744 = vunpack.c.h.b16 %v515
    %v1745 = vunpack.c.l.b16 %v516
    %v1746 = vunpack.c.h.b16 %v516
    %v1747 = vunpack.c.l.b16 %v517
    %v1748 = vunpack.c.h.b16 %v517
    %v1749 = vunpack.c.l.b16 %v518
    %v1750 = vunpack.c.h.b16 %v518
    %v1751 = vunpack.c.l.b16 %v519
    %v1752 = vunpack.c.h.b16 %v519
    %v1753 = vunpack.c.l.b16 %v520
    %v1754 = vunpack.c.h.b16 %v520
    %v1755 = vunpack.c.l.b16 %v521
    %v1756 = vunpack.c.h.b16 %v521
    %v1757 = vunpack.c.l.b16 %v522
    %v1758 = vunpack.c.h.b16 %v522
    %v1759 = vunpack.c.l.b16 %v523
    %v1760 = vunpack.c.h.b16 %v523
    %v1761 = vunpack.c.l.b16 %v524
    %v1762 = vunpack.c.h.b16 %v524
    %v1763 = vunpack.c.l.b16 %v525
    %v1764 = vunpack.c.h.b16 %v525
    %v1765 = vunpack.c.l.b16 %v526
    %v1766 = vunpack.c.h.b16 %v526
    %v1767 = vunpack.c.l.b16 %v527
    %v1768 = vunpack.c.h.b16 %v527
    %v1769 = vunpack.c.l.b16 %v528
    %v1770 = vunpack.c.h.b16 %v528
    %v1771 = vunpack.c.l.b16 %v529
    %v1772 = vunpack.c.h.b16 %v529
    %v1773 = vunpack.c.l.b16 %v530
    %v1774 = vunpack.c.h.b16 %v530
    %v1775 = vunpack.c.l.b16 %v531
    %v1776 = vunpack.c.h.b16 %v531
    %v1777 = vunpack.c.l.b16 %v532
    %v1778 = vunpack.c.h.b16 %v532
    %v1779 = vunpack.c.l.b16 %v533
    %v1780 = vunpack.c.h.b16 %v533
    %v1781 = vunpack.c.l.b16 %v534
    %v1782 = vunpack.c.h.b16 %v534
    %v1783 = vunpack.c.l.b16 %v535
    %v1784 = vunpack.c.h.b16 %v535
    %v1785 = vunpack.c.l.b16 %v536
    %v1786 = vunpack.c.h.b16 %v536
    %v1787 = vunpack.c.l.b16 %v537
    %v1788 = vunpack.c.h.b16 %v537
    %v1789 = vunpack.c.l.b16 %v538
    %v1790 = vunpack.c.h.b16 %v538
    %v1791 = vunpack.c.l.b16 %v539
    %v1792 = vunpack.c.h.b16 %v539
    %v1793 = vunpack.c.l.b16 %v540
    %v1794 = vunpack.c.h.b16 %v540
    %v1795 = vunpack.c.l.b16 %v541
    %v1796 = vunpack.c.h.b16 %v541
    %v1797 = vunpack.c.l.b16 %v542
    %v1798 = vunpack.c.h.b16 %v542
    %v1799 = vunpack.c.l.b16 %v543
    %v1800 = vunpack.c.h.b16 %v543
    %v1801 = vunpack.c.l.b16 %v544
    %v1802 = vunpack.c.h.b16 %v544
    %v1803 = vunpack.c.l.b16 %v545
    %v1804 = vunpack.c.h.b16 %v545
    %v1805 = vunpack.c.l.b16 %v546
    %v1806 = vunpack.c.h.b16 %v546
    %v1807 = vunpack.c.l.b16 %v547
    %v1808 = vunpack.c.h.b16 %v547
    %v1809 = vunpack.c.l.b16 %v548
    %v1810 = vunpack.c.h.b16 %v548
    %v1811 = vunpack.c.l.b16 %v549
    %v1812 = vunpack.c.h.b16 %v549
    %v1813 = vunpack.c.l.b16 %v550
    %v1814 = vunpack.c.h.b16 %v550
    %v1815 = vunpack.c.l.b16 %v551
    %v1816 = vunpack.c.h.b16 %v551
    %v1817 = vunpack.c.l.b16 %v552
    %v1818 = vunpack.c.h.b16 %v552
    %v1819 = vunpack.c.l.b16 %v553
    %v1820 = vunpack.c.h.b16 %v553
    %v1821 = vunpack.c.l.b16 %v554
    %v1822 = vunpack.c.h.b16 %v554
    %v1823 = vunpack.c.l.b16 %v555
    %v1824 = vunpack.c.h.b16 %v555
    %v1825 = vunpack.c.l.b16 %v556
    %v1826 = vunpack.c.h.b16 %v556
    %v1827 = vunpack.c.l.b16 %v557
    %v1828 = vunpack.c.h.b16 %v557
    %v1829 = vunpack.c.l.b16 %v558
    %v1830 = vunpack.c.h.b16 %v558
    %v1831 = vunpack.c.l.b16 %v559
    %v1832 = vunpack.c.h.b16 %v559
    %v1833 = vunpack.c.l.b16 %v560
    %v1834 = vunpack.c.h.b16 %v560
    %v1835 = vunpack.c.l.b16 %v561
    %v1836 = vunpack.c.h.b16 %v561
    %v1837 = vunpack.c.l.b16 %v562
    %v1838 = vunpack.c.h.b16 %v562
    %v1839 = vunpack.c.l.b16 %v563
    %v1840 = vunpack.c.h.b16 %v563
    %v1841 = vunpack.c.l.b16 %v564
    %v1842 = vunpack.c.h.b16 %v564
    %v1843 = vunpack.c.l.b16 %v565
    %v1844 = vunpack.c.h.b16 %v565
    %v1845 = vunpack.c.l.b16 %v566
    %v1846 = vunpack.c.h.b16 %v566
    %v1847 = vunpack.c.l.b16 %v567
    %v1848 = vunpack.c.h.b16 %v567
    %v1849 = vunpack.c.l.b16 %v568
    %v1850 = vunpack.c.h.b16 %v568
    %v1851 = vunpack.c.l.b16 %v569
    %v1852 = vunpack.c.h.b16 %v569
    %v1853 = vunpack.c.l.b16 %v570
    %v1854 = vunpack.c.h.b16 %v570
    %v1855 = vunpack.c.l.b16 %v571
    %v1856 = vunpack.c.h.b16 %v571
    %v1857 = vunpack.c.l.b16 %v572
    %v1858 = vunpack.c.h.b16 %v572
    %v1859 = vunpack.c.l.b16 %v573
    %v1860 = vunpack.c.h.b16 %v573
    %v1861 = vunpack.c.l.b16 %v574
    %v1862 = vunpack.c.h.b16 %v574
    %v1863 = vunpack.c.l.b16 %v575
    %v1864 = vunpack.c.h.b16 %v575
    %v1865 = vunpack.c.l.b16 %v576
    %v1866 = vunpack.c.h.b16 %v576
    %v1867 = vunpack.c.l.b16 %v577
    %v1868 = vunpack.c.h.b16 %v577
    %v1869 = vunpack.c.l.b16 %v578
    %v1870 = vunpack.c.h.b16 %v578
    %v1871 = vunpack.c.l.b16 %v579
    %v1872 = vunpack.c.h.b16 %v579
    %v1873 = vunpack.c.l.b16 %v580
    %v1874 = vunpack.c.h.b16 %v580
    %v1875 = vunpack.c.l.b16 %v581
    %v1876 = vunpack.c.h.b16 %v581
    %v1877 = vunpack.c.l.b16 %v582
    %v1878 = vunpack.c.h.b16 %v582
    %v1879 = vunpack.c.l.b16 %v583
    %v1880 = vunpack.c.h.b16 %v583
    %v1881 = vunpack.c.l.b16 %v584
    %v1882 = vunpack.c.h.b16 %v584
    %v1883 = vunpack.c.l.b16 %v585
    %v1884 = vunpack.c.h.b16 %v585
    %v1885 = vunpack.c.l.b16 %v586
    %v1886 = vunpack.c.h.b16 %v586
    %v1887 = vunpack.c.l.b16 %v587
    %v1888 = vunpack.c.h.b16 %v587
    %v1889 = vunpack.c.l.b16 %v588
    %v1890 = vunpack.c.h.b16 %v588
    %v1891 = vunpack.c.l.b16 %v589
    %v1892 = vunpack.c.h.b16 %v589
    %v1893 = vunpack.c.l.b16 %v590
    %v1894 = vunpack.c.h.b16 %v590
    %v1895 = vunpack.c.l.b16 %v591
    %v1896 = vunpack.c.h.b16 %v591
    %v1897 = vunpack.c.l.b16 %v592
    %v1898 = vunpack.c.h.b16 %v592
    %v1899 = vunpack.c.l.b16 %v593
    %v1900 = vunpack.c.h.b16 %v593
    %v1901 = vunpack.c.l.b16 %v594
    %v1902 = vunpack.c.h.b16 %v594
    %v1903 = vunpack.c.l.b16 %v595
    %v1904 = vunpack.c.h.b16 %v595
    %v1905 = vunpack.c.l.b16 %v596
    %v1906 = vunpack.c.h.b16 %v596
    %v1907 = vunpack.c.l.b16 %v597
    %v1908 = vunpack.c.h.b16 %v597
    %v1909 = vunpack.c.l.b16 %v598
    %v1910 = vunpack.c.h.b16 %v598
    %v1911 = vunpack.c.l.b16 %v599
    %v1912 = vunpack.c.h.b16 %v599
    %v1913 = vunpack.c.l.b16 %v600
    %v1914 = vunpack.c.h.b16 %v600
    %v1915 = vunpack.c.l.b16 %v601
    %v1916 = vunpack.c.h.b16 %v601
    %v1917 = vunpack.c.l.b16 %v602
    %v1918 = vunpack.c.h.b16 %v602
    %v1919 = vunpack.c.l.b16 %v603
    %v1920 = vunpack.c.h.b16 %v603
    %v1921 = vunpack.c.l.b16 %v604
    %v1922 = vunpack.c.h.b16 %v604
    %v1923 = vunpack.c.l.b16 %v605
    %v1924 = vunpack.c.h.b16 %v605
    %v1925 = vunpack.c.l.b16 %v606
    %v1926 = vunpack.c.h.b16 %v606
    %v1927 = vunpack.c.l.b16 %v607
    %v1928 = vunpack.c.h.b16 %v607
    %v1929 = vunpack.c.l.b16 %v608
    %v1930 = vunpack.c.h.b16 %v608
    %v1931 = vunpack.c.l.b16 %v609
    %v1932 = vunpack.c.h.b16 %v609
    %v1933 = vunpack.c.l.b16 %v610
    %v1934 = vunpack.c.h.b16 %v610
    %v1935 = vunpack.c.l.b16 %v611
    %v1936 = vunpack.c.h.b16 %v611
    %v1937 = vunpack.c.l.b16 %v612
    %v1938 = vunpack.c.h.b16 %v612
    %v1939 = vunpack.c.l.b16 %v613
    %v1940 = vunpack.c.h.b16 %v613
    %v1941 = vunpack.c.l.b16 %v614
    %v1942 = vunpack.c.h.b16 %v614
    %v1943 = vunpack.c.l.b16 %v615
    %v1944 = vunpack.c.h.b16 %v615
    %v1945 = vunpack.c.l.b16 %v616
    %v1946 = vunpack.c.h.b16 %v616
    %v1947 = vunpack.c.l.b16 %v617
    %v1948 = vunpack.c.h.b16 %v617
    %v1949 = vunpack.c.l.b16 %v618
    %v1950 = vunpack.c.h.b16 %v618
    %v1951 = vunpack.c.l.b16 %v619
    %v1952 = vunpack.c.h.b16 %v619
    %v1953 = vunpack.c.l.b16 %v620
    %v1954 = vunpack.c.h.b16 %v620
    %v1955 = vunpack.c.l.b16 %v621
    %v1956 = vunpack.c.h.b16 %v621
    %v1957 = vunpack.c.l.b16 %v622
    %v1958 = vunpack.c.h.b16 %v622
    %v1959 = vunpack.c.l.b16 %v623
    %v1960 = vunpack.c.h.b16 %v623
    %v1961 = vunpack.c.l.b16 %v624
    %v1962 = vunpack.c.h.b16 %v624
    %v1963 = vunpack.c.l.b16 %v625
    %v1964 = vunpack.c.h.b16 %v625
    %v1965 = vunpack.c.l.b16 %v626
    %v1966 = vunpack.c.h.b16 %v626
    %v1967 = vunpack.c.l.b16 %v627
    %v1968 = vunpack.c.h.b16 %v627
    %v1969 = vunpack.c.l.b16 %v628
    %v1970 = vunpack.c.h.b16 %v628
    %v1971 = vunpack.c.l.b16 %v629
    %v1972 = vunpack.c.h.b16 %v629
    %v1973 = vunpack.c.l.b16 %v630
    %v1974 = vunpack.c.h.b16 %v630
    %v1975 = vunpack.c.l.b16 %v631
    %v1976 = vunpack.c.h.b16 %v631
    %v1977 = vunpack.c.l.b16 %v632
    %v1978 = vunpack.c.h.b16 %v632
    %v1979 = vunpack.c.l.b16 %v633
    %v1980 = vunpack.c.h.b16 %v633
    %v1981 = vunpack.c.l.b16 %v634
    %v1982 = vunpack.c.h.b16 %v634
    %v1983 = vunpack.c.l.b16 %v635
    %v1984 = vunpack.c.h.b16 %v635
    %v1985 = vunpack.c.l.b16 %v636
    %v1986 = vunpack.c.h.b16 %v636
    %v1987 = vunpack.c.l.b16 %v637
    %v1988 = vunpack.c.h.b16 %v637
    %v1989 = vunpack.c.l.b16 %v638
    %v1990 = vunpack.c.h.b16 %v638
    %v1991 = vunpack.c.l.b16 %v639
    %v1992 = vunpack.c.h.b16 %v639
    %v1993 = vunpack.c.l.b16 %v640
    %v1994 = vunpack.c.h.b16 %v640
    %v1995 = vunpack.c.l.b16 %v641
    %v1996 = vunpack.c.h.b16 %v641
    %v1997 = vunpack.c.l.b16 %v642
    %v1998 = vunpack.c.h.b16 %v642
    %v1999 = vunpack.c.l.b16 %v643
    %v2000 = vunpack.c.h.b16 %v643
    %v2001 = vunpack.c.l.b16 %v644
    %v2002 = vunpack.c.h.b16 %v644
    %v2003 = vunpack.c.l.b16 %v645
    %v2004 = vunpack.c.h.b16 %v645
    %v2005 = vunpack.c.l.b16 %v646
    %v2006 = vunpack.c.h.b16 %v646
    %v2007 = vunpack.c.l.b16 %v647
    %v2008 = vunpack.c.h.b16 %v647
    %v2009 = vunpack.c.l.b16 %v648
    %v2010 = vunpack.c.h.b16 %v648
    %v2011 = vunpack.c.l.b16 %v649
    %v2012 = vunpack.c.h.b16 %v649
    %v2013 = vunpack.c.l.b16 %v650
    %v2014 = vunpack.c.h.b16 %v650
    %v2015 = vunpack.c.l.b16 %v651
    %v2016 = vunpack.c.h.b16 %v651
    %v2017 = vunpack.c.l.b16 %v652
    %v2018 = vunpack.c.h.b16 %v652
    %v2019 = vunpack.c.l.b16 %v653
    %v2020 = vunpack.c.h.b16 %v653
    %v2021 = vunpack.c.l.b16 %v654
    %v2022 = vunpack.c.h.b16 %v654
    %v2023 = vunpack.c.l.b16 %v655
    %v2024 = vunpack.c.h.b16 %v655
    %v2025 = vunpack.c.l.b16 %v656
    %v2026 = vunpack.c.h.b16 %v656
    %v2027 = vunpack.c.l.b16 %v657
    %v2028 = vunpack.c.h.b16 %v657
    %v2029 = vunpack.c.l.b16 %v658
    %v2030 = vunpack.c.h.b16 %v658
    %v2031 = vunpack.c.l.b16 %v659
    %v2032 = vunpack.c.h.b16 %v659
    %v2033 = vunpack.c.l.b16 %v660
    %v2034 = vunpack.c.h.b16 %v660
    %v2035 = vunpack.c.l.b16 %v661
    %v2036 = vunpack.c.h.b16 %v661
    %v2037 = vunpack.c.l.b16 %v662
    %v2038 = vunpack.c.h.b16 %v662
    %v2039 = vunpack.c.l.b16 %v663
    %v2040 = vunpack.c.h.b16 %v663
    %v2041 = vunpack.c.l.b16 %v664
    %v2042 = vunpack.c.h.b16 %v664
    %v2043 = vunpack.c.l.b16 %v665
    %v2044 = vunpack.c.h.b16 %v665
    %v2045 = vunpack.c.l.b16 %v666
    %v2046 = vunpack.c.h.b16 %v666
    %v2047 = vunpack.c.l.b16 %v667
    %v2048 = vunpack.c.h.b16 %v667
    %v2049 = vunpack.c.l.b16 %v668
    %v2050 = vunpack.c.h.b16 %v668
    %v2051 = vunpack.c.l.b16 %v669
    %v2052 = vunpack.c.h.b16 %v669
    %v2053 = vunpack.c.l.b16 %v670
    %v2054 = vunpack.c.h.b16 %v670
    %v2055 = vunpack.c.l.b16 %v671
    %v2056 = vunpack.c.h.b16 %v671
    %v2057 = vunpack.c.l.b16 %v672
    %v2058 = vunpack.c.h.b16 %v672
    %v2059 = vunpack.c.l.b16 %v673
    %v2060 = vunpack.c.h.b16 %v673
    %v2061 = vunpack.c.l.b16 %v674
    %v2062 = vunpack.c.h.b16 %v674
    %v2063 = vunpack.c.l.b16 %v675
    %v2064 = vunpack.c.h.b16 %v675
    %v2065 = vunpack.c.l.b16 %v676
    %v2066 = vunpack.c.h.b16 %v676
    %v2067 = vunpack.c.l.b16 %v677
    %v2068 = vunpack.c.h.b16 %v677
    %v2069 = vunpack.c.l.b16 %v678
    %v2070 = vunpack.c.h.b16 %v678
    %v2071 = vunpack.c.l.b16 %v679
    %v2072 = vunpack.c.h.b16 %v679
    %v2073 = vunpack.c.l.b16 %v680
    %v2074 = vunpack.c.h.b16 %v680
    %v2075 = vunpack.c.l.b16 %v681
    %v2076 = vunpack.c.h.b16 %v681
    %v2077 = vunpack.c.l.b16 %v682
    %v2078 = vunpack.c.h.b16 %v682
    %v2079 = vunpack.c.l.b16 %v683
    %v2080 = vunpack.c.h.b16 %v683
    %v2081 = vunpack.c.l.b16 %v684
    %v2082 = vunpack.c.h.b16 %v684
    %v2083 = vunpack.c.l.b16 %v685
    %v2084 = vunpack.c.h.b16 %v685
    %v2085 = vunpack.c.l.b16 %v686
    %v2086 = vunpack.c.h.b16 %v686
    %v2087 = vunpack.c.l.b16 %v687
    %v2088 = vunpack.c.h.b16 %v687
    %v2089 = vunpack.c.l.b16 %v688
    %v2090 = vunpack.c.h.b16 %v688
    %v2091 = vunpack.c.l.b16 %v689
    %v2092 = vunpack.c.h.b16 %v689
    %v2093 = vunpack.c.l.b16 %v690
    %v2094 = vunpack.c.h.b16 %v690
    %v2095 = vunpack.c.l.b16 %v691
    %v2096 = vunpack.c.h.b16 %v691
    %v2097 = vunpack.c.l.b16 %v692
    %v2098 = vunpack.c.h.b16 %v692
    %v2099 = vunpack.c.l.b16 %v693
    %v2100 = vunpack.c.h.b16 %v693
    %v2101 = vunpack.c.l.b16 %v694
    %v2102 = vunpack.c.h.b16 %v694
    %v2103 = vunpack.c.l.b16 %v695
    %v2104 = vunpack.c.h.b16 %v695
    %v2105 = vunpack.c.l.b16 %v696
    %v2106 = vunpack.c.h.b16 %v696
    %v2107 = vunpack.c.l.b16 %v697
    %v2108 = vunpack.c.h.b16 %v697
    %v2109 = vunpack.c.l.b16 %v698
    %v2110 = vunpack.c.h.b16 %v698
    %v2111 = vunpack.c.l.b16 %v699
    %v2112 = vunpack.c.h.b16 %v699
    %v2113 = vunpack.c.l.b16 %v700
    %v2114 = vunpack.c.h.b16 %v700
    %v2115 = vunpack.c.l.b16 %v701
    %v2116 = vunpack.c.h.b16 %v701
    %v2117 = vunpack.c.l.b16 %v702
    %v2118 = vunpack.c.h.b16 %v702
    %v2119 = vunpack.c.l.b16 %v703
    %v2120 = vunpack.c.h.b16 %v703
    %v2121 = vunpack.c.l.b16 %v704
    %v2122 = vunpack.c.h.b16 %v704
    %v2123 = vunpack.c.l.b16 %v705
    %v2124 = vunpack.c.h.b16 %v705
    %v2125 = vunpack.c.l.b16 %v706
    %v2126 = vunpack.c.h.b16 %v706
    %v2127 = vunpack.c.l.b16 %v707
    %v2128 = vunpack.c.h.b16 %v707
    %v2129 = vunpack.c.l.b16 %v708
    %v2130 = vunpack.c.h.b16 %v708
    %v2131 = vunpack.c.l.b16 %v709
    %v2132 = vunpack.c.h.b16 %v709
    %v2133 = vunpack.c.l.b16 %v710
    %v2134 = vunpack.c.h.b16 %v710
    %v2135 = vunpack.c.l.b16 %v711
    %v2136 = vunpack.c.h.b16 %v711
    %v2137 = vunpack.c.l.b16 %v712
    %v2138 = vunpack.c.h.b16 %v712
    %v2139 = vunpack.c.l.b16 %v713
    %v2140 = vunpack.c.h.b16 %v713
    %v2141 = vunpack.c.l.b16 %v714
    %v2142 = vunpack.c.h.b16 %v714
    %v2143 = vunpack.c.l.b16 %v715
    %v2144 = vunpack.c.h.b16 %v715
    %v2145 = vunpack.c.l.b16 %v716
    %v2146 = vunpack.c.h.b16 %v716
    %v2147 = vunpack.c.l.b16 %v717
    %v2148 = vunpack.c.h.b16 %v717
    %v2149 = vunpack.c.l.b16 %v718
    %v2150 = vunpack.c.h.b16 %v718
    %v2151 = vunpack.c.l.b16 %v719
    %v2152 = vunpack.c.h.b16 %v719
    %v2153 = vunpack.c.l.b16 %v720
    %v2154 = vunpack.c.h.b16 %v720
    %v2155 = vunpack.c.l.b16 %v721
    %v2156 = vunpack.c.h.b16 %v721
    %v2157 = vunpack.c.l.b16 %v722
    %v2158 = vunpack.c.h.b16 %v722
    %v2159 = vunpack.c.l.b16 %v723
    %v2160 = vunpack.c.h.b16 %v723
    %v2161 = vunpack.c.l.b16 %v724
    %v2162 = vunpack.c.h.b16 %v724
    %v2163 = vunpack.c.l.b16 %v725
    %v2164 = vunpack.c.h.b16 %v725
    %v2165 = vunpack.c.l.b16 %v726
    %v2166 = vunpack.c.h.b16 %v726
    %v2167 = vunpack.c.l.b16 %v727
    %v2168 = vunpack.c.h.b16 %v727
    %v2169 = vunpack.c.l.b16 %v728
    %v2170 = vunpack.c.h.b16 %v728
    %v2171 = vunpack.c.l.b16 %v729
    %v2172 = vunpack.c.h.b16 %v729
    %v2173 = vunpack.c.l.b16 %v730
    %v2174 = vunpack.c.h.b16 %v730
    %v2175 = vunpack.c.l.b16 %v731
    %v2176 = vunpack.c.h.b16 %v731
    %v2177 = vunpack.c.l.b16 %v732
    %v2178 = vunpack.c.h.b16 %v732
    %v2179 = vunpack.c.l.b16 %v733
    %v2180 = vunpack.c.h.b16 %v733
    %v2181 = vunpack.c.l.b16 %v734
    %v2182 = vunpack.c.h.b16 %v734
    %v2183 = vunpack.c.l.b16 %v735
    %v2184 = vunpack.c.h.b16 %v735
    %v2185 = vunpack.c.l.b16 %v736
    %v2186 = vunpack.c.h.b16 %v736
    %v2187 = vunpack.c.l.b16 %v737
    %v2188 = vunpack.c.h.b16 %v737
    %v2189 = vunpack.c.l.b16 %v738
    %v2190 = vunpack.c.h.b16 %v738
    %v2191 = vunpack.c.l.b16 %v739
    %v2192 = vunpack.c.h.b16 %v739
    %v2193 = vunpack.c.l.b16 %v740
    %v2194 = vunpack.c.h.b16 %v740
    %v2195 = vunpack.c.l.b16 %v741
    %v2196 = vunpack.c.h.b16 %v741
    %v2197 = vunpack.c.l.b16 %v742
    %v2198 = vunpack.c.h.b16 %v742
    %v2199 = vunpack.c.l.b16 %v743
    %v2200 = vunpack.c.h.b16 %v743
    %v2201 = vunpack.c.l.b16 %v744
    %v2202 = vunpack.c.h.b16 %v744
    %v2203 = vunpack.c.l.b16 %v745
    %v2204 = vunpack.c.h.b16 %v745
    %v2205 = vunpack.c.l.b16 %v746
    %v2206 = vunpack.c.h.b16 %v746
    %v2207 = vunpack.c.l.b16 %v747
    %v2208 = vunpack.c.h.b16 %v747
    %v2209 = vunpack.c.l.b16 %v748
    %v2210 = vunpack.c.h.b16 %v748
    %v2211 = vunpack.c.l.b16 %v749
    %v2212 = vunpack.c.h.b16 %v749
    %v2213 = vunpack.c.l.b16 %v750
    %v2214 = vunpack.c.h.b16 %v750
    %v2215 = vunpack.c.l.b16 %v751
    %v2216 = vunpack.c.h.b16 %v751
    %v2217 = vunpack.c.l.b16 %v752
    %v2218 = vunpack.c.h.b16 %v752
    %v2219 = vunpack.c.l.b16 %v753
    %v2220 = vunpack.c.h.b16 %v753
    %v2221 = vunpack.c.l.b16 %v754
    %v2222 = vunpack.c.h.b16 %v754
    %v2223 = vunpack.c.l.b16 %v755
    %v2224 = vunpack.c.h.b16 %v755
    %v2225 = vunpack.c.l.b16 %v756
    %v2226 = vunpack.c.h.b16 %v756
    %v2227 = vunpack.c.l.b16 %v757
    %v2228 = vunpack.c.h.b16 %v757
    %v2229 = vunpack.c.l.b16 %v758
    %v2230 = vunpack.c.h.b16 %v758
    %v2231 = vunpack.c.l.b16 %v759
    %v2232 = vunpack.c.h.b16 %v759
    %v2233 = vunpack.c.l.b16 %v760
    %v2234 = vunpack.c.h.b16 %v760
    %v2235 = vunpack.c.l.b16 %v761
    %v2236 = vunpack.c.h.b16 %v761
    %v2237 = vunpack.c.l.b16 %v762
    %v2238 = vunpack.c.h.b16 %v762
    %v2239 = vunpack.c.l.b16 %v763
    %v2240 = vunpack.c.h.b16 %v763
    %v2241 = vunpack.c.l.b16 %v764
    %v2242 = vunpack.c.h.b16 %v764
    %v2243 = vunpack.c.l.b16 %v765
    %v2244 = vunpack.c.h.b16 %v765
    %v2245 = vunpack.c.l.b16 %v766
    %v2246 = vunpack.c.h.b16 %v766
    %v2247 = vunpack.c.l.b16 %v767
    %v2248 = vunpack.c.h.b16 %v767
    %v2249 = vunpack.c.l.b16 %v768
    %v2250 = vunpack.c.h.b16 %v768
    %v2251 = vunpack.c.l.b16 %v769
    %v2252 = vunpack.c.h.b16 %v769
    %v2253 = vunpack.c.l.b16 %v770
    %v2254 = vunpack.c.h.b16 %v770
    %v2255 = vunpack.c.l.b16 %v771
    %v2256 = vunpack.c.h.b16 %v771
    %v2257 = vunpack.c.l.b16 %v772
    %v2258 = vunpack.c.h.b16 %v772
    %v2259 = vunpack.c.l.b16 %v773
    %v2260 = vunpack.c.h.b16 %v773
    %v2261 = vunpack.c.l.b16 %v774
    %v2262 = vunpack.c.h.b16 %v774
    %v2263 = vunpack.c.l.b16 %v775
    %v2264 = vunpack.c.h.b16 %v775
    %v2265 = vunpack.c.l.b16 %v776
    %v2266 = vunpack.c.h.b16 %v776
    %v2267 = vunpack.c.l.b16 %v777
    %v2268 = vunpack.c.h.b16 %v777
    %v2269 = vunpack.c.l.b16 %v778
    %v2270 = vunpack.c.h.b16 %v778
    %v2271 = vunpack.c.l.b16 %v779
    %v2272 = vunpack.c.h.b16 %v779
    %v2273 = vunpack.c.l.b16 %v780
    %v2274 = vunpack.c.h.b16 %v780
    %v2275 = vunpack.c.l.b16 %v781
    %v2276 = vunpack.c.h.b16 %v781
    %v2277 = vunpack.c.l.b16 %v782
    %v2278 = vunpack.c.h.b16 %v782
    %v2279 = vunpack.c.l.b16 %v783
    %v2280 = vunpack.c.h.b16 %v783
    %v2281 = vunpack.c.l.b16 %v784
    %v2282 = vunpack.c.h.b16 %v784
    %v2283 = vunpack.c.l.b16 %v785
    %v2284 = vunpack.c.h.b16 %v785
    %v2285 = vunpack.c.l.b16 %v786
    %v2286 = vunpack.c.h.b16 %v786
    %v2287 = vunpack.c.l.b16 %v787
    %v2288 = vunpack.c.h.b16 %v787
    %v2289 = vunpack.c.l.b16 %v788
    %v2290 = vunpack.c.h.b16 %v788
    %v2291 = vunpack.c.l.b16 %v789
    %v2292 = vunpack.c.h.b16 %v789
    %v2293 = vunpack.c.l.b16 %v790
    %v2294 = vunpack.c.h.b16 %v790
    %v2295 = vunpack.c.l.b16 %v791
    %v2296 = vunpack.c.h.b16 %v791
    %v2297 = vunpack.c.l.b16 %v792
    %v2298 = vunpack.c.h.b16 %v792
    %v2299 = vunpack.c.l.b16 %v793
    %v2300 = vunpack.c.h.b16 %v793
    %v2301 = vunpack.c.l.b16 %v794
    %v2302 = vunpack.c.h.b16 %v794
    %v2303 = vunpack.c.l.b16 %v795
    %v2304 = vunpack.c.h.b16 %v795
    %v2305 = vunpack.c.l.b16 %v796
    %v2306 = vunpack.c.h.b16 %v796
    %v2307 = vunpack.c.l.b16 %v797
    %v2308 = vunpack.c.h.b16 %v797
    %v2309 = vunpack.c.l.b16 %v798
    %v2310 = vunpack.c.h.b16 %v798
    %v2311 = vunpack.c.l.b16 %v799
    %v2312 = vunpack.c.h.b16 %v799
    %v2313 = vunpack.c.l.b16 %v800
    %v2314 = vunpack.c.h.b16 %v800
    %v2315 = vunpack.c.l.b16 %v801
    %v2316 = vunpack.c.h.b16 %v801
    %v2317 = vunpack.c.l.b16 %v802
    %v2318 = vunpack.c.h.b16 %v802
    %v2319 = vunpack.c.l.b16 %v803
    %v2320 = vunpack.c.h.b16 %v803
    %v2321 = vunpack.c.l.b16 %v804
    %v2322 = vunpack.c.h.b16 %v804
    %v2323 = vunpack.c.l.b16 %v805
    %v2324 = vunpack.c.h.b16 %v805
    %v2325 = vunpack.c.l.b16 %v806
    %v2326 = vunpack.c.h.b16 %v806
    %v2327 = vunpack.c.l.b16 %v807
    %v2328 = vunpack.c.h.b16 %v807
    %v2329 = vunpack.c.l.b16 %v808
    %v2330 = vunpack.c.h.b16 %v808
    %v2331 = vunpack.c.l.b16 %v809
    %v2332 = vunpack.c.h.b16 %v809
    %v2333 = vunpack.c.l.b16 %v810
    %v2334 = vunpack.c.h.b16 %v810
    %v2335 = vunpack.c.l.b16 %v811
    %v2336 = vunpack.c.h.b16 %v811
    %v2337 = vunpack.c.l.b16 %v812
    %v2338 = vunpack.c.h.b16 %v812
    %v2339 = vunpack.c.l.b16 %v813
    %v2340 = vunpack.c.h.b16 %v813
    %v2341 = vunpack.c.l.b16 %v814
    %v2342 = vunpack.c.h.b16 %v814
    %v2343 = vunpack.c.l.b16 %v815
    %v2344 = vunpack.c.h.b16 %v815
    %v2345 = vunpack.c.l.b16 %v816
    %v2346 = vunpack.c.h.b16 %v816
    %v2347 = vunpack.c.l.b16 %v817
    %v2348 = vunpack.c.h.b16 %v817
    %v2349 = vunpack.c.l.b16 %v818
    %v2350 = vunpack.c.h.b16 %v818
    %v2351 = vunpack.c.l.b16 %v819
    %v2352 = vunpack.c.h.b16 %v819
    %v2353 = vunpack.c.l.b16 %v820
    %v2354 = vunpack.c.h.b16 %v820
    %v2355 = vunpack.c.l.b16 %v821
    %v2356 = vunpack.c.h.b16 %v821
    %v2357 = vunpack.c.l.b16 %v822
    %v2358 = vunpack.c.h.b16 %v822
    %v2359 = vunpack.c.l.b16 %v823
    %v2360 = vunpack.c.h.b16 %v823
    %v2361 = vunpack.c.l.b16 %v824
    %v2362 = vunpack.c.h.b16 %v824
    %v2363 = vunpack.c.l.b16 %v825
    %v2364 = vunpack.c.h.b16 %v825
    %v2365 = vunpack.c.l.b16 %v826
    %v2366 = vunpack.c.h.b16 %v826
    %v2367 = vunpack.c.l.b16 %v827
    %v2368 = vunpack.c.h.b16 %v827
    %v2369 = vunpack.c.l.b16 %v828
    %v2370 = vunpack.c.h.b16 %v828
    %v2371 = vunpack.c.l.b16 %v829
    %v2372 = vunpack.c.h.b16 %v829
    %v2373 = vunpack.c.l.b16 %v830
    %v2374 = vunpack.c.h.b16 %v830
    %v2375 = vunpack.c.l.b16 %v831
    %v2376 = vunpack.c.h.b16 %v831
    %v2377 = vunpack.c.l.b16 %v832
    %v2378 = vunpack.c.h.b16 %v832
    %v2379 = vunpack.c.l.b16 %v833
    %v2380 = vunpack.c.h.b16 %v833
    %v2381 = vunpack.c.l.b16 %v834
    %v2382 = vunpack.c.h.b16 %v834
    %v2383 = vunpack.c.l.b16 %v835
    %v2384 = vunpack.c.h.b16 %v835
    %v2385 = vunpack.c.l.b16 %v836
    %v2386 = vunpack.c.h.b16 %v836
    %v2387 = vunpack.c.l.b16 %v837
    %v2388 = vunpack.c.h.b16 %v837
    %v2389 = vunpack.c.l.b16 %v838
    %v2390 = vunpack.c.h.b16 %v838
    %v2391 = vunpack.c.l.b16 %v839
    %v2392 = vunpack.c.h.b16 %v839
    %v2393 = vunpack.c.l.b16 %v840
    %v2394 = vunpack.c.h.b16 %v840
    %v2395 = vpack.c.b16 %v1379, %v1371
    %v2396 = vpack.c.b16 %v1380, %v1372
    %v2397 = vpack.c.b16 %v1381, %v1373
    %v2398 = vpack.c.b16 %v1382, %v1374
    %v2399 = vpack.c.b16 %v1383, %v1375
    %v2400 = vpack.c.b16 %v1384, %v1376
    %v2401 = vpack.c.b16 %v1385, %v1377
    %v2402 = vpack.c.b16 %v1386, %v1378
    %v2403 = vpack.c.b16 %v1395, %v1387
    %v2404 = vpack.c.b16 %v1396, %v1388
    %v2405 = vpack.c.b16 %v1397, %v1389
    %v2406 = vpack.c.b16 %v1398, %v1390
    %v2407 = vpack.c.b16 %v1399, %v1391
    %v2408 = vpack.c.b16 %v1400, %v1392
    %v2409 = vpack.c.b16 %v1401, %v1393
    %v2410 = vpack.c.b16 %v1402, %v1394
    %v2411 = vpack.c.b16 %v1411, %v1403
    %v2412 = vpack.c.b16 %v1412, %v1404
    %v2413 = vpack.c.b16 %v1413, %v1405
    %v2414 = vpack.c.b16 %v1414, %v1406
    %v2415 = vpack.c.b16 %v1415, %v1407
    %v2416 = vpack.c.b16 %v1416, %v1408
    %v2417 = vpack.c.b16 %v1417, %v1409
    %v2418 = vpack.c.b16 %v1418, %v1410
    %v2419 = vpack.c.b16 %v1427, %v1419
    %v2420 = vpack.c.b16 %v1428, %v1420
    %v2421 = vpack.c.b16 %v1429, %v1421
    %v2422 = vpack.c.b16 %v1430, %v1422
    %v2423 = vpack.c.b16 %v1431, %v1423
    %v2424 = vpack.c.b16 %v1432, %v1424
    %v2425 = vpack.c.b16 %v1433, %v1425
    %v2426 = vpack.c.b16 %v1434, %v1426
    %v2427 = vpack.c.b16 %v1443, %v1435
    %v2428 = vpack.c.b16 %v1444, %v1436
    %v2429 = vpack.c.b16 %v1445, %v1437
    %v2430 = vpack.c.b16 %v1446, %v1438
    %v2431 = vpack.c.b16 %v1447, %v1439
    %v2432 = vpack.c.b16 %v1448, %v1440
    %v2433 = vpack.c.b16 %v1449, %v1441
    %v2434 = vpack.c.b16 %v1450, %v1442
    %v2435 = vpack.c.b16 %v1459, %v1451
    %v2436 = vpack.c.b16 %v1460, %v1452
    %v2437 = vpack.c.b16 %v1461, %v1453
    %v2438 = vpack.c.b16 %v1462, %v1454
    %v2439 = vpack.c.b16 %v1463, %v1455
    %v2440 = vpack.c.b16 %v1464, %v1456
    %v2441 = vpack.c.b16 %v1465, %v1457
    %v2442 = vpack.c.b16 %v1466, %v1458
    %v2443 = vpack.c.b16 %v1475, %v1467
    %v2444 = vpack.c.b16 %v1476, %v1468
    %v2445 = vpack.c.b16 %v1477, %v1469
    %v2446 = vpack.c.b16 %v1478, %v1470
    %v2447 = vpack.c.b16 %v1479, %v1471
    %v2448 = vpack.c.b16 %v1480, %v1472
    %v2449 = vpack.c.b16 %v1481, %v1473
    %v2450 = vpack.c.b16 %v1482, %v1474
    %v2451 = vpack.c.b16 %v1491, %v1483
    %v2452 = vpack.c.b16 %v1492, %v1484
    %v2453 = vpack.c.b16 %v1493, %v1485
    %v2454 = vpack.c.b16 %v1494, %v1486
    %v2455 = vpack.c.b16 %v1495, %v1487
    %v2456 = vpack.c.b16 %v1496, %v1488
    %v2457 = vpack.c.b16 %v1497, %v1489
    %v2458 = vpack.c.b16 %v1498, %v1490
    %v2459 = vpack.c.b16 %v1507, %v1499
    %v2460 = vpack.c.b16 %v1508, %v1500
    %v2461 = vpack.c.b16 %v1509, %v1501
    %v2462 = vpack.c.b16 %v1510, %v1502
    %v2463 = vpack.c.b16 %v1511, %v1503
    %v2464 = vpack.c.b16 %v1512, %v1504
    %v2465 = vpack.c.b16 %v1513, %v1505
    %v2466 = vpack.c.b16 %v1514, %v1506
    %v2467 = vpack.c.b16 %v1523, %v1515
    %v2468 = vpack.c.b16 %v1524, %v1516
    %v2469 = vpack.c.b16 %v1525, %v1517
    %v2470 = vpack.c.b16 %v1526, %v1518
    %v2471 = vpack.c.b16 %v1527, %v1519
    %v2472 = vpack.c.b16 %v1528, %v1520
    %v2473 = vpack.c.b16 %v1529, %v1521
    %v2474 = vpack.c.b16 %v1530, %v1522
    %v2475 = vpack.c.b16 %v1539, %v1531
    %v2476 = vpack.c.b16 %v1540, %v1532
    %v2477 = vpack.c.b16 %v1541, %v1533
    %v2478 = vpack.c.b16 %v1542, %v1534
    %v2479 = vpack.c.b16 %v1543, %v1535
    %v2480 = vpack.c.b16 %v1544, %v1536
    %v2481 = vpack.c.b16 %v1545, %v1537
    %v2482 = vpack.c.b16 %v1546, %v1538
    %v2483 = vpack.c.b16 %v1555, %v1547
    %v2484 = vpack.c.b16 %v1556, %v1548
    %v2485 = vpack.c.b16 %v1557, %v1549
    %v2486 = vpack.c.b16 %v1558, %v1550
    %v2487 = vpack.c.b16 %v1559, %v1551
    %v2488 = vpack.c.b16 %v1560, %v1552
    %v2489 = vpack.c.b16 %v1561, %v1553
    %v2490 = vpack.c.b16 %v1562, %v1554
    %v2491 = vpack.c.b16 %v1571, %v1563
    %v2492 = vpack.c.b16 %v1572, %v1564
    %v2493 = vpack.c.b16 %v1573, %v1565
    %v2494 = vpack.c.b16 %v1574, %v1566
    %v2495 = vpack.c.b16 %v1575, %v1567
    %v2496 = vpack.c.b16 %v1576, %v1568
    %v2497 = vpack.c.b16 %v1577, %v1569
    %v2498 = vpack.c.b16 %v1578, %v1570
    %v2499 = vpack.c.b16 %v1587, %v1579
    %v2500 = vpack.c.b16 %v1588, %v1580
    %v2501 = vpack.c.b16 %v1589, %v1581
    %v2502 = vpack.c.b16 %v1590, %v1582
    %v2503 = vpack.c.b16 %v1591, %v1583
    %v2504 = vpack.c.b16 %v1592, %v1584
    %v2505 = vpack.c.b16 %v1593, %v1585
    %v2506 = vpack.c.b16 %v1594, %v1586
    %v2507 = vpack.c.b16 %v1603, %v1595
    %v2508 = vpack.c.b16 %v1604, %v1596
    %v2509 = vpack.c.b16 %v1605, %v1597
    %v2510 = vpack.c.b16 %v1606, %v1598
    %v2511 = vpack.c.b16 %v1607, %v1599
    %v2512 = vpack.c.b16 %v1608, %v1600
    %v2513 = vpack.c.b16 %v1609, %v1601
    %v2514 = vpack.c.b16 %v1610, %v1602
    %v2515 = vpack.c.b16 %v1619, %v1611
    %v2516 = vpack.c.b16 %v1620, %v1612
    %v2517 = vpack.c.b16 %v1621, %v1613
    %v2518 = vpack.c.b16 %v1622, %v1614
    %v2519 = vpack.c.b16 %v1623, %v1615
    %v2520 = vpack.c.b16 %v1624, %v1616
    %v2521 = vpack.c.b16 %v1625, %v1617
    %v2522 = vpack.c.b16 %v1626, %v1618
    %v2523 = vpack.c.b16 %v1635, %v1627
    %v2524 = vpack.c.b16 %v1636, %v1628
    %v2525 = vpack.c.b16 %v1637, %v1629
    %v2526 = vpack.c.b16 %v1638, %v1630
    %v2527 = vpack.c.b16 %v1639, %v1631
    %v2528 = vpack.c.b16 %v1640, %v1632
    %v2529 = vpack.c.b16 %v1641, %v1633
    %v2530 = vpack.c.b16 %v1642, %v1634
    %v2531 = vpack.c.b16 %v1651, %v1643
    %v2532 = vpack.c.b16 %v1652, %v1644
    %v2533 = vpack.c.b16 %v1653, %v1645
    %v2534 = vpack.c.b16 %v1654, %v1646
    %v2535 = vpack.c.b16 %v1655, %v1647
    %v2536 = vpack.c.b16 %v1656, %v1648
    %v2537 = vpack.c.b16 %v1657, %v1649
    %v2538 = vpack.c.b16 %v1658, %v1650
    %v2539 = vpack.c.b16 %v1667, %v1659
    %v2540 = vpack.c.b16 %v1668, %v1660
    %v2541 = vpack.c.b16 %v1669, %v1661
    %v2542 = vpack.c.b16 %v1670, %v1662
    %v2543 = vpack.c.b16 %v1671, %v1663
    %v2544 = vpack.c.b16 %v1672, %v1664
    %v2545 = vpack.c.b16 %v1673, %v1665
    %v2546 = vpack.c.b16 %v1674, %v1666
    %v2547 = vpack.c.b16 %v1683, %v1675
    %v2548 = vpack.c.b16 %v1684, %v1676
    %v2549 = vpack.c.b16 %v1685, %v1677
    %v2550 = vpack.c.b16 %v1686, %v1678
    %v2551 = vpack.c.b16 %v1687, %v1679
    %v2552 = vpack.c.b16 %v1688, %v1680
    %v2553 = vpack.c.b16 %v1689, %v1681
    %v2554 = vpack.c.b16 %v1690, %v1682
    %v2555 = vpack.c.b16 %v1699, %v1691
    %v2556 = vpack.c.b16 %v1700, %v1692
    %v2557 = vpack.c.b16 %v1701, %v1693
    %v2558 = vpack.c.b16 %v1702, %v1694
    %v2559 = vpack.c.b16 %v1703, %v1695
    %v2560 = vpack.c.b16 %v1704, %v1696
    %v2561 = vpack.c.b16 %v1705, %v1697
    %v2562 = vpack.c.b16 %v1706, %v1698
    %v2563 = vpack.c.b16 %v1715, %v1707
    %v2564 = vpack.c.b16 %v1716, %v1708
    %v2565 = vpack.c.b16 %v1717, %v1709
    %v2566 = vpack.c.b16 %v1718, %v1710
    %v2567 = vpack.c.b16 %v1719, %v1711
    %v2568 = vpack.c.b16 %v1720, %v1712
    %v2569 = vpack.c.b16 %v1721, %v1713
    %v2570 = vpack.c.b16 %v1722, %v1714
    %v2571 = vpack.c.b16 %v1731, %v1723
    %v2572 = vpack.c.b16 %v1732, %v1724
    %v2573 = vpack.c.b16 %v1733, %v1725
    %v2574 = vpack.c.b16 %v1734, %v1726
    %v2575 = vpack.c.b16 %v1735, %v1727
    %v2576 = vpack.c.b16 %v1736, %v1728
    %v2577 = vpack.c.b16 %v1737, %v1729
    %v2578 = vpack.c.b16 %v1738, %v1730
    %v2579 = vpack.c.b16 %v1747, %v1739
    %v2580 = vpack.c.b16 %v1748, %v1740
    %v2581 = vpack.c.b16 %v1749, %v1741
    %v2582 = vpack.c.b16 %v1750, %v1742
    %v2583 = vpack.c.b16 %v1751, %v1743
    %v2584 = vpack.c.b16 %v1752, %v1744
    %v2585 = vpack.c.b16 %v1753, %v1745
    %v2586 = vpack.c.b16 %v1754, %v1746
    %v2587 = vpack.c.b16 %v1763, %v1755
    %v2588 = vpack.c.b16 %v1764, %v1756
    %v2589 = vpack.c.b16 %v1765, %v1757
    %v2590 = vpack.c.b16 %v1766, %v1758
    %v2591 = vpack.c.b16 %v1767, %v1759
    %v2592 = vpack.c.b16 %v1768, %v1760
    %v2593 = vpack.c.b16 %v1769, %v1761
    %v2594 = vpack.c.b16 %v1770, %v1762
    %v2595 = vpack.c.b16 %v1779, %v1771
    %v2596 = vpack.c.b16 %v1780, %v1772
    %v2597 = vpack.c.b16 %v1781, %v1773
    %v2598 = vpack.c.b16 %v1782, %v1774
    %v2599 = vpack.c.b16 %v1783, %v1775
    %v2600 = vpack.c.b16 %v1784, %v1776
    %v2601 = vpack.c.b16 %v1785, %v1777
    %v2602 = vpack.c.b16 %v1786, %v1778
    %v2603 = vpack.c.b16 %v1795, %v1787
    %v2604 = vpack.c.b16 %v1796, %v1788
    %v2605 = vpack.c.b16 %v1797, %v1789
    %v2606 = vpack.c.b16 %v1798, %v1790
    %v2607 = vpack.c.b16 %v1799, %v1791
    %v2608 = vpack.c.b16 %v1800, %v1792
    %v2609 = vpack.c.b16 %v1801, %v1793
    %v2610 = vpack.c.b16 %v1802, %v1794
    %v2611 = vpack.c.b16 %v1811, %v1803
    %v2612 = vpack.c.b16 %v1812, %v1804
    %v2613 = vpack.c.b16 %v1813, %v1805
    %v2614 = vpack.c.b16 %v1814, %v1806
    %v2615 = vpack.c.b16 %v1815, %v1807
    %v2616 = vpack.c.b16 %v1816, %v1808
    %v2617 = vpack.c.b16 %v1817, %v1809
    %v2618 = vpack.c.b16 %v1818, %v1810
    %v2619 = vpack.c.b16 %v1827, %v1819
    %v2620 = vpack.c.b16 %v1828, %v1820
    %v2621 = vpack.c.b16 %v1829, %v1821
    %v2622 = vpack.c.b16 %v1830, %v1822
    %v2623 = vpack.c.b16 %v1831, %v1823
    %v2624 = vpack.c.b16 %v1832, %v1824
    %v2625 = vpack.c.b16 %v1833, %v1825
    %v2626 = vpack.c.b16 %v1834, %v1826
    %v2627 = vpack.c.b16 %v1843, %v1835
    %v2628 = vpack.c.b16 %v1844, %v1836
    %v2629 = vpack.c.b16 %v1845, %v1837
    %v2630 = vpack.c.b16 %v1846, %v1838
    %v2631 = vpack.c.b16 %v1847, %v1839
    %v2632 = vpack.c.b16 %v1848, %v1840
    %v2633 = vpack.c.b16 %v1849, %v1841
    %v2634 = vpack.c.b16 %v1850, %v1842
    %v2635 = vpack.c.b16 %v1859, %v1851
    %v2636 = vpack.c.b16 %v1860, %v1852
    %v2637 = vpack.c.b16 %v1861, %v1853
    %v2638 = vpack.c.b16 %v1862, %v1854
    %v2639 = vpack.c.b16 %v1863, %v1855
    %v2640 = vpack.c.b16 %v1864, %v1856
    %v2641 = vpack.c.b16 %v1865, %v1857
    %v2642 = vpack.c.b16 %v1866, %v1858
    %v2643 = vpack.c.b16 %v1875, %v1867
    %v2644 = vpack.c.b16 %v1876, %v1868
    %v2645 = vpack.c.b16 %v1877, %v1869
    %v2646 = vpack.c.b16 %v1878, %v1870
    %v2647 = vpack.c.b16 %v1879, %v1871
    %v2648 = vpack.c.b16 %v1880, %v1872
    %v2649 = vpack.c.b16 %v1881, %v1873
    %v2650 = vpack.c.b16 %v1882, %v1874
    %v2651 = vpack.c.b16 %v1891, %v1883
    %v2652 = vpack.c.b16 %v1892, %v1884
    %v2653 = vpack.c.b16 %v1893, %v1885
    %v2654 = vpack.c.b16 %v1894, %v1886
    %v2655 = vpack.c.b16 %v1895, %v1887
    %v2656 = vpack.c.b16 %v1896, %v1888
    %v2657 = vpack.c.b16 %v1897, %v1889
    %v2658 = vpack.c.b16 %v1898, %v1890
    %v2659 = vpack.c.b16 %v1907, %v1899
    %v2660 = vpack.c.b16 %v1908, %v1900
    %v2661 = vpack.c.b16 %v1909, %v1901
    %v2662 = vpack.c.b16 %v1910, %v1902
    %v2663 = vpack.c.b16 %v1911, %v1903
    %v2664 = vpack.c.b16 %v1912, %v1904
    %v2665 = vpack.c.b16 %v1913, %v1905
    %v2666 = vpack.c.b16 %v1914, %v1906
    %v2667 = vpack.c.b16 %v1923, %v1915
    %v2668 = vpack.c.b16 %v1924, %v1916
    %v2669 = vpack.c.b16 %v1925, %v1917
    %v2670 = vpack.c.b16 %v1926, %v1918
    %v2671 = vpack.c.b16 %v1927, %v1919
    %v2672 = vpack.c.b16 %v1928, %v1920
    %v2673 = vpack.c.b16 %v1929, %v1921
    %v2674 = vpack.c.b16 %v1930, %v1922
    %v2675 = vpack.c.b16 %v1939, %v1931
    %v2676 = vpack.c.b16 %v1940, %v1932
    %v2677 = vpack.c.b16 %v1941, %v1933
    %v2678 = vpack.c.b16 %v1942, %v1934
    %v2679 = vpack.c.b16 %v1943, %v1935
    %v2680 = vpack.c.b16 %v1944, %v1936
    %v2681 = vpack.c.b16 %v1945, %v1937
    %v2682 = vpack.c.b16 %v1946, %v1938
    %v2683 = vpack.c.b16 %v1955, %v1947
    %v2684 = vpack.c.b16 %v1956, %v1948
    %v2685 = vpack.c.b16 %v1957, %v1949
    %v2686 = vpack.c.b16 %v1958, %v1950
    %v2687 = vpack.c.b16 %v1959, %v1951
    %v2688 = vpack.c.b16 %v1960, %v1952
    %v2689 = vpack.c.b16 %v1961, %v1953
    %v2690 = vpack.c.b16 %v1962, %v1954
    %v2691 = vpack.c.b16 %v1971, %v1963
    %v2692 = vpack.c.b16 %v1972, %v1964
    %v2693 = vpack.c.b16 %v1973, %v1965
    %v2694 = vpack.c.b16 %v1974, %v1966
    %v2695 = vpack.c.b16 %v1975, %v1967
    %v2696 = vpack.c.b16 %v1976, %v1968
    %v2697 = vpack.c.b16 %v1977, %v1969
    %v2698 = vpack.c.b16 %v1978, %v1970
    %v2699 = vpack.c.b16 %v1987, %v1979
    %v2700 = vpack.c.b16 %v1988, %v1980
    %v2701 = vpack.c.b16 %v1989, %v1981
    %v2702 = vpack.c.b16 %v1990, %v1982
    %v2703 = vpack.c.b16 %v1991, %v1983
    %v2704 = vpack.c.b16 %v1992, %v1984
    %v2705 = vpack.c.b16 %v1993, %v1985
    %v2706 = vpack.c.b16 %v1994, %v1986
    %v2707 = vpack.c.b16 %v2003, %v1995
    %v2708 = vpack.c.b16 %v2004, %v1996
    %v2709 = vpack.c.b16 %v2005, %v1997
    %v2710 = vpack.c.b16 %v2006, %v1998
    %v2711 = vpack.c.b16 %v2007, %v1999
    %v2712 = vpack.c.b16 %v2008, %v2000
    %v2713 = vpack.c.b16 %v2009, %v2001
    %v2714 = vpack.c.b16 %v2010, %v2002
    %v2715 = vpack.c.b16 %v2019, %v2011
    %v2716 = vpack.c.b16 %v2020, %v2012
    %v2717 = vpack.c.b16 %v2021, %v2013
    %v2718 = vpack.c.b16 %v2022, %v2014
    %v2719 = vpack.c.b16 %v2023, %v2015
    %v2720 = vpack.c.b16 %v2024, %v2016
    %v2721 = vpack.c.b16 %v2025, %v2017
    %v2722 = vpack.c.b16 %v2026, %v2018
    %v2723 = vpack.c.b16 %v2035, %v2027
    %v2724 = vpack.c.b16 %v2036, %v2028
    %v2725 = vpack.c.b16 %v2037, %v2029
    %v2726 = vpack.c.b16 %v2038, %v2030
    %v2727 = vpack.c.b16 %v2039, %v2031
    %v2728 = vpack.c.b16 %v2040, %v2032
    %v2729 = vpack.c.b16 %v2041, %v2033
    %v2730 = vpack.c.b16 %v2042, %v2034
    %v2731 = vpack.c.b16 %v2051, %v2043
    %v2732 = vpack.c.b16 %v2052, %v2044
    %v2733 = vpack.c.b16 %v2053, %v2045
    %v2734 = vpack.c.b16 %v2054, %v2046
    %v2735 = vpack.c.b16 %v2055, %v2047
    %v2736 = vpack.c.b16 %v2056, %v2048
    %v2737 = vpack.c.b16 %v2057, %v2049
    %v2738 = vpack.c.b16 %v2058, %v2050
    %v2739 = vpack.c.b16 %v2067, %v2059
    %v2740 = vpack.c.b16 %v2068, %v2060
    %v2741 = vpack.c.b16 %v2069, %v2061
    %v2742 = vpack.c.b16 %v2070, %v2062
    %v2743 = vpack.c.b16 %v2071, %v2063
    %v2744 = vpack.c.b16 %v2072, %v2064
    %v2745 = vpack.c.b16 %v2073, %v2065
    %v2746 = vpack.c.b16 %v2074, %v2066
    %v2747 = vpack.c.b16 %v2083, %v2075
    %v2748 = vpack.c.b16 %v2084, %v2076
    %v2749 = vpack.c.b16 %v2085, %v2077
    %v2750 = vpack.c.b16 %v2086, %v2078
    %v2751 = vpack.c.b16 %v2087, %v2079
    %v2752 = vpack.c.b16 %v2088, %v2080
    %v2753 = vpack.c.b16 %v2089, %v2081
    %v2754 = vpack.c.b16 %v2090, %v2082
    %v2755 = vpack.c.b16 %v2099, %v2091
    %v2756 = vpack.c.b16 %v2100, %v2092
    %v2757 = vpack.c.b16 %v2101, %v2093
    %v2758 = vpack.c.b16 %v2102, %v2094
    %v2759 = vpack.c.b16 %v2103, %v2095
    %v2760 = vpack.c.b16 %v2104, %v2096
    %v2761 = vpack.c.b16 %v2105, %v2097
    %v2762 = vpack.c.b16 %v2106, %v2098
    %v2763 = vpack.c.b16 %v2115, %v2107
    %v2764 = vpack.c.b16 %v2116, %v2108
    %v2765 = vpack.c.b16 %v2117, %v2109
    %v2766 = vpack.c.b16 %v2118, %v2110
    %v2767 = vpack.c.b16 %v2119, %v2111
    %v2768 = vpack.c.b16 %v2120, %v2112
    %v2769 = vpack.c.b16 %v2121, %v2113
    %v2770 = vpack.c.b16 %v2122, %v2114
    %v2771 = vpack.c.b16 %v2131, %v2123
    %v2772 = vpack.c.b16 %v2132, %v2124
    %v2773 = vpack.c.b16 %v2133, %v2125
    %v2774 = vpack.c.b16 %v2134, %v2126
    %v2775 = vpack.c.b16 %v2135, %v2127
    %v2776 = vpack.c.b16 %v2136, %v2128
    %v2777 = vpack.c.b16 %v2137, %v2129
    %v2778 = vpack.c.b16 %v2138, %v2130
    %v2779 = vpack.c.b16 %v2147, %v2139
    %v2780 = vpack.c.b16 %v2148, %v2140
    %v2781 = vpack.c.b16 %v2149, %v2141
    %v2782 = vpack.c.b16 %v2150, %v2142
    %v2783 = vpack.c.b16 %v2151, %v2143
    %v2784 = vpack.c.b16 %v2152, %v2144
    %v2785 = vpack.c.b16 %v2153, %v2145
    %v2786 = vpack.c.b16 %v2154, %v2146
    %v2787 = vpack.c.b16 %v2163, %v2155
    %v2788 = vpack.c.b16 %v2164, %v2156
    %v2789 = vpack.c.b16 %v2165, %v2157
    %v2790 = vpack.c.b16 %v2166, %v2158
    %v2791 = vpack.c.b16 %v2167, %v2159
    %v2792 = vpack.c.b16 %v2168, %v2160
    %v2793 = vpack.c.b16 %v2169, %v2161
    %v2794 = vpack.c.b16 %v2170, %v2162
    %v2795 = vpack.c.b16 %v2179, %v2171
    %v2796 = vpack.c.b16 %v2180, %v2172
    %v2797 = vpack.c.b16 %v2181, %v2173
    %v2798 = vpack.c.b16 %v2182, %v2174
    %v2799 = vpack.c.b16 %v2183, %v2175
    %v2800 = vpack.c.b16 %v2184, %v2176
    %v2801 = vpack.c.b16 %v2185, %v2177
    %v2802 = vpack.c.b16 %v2186, %v2178
    %v2803 = vpack.c.b16 %v2195, %v2187
    %v2804 = vpack.c.b16 %v2196, %v2188
    %v2805 = vpack.c.b16 %v2197, %v2189
    %v2806 = vpack.c.b16 %v2198, %v2190
    %v2807 = vpack.c.b16 %v2199, %v2191
    %v2808 = vpack.c.b16 %v2200, %v2192
    %v2809 = vpack.c.b16 %v2201, %v2193
    %v2810 = vpack.c.b16 %v2202, %v2194
    %v2811 = vpack.c.b16 %v2211, %v2203
    %v2812 = vpack.c.b16 %v2212, %v2204
    %v2813 = vpack.c.b16 %v2213, %v2205
    %v2814 = vpack.c.b16 %v2214, %v2206
    %v2815 = vpack.c.b16 %v2215, %v2207
    %v2816 = vpack.c.b16 %v2216, %v2208
    %v2817 = vpack.c.b16 %v2217, %v2209
    %v2818 = vpack.c.b16 %v2218, %v2210
    %v2819 = vpack.c.b16 %v2227, %v2219
    %v2820 = vpack.c.b16 %v2228, %v2220
    %v2821 = vpack.c.b16 %v2229, %v2221
    %v2822 = vpack.c.b16 %v2230, %v2222
    %v2823 = vpack.c.b16 %v2231, %v2223
    %v2824 = vpack.c.b16 %v2232, %v2224
    %v2825 = vpack.c.b16 %v2233, %v2225
    %v2826 = vpack.c.b16 %v2234, %v2226
    %v2827 = vpack.c.b16 %v2243, %v2235
    %v2828 = vpack.c.b16 %v2244, %v2236
    %v2829 = vpack.c.b16 %v2245, %v2237
    %v2830 = vpack.c.b16 %v2246, %v2238
    %v2831 = vpack.c.b16 %v2247, %v2239
    %v2832 = vpack.c.b16 %v2248, %v2240
    %v2833 = vpack.c.b16 %v2249, %v2241
    %v2834 = vpack.c.b16 %v2250, %v2242
    %v2835 = vpack.c.b16 %v2259, %v2251
    %v2836 = vpack.c.b16 %v2260, %v2252
    %v2837 = vpack.c.b16 %v2261, %v2253
    %v2838 = vpack.c.b16 %v2262, %v2254
    %v2839 = vpack.c.b16 %v2263, %v2255
    %v2840 = vpack.c.b16 %v2264, %v2256
    %v2841 = vpack.c.b16 %v2265, %v2257
    %v2842 = vpack.c.b16 %v2266, %v2258
    %v2843 = vpack.c.b16 %v2275, %v2267
    %v2844 = vpack.c.b16 %v2276, %v2268
    %v2845 = vpack.c.b16 %v2277, %v2269
    %v2846 = vpack.c.b16 %v2278, %v2270
    %v2847 = vpack.c.b16 %v2279, %v2271
    %v2848 = vpack.c.b16 %v2280, %v2272
    %v2849 = vpack.c.b16 %v2281, %v2273
    %v2850 = vpack.c.b16 %v2282, %v2274
    %v2851 = vpack.c.b16 %v2291, %v2283
    %v2852 = vpack.c.b16 %v2292, %v2284
    %v2853 = vpack.c.b16 %v2293, %v2285
    %v2854 = vpack.c.b16 %v2294, %v2286
    %v2855 = vpack.c.b16 %v2295, %v2287
    %v2856 = vpack.c.b16 %v2296, %v2288
    %v2857 = vpack.c.b16 %v2297, %v2289
    %v2858 = vpack.c.b16 %v2298, %v2290
    %v2859 = vpack.c.b16 %v2307, %v2299
    %v2860 = vpack.c.b16 %v2308, %v2300
    %v2861 = vpack.c.b16 %v2309, %v2301
    %v2862 = vpack.c.b16 %v2310, %v2302
    %v2863 = vpack.c.b16 %v2311, %v2303
    %v2864 = vpack.c.b16 %v2312, %v2304
    %v2865 = vpack.c.b16 %v2313, %v2305
    %v2866 = vpack.c.b16 %v2314, %v2306
    %v2867 = vpack.c.b16 %v2323, %v2315
    %v2868 = vpack.c.b16 %v2324, %v2316
    %v2869 = vpack.c.b16 %v2325, %v2317
    %v2870 = vpack.c.b16 %v2326, %v2318
    %v2871 = vpack.c.b16 %v2327, %v2319
    %v2872 = vpack.c.b16 %v2328, %v2320
    %v2873 = vpack.c.b16 %v2329, %v2321
    %v2874 = vpack.c.b16 %v2330, %v2322
    %v2875 = vpack.c.b16 %v2339, %v2331
    %v2876 = vpack.c.b16 %v2340, %v2332
    %v2877 = vpack.c.b16 %v2341, %v2333
    %v2878 = vpack.c.b16 %v2342, %v2334
    %v2879 = vpack.c.b16 %v2343, %v2335
    %v2880 = vpack.c.b16 %v2344, %v2336
    %v2881 = vpack.c.b16 %v2345, %v2337
    %v2882 = vpack.c.b16 %v2346, %v2338
    %v2883 = vpack.c.b16 %v2355, %v2347
    %v2884 = vpack.c.b16 %v2356, %v2348
    %v2885 = vpack.c.b16 %v2357, %v2349
    %v2886 = vpack.c.b16 %v2358, %v2350
    %v2887 = vpack.c.b16 %v2359, %v2351
    %v2888 = vpack.c.b16 %v2360, %v2352
    %v2889 = vpack.c.b16 %v2361, %v2353
    %v2890 = vpack.c.b16 %v2362, %v2354
    %v2891 = vpack.c.b16 %v2371, %v2363
    %v2892 = vpack.c.b16 %v2372, %v2364
    %v2893 = vpack.c.b16 %v2373, %v2365
    %v2894 = vpack.c.b16 %v2374, %v2366
    %v2895 = vpack.c.b16 %v2375, %v2367
    %v2896 = vpack.c.b16 %v2376, %v2368
    %v2897 = vpack.c.b16 %v2377, %v2369
    %v2898 = vpack.c.b16 %v2378, %v2370
    %v2899 = vpack.c.b16 %v2387, %v2379
    %v2900 = vpack.c.b16 %v2388, %v2380
    %v2901 = vpack.c.b16 %v2389, %v2381
    %v2902 = vpack.c.b16 %v2390, %v2382
    %v2903 = vpack.c.b16 %v2391, %v2383
    %v2904 = vpack.c.b16 %v2392, %v2384
    %v2905 = vpack.c.b16 %v2393, %v2385
    %v2906 = vpack.c.b16 %v2394, %v2386
    %3419 = vmatpush.bf16.msra.mxu0 %v2451
    %3420 = vmatpush.bf16.msra.mxu0 %v2443
    %3421 = vmatpush.bf16.msra.mxu0 %v2435
    %3422 = vmatpush.bf16.msra.mxu0 %v2427
    %3423 = vmatpush.bf16.msra.mxu0 %v2419
    %3424 = vmatpush.bf16.msra.mxu0 %v2411
    %3425 = vmatpush.bf16.msra.mxu0 %v2403
    %3426 = vmatpush.bf16.msra.mxu0 %v2395
    %3427 = vmatmul.bf16.gmra.mxu0 %v321
    %v3428 = vpop.f32.mrf.mxu0
    %v3429 = vadd.f32 %v843, %v3428
    %v3430 = vpop.f32.mrf.mxu0
    %v3431 = vadd.f32 %v843, %v3430
    %3432 = vdwg.mxu0
    %3433 = vmatpush.bf16.msra.mxu0 %v2515
    %3434 = vmatpush.bf16.msra.mxu0 %v2507
    %3435 = vmatpush.bf16.msra.mxu0 %v2499
    %3436 = vmatpush.bf16.msra.mxu0 %v2491
    %3437 = vmatpush.bf16.msra.mxu0 %v2483
    %3438 = vmatpush.bf16.msra.mxu0 %v2475
    %3439 = vmatpush.bf16.msra.mxu0 %v2467
    %3440 = vmatpush.bf16.msra.mxu0 %v2459
    %3441 = vmatmul.bf16.gmra.mxu0 %v322
    %v3442 = vpop.f32.mrf.mxu0
    %v3443 = vadd.f32 %v3429, %v3442
    %v3444 = vpop.f32.mrf.mxu0
    %v3445 = vadd.f32 %v3431, %v3444
    %3446 = vdwg.mxu0
    %3447 = vmatpush.bf16.msra.mxu0 %v2579
    %3448 = vmatpush.bf16.msra.mxu0 %v2571
    %3449 = vmatpush.bf16.msra.mxu0 %v2563
    %3450 = vmatpush.bf16.msra.mxu0 %v2555
    %3451 = vmatpush.bf16.msra.mxu0 %v2547
    %3452 = vmatpush.bf16.msra.mxu0 %v2539
    %3453 = vmatpush.bf16.msra.mxu0 %v2531
    %3454 = vmatpush.bf16.msra.mxu0 %v2523
    %3455 = vmatmul.bf16.gmra.mxu0 %v323
    %v3456 = vpop.f32.mrf.mxu0
    %v3457 = vadd.f32 %v3443, %v3456
    %v3458 = vpop.f32.mrf.mxu0
    %v3459 = vadd.f32 %v3445, %v3458
    %3460 = vdwg.mxu0
    %3461 = vmatpush.bf16.msra.mxu0 %v2643
    %3462 = vmatpush.bf16.msra.mxu0 %v2635
    %3463 = vmatpush.bf16.msra.mxu0 %v2627
    %3464 = vmatpush.bf16.msra.mxu0 %v2619
    %3465 = vmatpush.bf16.msra.mxu0 %v2611
    %3466 = vmatpush.bf16.msra.mxu0 %v2603
    %3467 = vmatpush.bf16.msra.mxu0 %v2595
    %3468 = vmatpush.bf16.msra.mxu0 %v2587
    %3469 = vmatmul.bf16.gmra.mxu0 %v324
    %v3470 = vpop.f32.mrf.mxu0
    %v3471 = vadd.f32 %v3457, %v3470
    %v3472 = vpop.f32.mrf.mxu0
    %v3473 = vadd.f32 %v3459, %v3472
    %3474 = vdwg.mxu0
    %3475 = vmatpush.bf16.msra.mxu0 %v2707
    %3476 = vmatpush.bf16.msra.mxu0 %v2699
    %3477 = vmatpush.bf16.msra.mxu0 %v2691
    %3478 = vmatpush.bf16.msra.mxu0 %v2683
    %3479 = vmatpush.bf16.msra.mxu0 %v2675
    %3480 = vmatpush.bf16.msra.mxu0 %v2667
    %3481 = vmatpush.bf16.msra.mxu0 %v2659
    %3482 = vmatpush.bf16.msra.mxu0 %v2651
    %3483 = vmatmul.bf16.gmra.mxu0 %v325
    %v3484 = vpop.f32.mrf.mxu0
    %v3485 = vadd.f32 %v3471, %v3484
    %v3486 = vpop.f32.mrf.mxu0
    %v3487 = vadd.f32 %v3473, %v3486
    %3488 = vdwg.mxu0
    %3489 = vmatpush.bf16.msra.mxu0 %v2771
    %3490 = vmatpush.bf16.msra.mxu0 %v2763
    %3491 = vmatpush.bf16.msra.mxu0 %v2755
    %3492 = vmatpush.bf16.msra.mxu0 %v2747
    %3493 = vmatpush.bf16.msra.mxu0 %v2739
    %3494 = vmatpush.bf16.msra.mxu0 %v2731
    %3495 = vmatpush.bf16.msra.mxu0 %v2723
    %3496 = vmatpush.bf16.msra.mxu0 %v2715
    %3497 = vmatmul.bf16.gmra.mxu0 %v326
    %v3498 = vpop.f32.mrf.mxu0
    %v3499 = vadd.f32 %v3485, %v3498
    %v3500 = vpop.f32.mrf.mxu0
    %v3501 = vadd.f32 %v3487, %v3500
    %3502 = vdwg.mxu0
    %3503 = vmatpush.bf16.msra.mxu0 %v2835
    %3504 = vmatpush.bf16.msra.mxu0 %v2827
    %3505 = vmatpush.bf16.msra.mxu0 %v2819
    %3506 = vmatpush.bf16.msra.mxu0 %v2811
    %3507 = vmatpush.bf16.msra.mxu0 %v2803
    %3508 = vmatpush.bf16.msra.mxu0 %v2795
    %3509 = vmatpush.bf16.msra.mxu0 %v2787
    %3510 = vmatpush.bf16.msra.mxu0 %v2779
    %3511 = vmatmul.bf16.gmra.mxu0 %v327
    %v3512 = vpop.f32.mrf.mxu0
    %v3513 = vadd.f32 %v3499, %v3512
    %v3514 = vpop.f32.mrf.mxu0
    %v3515 = vadd.f32 %v3501, %v3514
    %3516 = vdwg.mxu0
    %3517 = vmatpush.bf16.msra.mxu0 %v2899
    %3518 = vmatpush.bf16.msra.mxu0 %v2891
    %3519 = vmatpush.bf16.msra.mxu0 %v2883
    %3520 = vmatpush.bf16.msra.mxu0 %v2875
    %3521 = vmatpush.bf16.msra.mxu0 %v2867
    %3522 = vmatpush.bf16.msra.mxu0 %v2859
    %3523 = vmatpush.bf16.msra.mxu0 %v2851
    %3524 = vmatpush.bf16.msra.mxu0 %v2843
    %3525 = vmatmul.bf16.gmra.mxu0 %v328
    %v3526 = vpop.f32.mrf.mxu0
    %v3527 = vadd.f32 %v3513, %v3526
    %v3528 = vpop.f32.mrf.mxu0
    %v3529 = vadd.f32 %v3515, %v3528
    %3530 = vdwg.mxu0
    %3531 = vmatpush.bf16.msra.mxu0 %v2452
    %3532 = vmatpush.bf16.msra.mxu0 %v2444
    %3533 = vmatpush.bf16.msra.mxu0 %v2436
    %3534 = vmatpush.bf16.msra.mxu0 %v2428
    %3535 = vmatpush.bf16.msra.mxu0 %v2420
    %3536 = vmatpush.bf16.msra.mxu0 %v2412
    %3537 = vmatpush.bf16.msra.mxu0 %v2404
    %3538 = vmatpush.bf16.msra.mxu0 %v2396
    %3539 = vmatmul.bf16.gmra.mxu0 %v321
    %v3540 = vpop.f32.mrf.mxu0
    %v3541 = vadd.f32 %v844, %v3540
    %v3542 = vpop.f32.mrf.mxu0
    %v3543 = vadd.f32 %v844, %v3542
    %3544 = vdwg.mxu0
    %3545 = vmatpush.bf16.msra.mxu0 %v2516
    %3546 = vmatpush.bf16.msra.mxu0 %v2508
    %3547 = vmatpush.bf16.msra.mxu0 %v2500
    %3548 = vmatpush.bf16.msra.mxu0 %v2492
    %3549 = vmatpush.bf16.msra.mxu0 %v2484
    %3550 = vmatpush.bf16.msra.mxu0 %v2476
    %3551 = vmatpush.bf16.msra.mxu0 %v2468
    %3552 = vmatpush.bf16.msra.mxu0 %v2460
    %3553 = vmatmul.bf16.gmra.mxu0 %v322
    %v3554 = vpop.f32.mrf.mxu0
    %v3555 = vadd.f32 %v3541, %v3554
    %v3556 = vpop.f32.mrf.mxu0
    %v3557 = vadd.f32 %v3543, %v3556
    %3558 = vdwg.mxu0
    %3559 = vmatpush.bf16.msra.mxu0 %v2580
    %3560 = vmatpush.bf16.msra.mxu0 %v2572
    %3561 = vmatpush.bf16.msra.mxu0 %v2564
    %3562 = vmatpush.bf16.msra.mxu0 %v2556
    %3563 = vmatpush.bf16.msra.mxu0 %v2548
    %3564 = vmatpush.bf16.msra.mxu0 %v2540
    %3565 = vmatpush.bf16.msra.mxu0 %v2532
    %3566 = vmatpush.bf16.msra.mxu0 %v2524
    %3567 = vmatmul.bf16.gmra.mxu0 %v323
    %v3568 = vpop.f32.mrf.mxu0
    %v3569 = vadd.f32 %v3555, %v3568
    %v3570 = vpop.f32.mrf.mxu0
    %v3571 = vadd.f32 %v3557, %v3570
    %3572 = vdwg.mxu0
    %3573 = vmatpush.bf16.msra.mxu0 %v2644
    %3574 = vmatpush.bf16.msra.mxu0 %v2636
    %3575 = vmatpush.bf16.msra.mxu0 %v2628
    %3576 = vmatpush.bf16.msra.mxu0 %v2620
    %3577 = vmatpush.bf16.msra.mxu0 %v2612
    %3578 = vmatpush.bf16.msra.mxu0 %v2604
    %3579 = vmatpush.bf16.msra.mxu0 %v2596
    %3580 = vmatpush.bf16.msra.mxu0 %v2588
    %3581 = vmatmul.bf16.gmra.mxu0 %v324
    %v3582 = vpop.f32.mrf.mxu0
    %v3583 = vadd.f32 %v3569, %v3582
    %v3584 = vpop.f32.mrf.mxu0
    %v3585 = vadd.f32 %v3571, %v3584
    %3586 = vdwg.mxu0
    %3587 = vmatpush.bf16.msra.mxu0 %v2708
    %3588 = vmatpush.bf16.msra.mxu0 %v2700
    %3589 = vmatpush.bf16.msra.mxu0 %v2692
    %3590 = vmatpush.bf16.msra.mxu0 %v2684
    %3591 = vmatpush.bf16.msra.mxu0 %v2676
    %3592 = vmatpush.bf16.msra.mxu0 %v2668
    %3593 = vmatpush.bf16.msra.mxu0 %v2660
    %3594 = vmatpush.bf16.msra.mxu0 %v2652
    %3595 = vmatmul.bf16.gmra.mxu0 %v325
    %v3596 = vpop.f32.mrf.mxu0
    %v3597 = vadd.f32 %v3583, %v3596
    %v3598 = vpop.f32.mrf.mxu0
    %v3599 = vadd.f32 %v3585, %v3598
    %3600 = vdwg.mxu0
    %3601 = vmatpush.bf16.msra.mxu0 %v2772
    %3602 = vmatpush.bf16.msra.mxu0 %v2764
    %3603 = vmatpush.bf16.msra.mxu0 %v2756
    %3604 = vmatpush.bf16.msra.mxu0 %v2748
    %3605 = vmatpush.bf16.msra.mxu0 %v2740
    %3606 = vmatpush.bf16.msra.mxu0 %v2732
    %3607 = vmatpush.bf16.msra.mxu0 %v2724
    %3608 = vmatpush.bf16.msra.mxu0 %v2716
    %3609 = vmatmul.bf16.gmra.mxu0 %v326
    %v3610 = vpop.f32.mrf.mxu0
    %v3611 = vadd.f32 %v3597, %v3610
    %v3612 = vpop.f32.mrf.mxu0
    %v3613 = vadd.f32 %v3599, %v3612
    %3614 = vdwg.mxu0
    %3615 = vmatpush.bf16.msra.mxu0 %v2836
    %3616 = vmatpush.bf16.msra.mxu0 %v2828
    %3617 = vmatpush.bf16.msra.mxu0 %v2820
    %3618 = vmatpush.bf16.msra.mxu0 %v2812
    %3619 = vmatpush.bf16.msra.mxu0 %v2804
    %3620 = vmatpush.bf16.msra.mxu0 %v2796
    %3621 = vmatpush.bf16.msra.mxu0 %v2788
    %3622 = vmatpush.bf16.msra.mxu0 %v2780
    %3623 = vmatmul.bf16.gmra.mxu0 %v327
    %v3624 = vpop.f32.mrf.mxu0
    %v3625 = vadd.f32 %v3611, %v3624
    %v3626 = vpop.f32.mrf.mxu0
    %v3627 = vadd.f32 %v3613, %v3626
    %3628 = vdwg.mxu0
    %3629 = vmatpush.bf16.msra.mxu0 %v2900
    %3630 = vmatpush.bf16.msra.mxu0 %v2892
    %3631 = vmatpush.bf16.msra.mxu0 %v2884
    %3632 = vmatpush.bf16.msra.mxu0 %v2876
    %3633 = vmatpush.bf16.msra.mxu0 %v2868
    %3634 = vmatpush.bf16.msra.mxu0 %v2860
    %3635 = vmatpush.bf16.msra.mxu0 %v2852
    %3636 = vmatpush.bf16.msra.mxu0 %v2844
    %3637 = vmatmul.bf16.gmra.mxu0 %v328
    %v3638 = vpop.f32.mrf.mxu0
    %v3639 = vadd.f32 %v3625, %v3638
    %v3640 = vpop.f32.mrf.mxu0
    %v3641 = vadd.f32 %v3627, %v3640
    %3642 = vdwg.mxu0
    %3643 = vmatpush.bf16.msra.mxu0 %v2453
    %3644 = vmatpush.bf16.msra.mxu0 %v2445
    %3645 = vmatpush.bf16.msra.mxu0 %v2437
    %3646 = vmatpush.bf16.msra.mxu0 %v2429
    %3647 = vmatpush.bf16.msra.mxu0 %v2421
    %3648 = vmatpush.bf16.msra.mxu0 %v2413
    %3649 = vmatpush.bf16.msra.mxu0 %v2405
    %3650 = vmatpush.bf16.msra.mxu0 %v2397
    %3651 = vmatmul.bf16.gmra.mxu0 %v321
    %v3652 = vpop.f32.mrf.mxu0
    %v3653 = vadd.f32 %v845, %v3652
    %v3654 = vpop.f32.mrf.mxu0
    %v3655 = vadd.f32 %v845, %v3654
    %3656 = vdwg.mxu0
    %3657 = vmatpush.bf16.msra.mxu0 %v2517
    %3658 = vmatpush.bf16.msra.mxu0 %v2509
    %3659 = vmatpush.bf16.msra.mxu0 %v2501
    %3660 = vmatpush.bf16.msra.mxu0 %v2493
    %3661 = vmatpush.bf16.msra.mxu0 %v2485
    %3662 = vmatpush.bf16.msra.mxu0 %v2477
    %3663 = vmatpush.bf16.msra.mxu0 %v2469
    %3664 = vmatpush.bf16.msra.mxu0 %v2461
    %3665 = vmatmul.bf16.gmra.mxu0 %v322
    %v3666 = vpop.f32.mrf.mxu0
    %v3667 = vadd.f32 %v3653, %v3666
    %v3668 = vpop.f32.mrf.mxu0
    %v3669 = vadd.f32 %v3655, %v3668
    %3670 = vdwg.mxu0
    %3671 = vmatpush.bf16.msra.mxu0 %v2581
    %3672 = vmatpush.bf16.msra.mxu0 %v2573
    %3673 = vmatpush.bf16.msra.mxu0 %v2565
    %3674 = vmatpush.bf16.msra.mxu0 %v2557
    %3675 = vmatpush.bf16.msra.mxu0 %v2549
    %3676 = vmatpush.bf16.msra.mxu0 %v2541
    %3677 = vmatpush.bf16.msra.mxu0 %v2533
    %3678 = vmatpush.bf16.msra.mxu0 %v2525
    %3679 = vmatmul.bf16.gmra.mxu0 %v323
    %v3680 = vpop.f32.mrf.mxu0
    %v3681 = vadd.f32 %v3667, %v3680
    %v3682 = vpop.f32.mrf.mxu0
    %v3683 = vadd.f32 %v3669, %v3682
    %3684 = vdwg.mxu0
    %3685 = vmatpush.bf16.msra.mxu0 %v2645
    %3686 = vmatpush.bf16.msra.mxu0 %v2637
    %3687 = vmatpush.bf16.msra.mxu0 %v2629
    %3688 = vmatpush.bf16.msra.mxu0 %v2621
    %3689 = vmatpush.bf16.msra.mxu0 %v2613
    %3690 = vmatpush.bf16.msra.mxu0 %v2605
    %3691 = vmatpush.bf16.msra.mxu0 %v2597
    %3692 = vmatpush.bf16.msra.mxu0 %v2589
    %3693 = vmatmul.bf16.gmra.mxu0 %v324
    %v3694 = vpop.f32.mrf.mxu0
    %v3695 = vadd.f32 %v3681, %v3694
    %v3696 = vpop.f32.mrf.mxu0
    %v3697 = vadd.f32 %v3683, %v3696
    %3698 = vdwg.mxu0
    %3699 = vmatpush.bf16.msra.mxu0 %v2709
    %3700 = vmatpush.bf16.msra.mxu0 %v2701
    %3701 = vmatpush.bf16.msra.mxu0 %v2693
    %3702 = vmatpush.bf16.msra.mxu0 %v2685
    %3703 = vmatpush.bf16.msra.mxu0 %v2677
    %3704 = vmatpush.bf16.msra.mxu0 %v2669
    %3705 = vmatpush.bf16.msra.mxu0 %v2661
    %3706 = vmatpush.bf16.msra.mxu0 %v2653
    %3707 = vmatmul.bf16.gmra.mxu0 %v325
    %v3708 = vpop.f32.mrf.mxu0
    %v3709 = vadd.f32 %v3695, %v3708
    %v3710 = vpop.f32.mrf.mxu0
    %v3711 = vadd.f32 %v3697, %v3710
    %3712 = vdwg.mxu0
    %3713 = vmatpush.bf16.msra.mxu0 %v2773
    %3714 = vmatpush.bf16.msra.mxu0 %v2765
    %3715 = vmatpush.bf16.msra.mxu0 %v2757
    %3716 = vmatpush.bf16.msra.mxu0 %v2749
    %3717 = vmatpush.bf16.msra.mxu0 %v2741
    %3718 = vmatpush.bf16.msra.mxu0 %v2733
    %3719 = vmatpush.bf16.msra.mxu0 %v2725
    %3720 = vmatpush.bf16.msra.mxu0 %v2717
    %3721 = vmatmul.bf16.gmra.mxu0 %v326
    %v3722 = vpop.f32.mrf.mxu0
    %v3723 = vadd.f32 %v3709, %v3722
    %v3724 = vpop.f32.mrf.mxu0
    %v3725 = vadd.f32 %v3711, %v3724
    %3726 = vdwg.mxu0
    %3727 = vmatpush.bf16.msra.mxu0 %v2837
    %3728 = vmatpush.bf16.msra.mxu0 %v2829
    %3729 = vmatpush.bf16.msra.mxu0 %v2821
    %3730 = vmatpush.bf16.msra.mxu0 %v2813
    %3731 = vmatpush.bf16.msra.mxu0 %v2805
    %3732 = vmatpush.bf16.msra.mxu0 %v2797
    %3733 = vmatpush.bf16.msra.mxu0 %v2789
    %3734 = vmatpush.bf16.msra.mxu0 %v2781
    %3735 = vmatmul.bf16.gmra.mxu0 %v327
    %v3736 = vpop.f32.mrf.mxu0
    %v3737 = vadd.f32 %v3723, %v3736
    %v3738 = vpop.f32.mrf.mxu0
    %v3739 = vadd.f32 %v3725, %v3738
    %3740 = vdwg.mxu0
    %3741 = vmatpush.bf16.msra.mxu0 %v2901
    %3742 = vmatpush.bf16.msra.mxu0 %v2893
    %3743 = vmatpush.bf16.msra.mxu0 %v2885
    %3744 = vmatpush.bf16.msra.mxu0 %v2877
    %3745 = vmatpush.bf16.msra.mxu0 %v2869
    %3746 = vmatpush.bf16.msra.mxu0 %v2861
    %3747 = vmatpush.bf16.msra.mxu0 %v2853
    %3748 = vmatpush.bf16.msra.mxu0 %v2845
    %3749 = vmatmul.bf16.gmra.mxu0 %v328
    %v3750 = vpop.f32.mrf.mxu0
    %v3751 = vadd.f32 %v3737, %v3750
    %v3752 = vpop.f32.mrf.mxu0
    %v3753 = vadd.f32 %v3739, %v3752
    %3754 = vdwg.mxu0
    %3755 = vmatpush.bf16.msra.mxu0 %v2454
    %3756 = vmatpush.bf16.msra.mxu0 %v2446
    %3757 = vmatpush.bf16.msra.mxu0 %v2438
    %3758 = vmatpush.bf16.msra.mxu0 %v2430
    %3759 = vmatpush.bf16.msra.mxu0 %v2422
    %3760 = vmatpush.bf16.msra.mxu0 %v2414
    %3761 = vmatpush.bf16.msra.mxu0 %v2406
    %3762 = vmatpush.bf16.msra.mxu0 %v2398
    %3763 = vmatmul.bf16.gmra.mxu0 %v321
    %v3764 = vpop.f32.mrf.mxu0
    %v3765 = vadd.f32 %v846, %v3764
    %v3766 = vpop.f32.mrf.mxu0
    %v3767 = vadd.f32 %v846, %v3766
    %3768 = vdwg.mxu0
    %3769 = vmatpush.bf16.msra.mxu0 %v2518
    %3770 = vmatpush.bf16.msra.mxu0 %v2510
    %3771 = vmatpush.bf16.msra.mxu0 %v2502
    %3772 = vmatpush.bf16.msra.mxu0 %v2494
    %3773 = vmatpush.bf16.msra.mxu0 %v2486
    %3774 = vmatpush.bf16.msra.mxu0 %v2478
    %3775 = vmatpush.bf16.msra.mxu0 %v2470
    %3776 = vmatpush.bf16.msra.mxu0 %v2462
    %3777 = vmatmul.bf16.gmra.mxu0 %v322
    %v3778 = vpop.f32.mrf.mxu0
    %v3779 = vadd.f32 %v3765, %v3778
    %v3780 = vpop.f32.mrf.mxu0
    %v3781 = vadd.f32 %v3767, %v3780
    %3782 = vdwg.mxu0
    %3783 = vmatpush.bf16.msra.mxu0 %v2582
    %3784 = vmatpush.bf16.msra.mxu0 %v2574
    %3785 = vmatpush.bf16.msra.mxu0 %v2566
    %3786 = vmatpush.bf16.msra.mxu0 %v2558
    %3787 = vmatpush.bf16.msra.mxu0 %v2550
    %3788 = vmatpush.bf16.msra.mxu0 %v2542
    %3789 = vmatpush.bf16.msra.mxu0 %v2534
    %3790 = vmatpush.bf16.msra.mxu0 %v2526
    %3791 = vmatmul.bf16.gmra.mxu0 %v323
    %v3792 = vpop.f32.mrf.mxu0
    %v3793 = vadd.f32 %v3779, %v3792
    %v3794 = vpop.f32.mrf.mxu0
    %v3795 = vadd.f32 %v3781, %v3794
    %3796 = vdwg.mxu0
    %3797 = vmatpush.bf16.msra.mxu0 %v2646
    %3798 = vmatpush.bf16.msra.mxu0 %v2638
    %3799 = vmatpush.bf16.msra.mxu0 %v2630
    %3800 = vmatpush.bf16.msra.mxu0 %v2622
    %3801 = vmatpush.bf16.msra.mxu0 %v2614
    %3802 = vmatpush.bf16.msra.mxu0 %v2606
    %3803 = vmatpush.bf16.msra.mxu0 %v2598
    %3804 = vmatpush.bf16.msra.mxu0 %v2590
    %3805 = vmatmul.bf16.gmra.mxu0 %v324
    %v3806 = vpop.f32.mrf.mxu0
    %v3807 = vadd.f32 %v3793, %v3806
    %v3808 = vpop.f32.mrf.mxu0
    %v3809 = vadd.f32 %v3795, %v3808
    %3810 = vdwg.mxu0
    %3811 = vmatpush.bf16.msra.mxu0 %v2710
    %3812 = vmatpush.bf16.msra.mxu0 %v2702
    %3813 = vmatpush.bf16.msra.mxu0 %v2694
    %3814 = vmatpush.bf16.msra.mxu0 %v2686
    %3815 = vmatpush.bf16.msra.mxu0 %v2678
    %3816 = vmatpush.bf16.msra.mxu0 %v2670
    %3817 = vmatpush.bf16.msra.mxu0 %v2662
    %3818 = vmatpush.bf16.msra.mxu0 %v2654
    %3819 = vmatmul.bf16.gmra.mxu0 %v325
    %v3820 = vpop.f32.mrf.mxu0
    %v3821 = vadd.f32 %v3807, %v3820
    %v3822 = vpop.f32.mrf.mxu0
    %v3823 = vadd.f32 %v3809, %v3822
    %3824 = vdwg.mxu0
    %3825 = vmatpush.bf16.msra.mxu0 %v2774
    %3826 = vmatpush.bf16.msra.mxu0 %v2766
    %3827 = vmatpush.bf16.msra.mxu0 %v2758
    %3828 = vmatpush.bf16.msra.mxu0 %v2750
    %3829 = vmatpush.bf16.msra.mxu0 %v2742
    %3830 = vmatpush.bf16.msra.mxu0 %v2734
    %3831 = vmatpush.bf16.msra.mxu0 %v2726
    %3832 = vmatpush.bf16.msra.mxu0 %v2718
    %3833 = vmatmul.bf16.gmra.mxu0 %v326
    %v3834 = vpop.f32.mrf.mxu0
    %v3835 = vadd.f32 %v3821, %v3834
    %v3836 = vpop.f32.mrf.mxu0
    %v3837 = vadd.f32 %v3823, %v3836
    %3838 = vdwg.mxu0
    %3839 = vmatpush.bf16.msra.mxu0 %v2838
    %3840 = vmatpush.bf16.msra.mxu0 %v2830
    %3841 = vmatpush.bf16.msra.mxu0 %v2822
    %3842 = vmatpush.bf16.msra.mxu0 %v2814
    %3843 = vmatpush.bf16.msra.mxu0 %v2806
    %3844 = vmatpush.bf16.msra.mxu0 %v2798
    %3845 = vmatpush.bf16.msra.mxu0 %v2790
    %3846 = vmatpush.bf16.msra.mxu0 %v2782
    %3847 = vmatmul.bf16.gmra.mxu0 %v327
    %v3848 = vpop.f32.mrf.mxu0
    %v3849 = vadd.f32 %v3835, %v3848
    %v3850 = vpop.f32.mrf.mxu0
    %v3851 = vadd.f32 %v3837, %v3850
    %3852 = vdwg.mxu0
    %3853 = vmatpush.bf16.msra.mxu0 %v2902
    %3854 = vmatpush.bf16.msra.mxu0 %v2894
    %3855 = vmatpush.bf16.msra.mxu0 %v2886
    %3856 = vmatpush.bf16.msra.mxu0 %v2878
    %3857 = vmatpush.bf16.msra.mxu0 %v2870
    %3858 = vmatpush.bf16.msra.mxu0 %v2862
    %3859 = vmatpush.bf16.msra.mxu0 %v2854
    %3860 = vmatpush.bf16.msra.mxu0 %v2846
    %3861 = vmatmul.bf16.gmra.mxu0 %v328
    %v3862 = vpop.f32.mrf.mxu0
    %v3863 = vadd.f32 %v3849, %v3862
    %v3864 = vpop.f32.mrf.mxu0
    %v3865 = vadd.f32 %v3851, %v3864
    %3866 = vdwg.mxu0
    %3867 = vmatpush.bf16.msra.mxu0 %v2455
    %3868 = vmatpush.bf16.msra.mxu0 %v2447
    %3869 = vmatpush.bf16.msra.mxu0 %v2439
    %3870 = vmatpush.bf16.msra.mxu0 %v2431
    %3871 = vmatpush.bf16.msra.mxu0 %v2423
    %3872 = vmatpush.bf16.msra.mxu0 %v2415
    %3873 = vmatpush.bf16.msra.mxu0 %v2407
    %3874 = vmatpush.bf16.msra.mxu0 %v2399
    %3875 = vmatmul.bf16.gmra.mxu0 %v321
    %v3876 = vpop.f32.mrf.mxu0
    %v3877 = vadd.f32 %v847, %v3876
    %v3878 = vpop.f32.mrf.mxu0
    %v3879 = vadd.f32 %v847, %v3878
    %3880 = vdwg.mxu0
    %3881 = vmatpush.bf16.msra.mxu0 %v2519
    %3882 = vmatpush.bf16.msra.mxu0 %v2511
    %3883 = vmatpush.bf16.msra.mxu0 %v2503
    %3884 = vmatpush.bf16.msra.mxu0 %v2495
    %3885 = vmatpush.bf16.msra.mxu0 %v2487
    %3886 = vmatpush.bf16.msra.mxu0 %v2479
    %3887 = vmatpush.bf16.msra.mxu0 %v2471
    %3888 = vmatpush.bf16.msra.mxu0 %v2463
    %3889 = vmatmul.bf16.gmra.mxu0 %v322
    %v3890 = vpop.f32.mrf.mxu0
    %v3891 = vadd.f32 %v3877, %v3890
    %v3892 = vpop.f32.mrf.mxu0
    %v3893 = vadd.f32 %v3879, %v3892
    %3894 = vdwg.mxu0
    %3895 = vmatpush.bf16.msra.mxu0 %v2583
    %3896 = vmatpush.bf16.msra.mxu0 %v2575
    %3897 = vmatpush.bf16.msra.mxu0 %v2567
    %3898 = vmatpush.bf16.msra.mxu0 %v2559
    %3899 = vmatpush.bf16.msra.mxu0 %v2551
    %3900 = vmatpush.bf16.msra.mxu0 %v2543
    %3901 = vmatpush.bf16.msra.mxu0 %v2535
    %3902 = vmatpush.bf16.msra.mxu0 %v2527
    %3903 = vmatmul.bf16.gmra.mxu0 %v323
    %v3904 = vpop.f32.mrf.mxu0
    %v3905 = vadd.f32 %v3891, %v3904
    %v3906 = vpop.f32.mrf.mxu0
    %v3907 = vadd.f32 %v3893, %v3906
    %3908 = vdwg.mxu0
    %3909 = vmatpush.bf16.msra.mxu0 %v2647
    %3910 = vmatpush.bf16.msra.mxu0 %v2639
    %3911 = vmatpush.bf16.msra.mxu0 %v2631
    %3912 = vmatpush.bf16.msra.mxu0 %v2623
    %3913 = vmatpush.bf16.msra.mxu0 %v2615
    %3914 = vmatpush.bf16.msra.mxu0 %v2607
    %3915 = vmatpush.bf16.msra.mxu0 %v2599
    %3916 = vmatpush.bf16.msra.mxu0 %v2591
    %3917 = vmatmul.bf16.gmra.mxu0 %v324
    %v3918 = vpop.f32.mrf.mxu0
    %v3919 = vadd.f32 %v3905, %v3918
    %v3920 = vpop.f32.mrf.mxu0
    %v3921 = vadd.f32 %v3907, %v3920
    %3922 = vdwg.mxu0
    %3923 = vmatpush.bf16.msra.mxu0 %v2711
    %3924 = vmatpush.bf16.msra.mxu0 %v2703
    %3925 = vmatpush.bf16.msra.mxu0 %v2695
    %3926 = vmatpush.bf16.msra.mxu0 %v2687
    %3927 = vmatpush.bf16.msra.mxu0 %v2679
    %3928 = vmatpush.bf16.msra.mxu0 %v2671
    %3929 = vmatpush.bf16.msra.mxu0 %v2663
    %3930 = vmatpush.bf16.msra.mxu0 %v2655
    %3931 = vmatmul.bf16.gmra.mxu0 %v325
    %v3932 = vpop.f32.mrf.mxu0
    %v3933 = vadd.f32 %v3919, %v3932
    %v3934 = vpop.f32.mrf.mxu0
    %v3935 = vadd.f32 %v3921, %v3934
    %3936 = vdwg.mxu0
    %3937 = vmatpush.bf16.msra.mxu0 %v2775
    %3938 = vmatpush.bf16.msra.mxu0 %v2767
    %3939 = vmatpush.bf16.msra.mxu0 %v2759
    %3940 = vmatpush.bf16.msra.mxu0 %v2751
    %3941 = vmatpush.bf16.msra.mxu0 %v2743
    %3942 = vmatpush.bf16.msra.mxu0 %v2735
    %3943 = vmatpush.bf16.msra.mxu0 %v2727
    %3944 = vmatpush.bf16.msra.mxu0 %v2719
    %3945 = vmatmul.bf16.gmra.mxu0 %v326
    %v3946 = vpop.f32.mrf.mxu0
    %v3947 = vadd.f32 %v3933, %v3946
    %v3948 = vpop.f32.mrf.mxu0
    %v3949 = vadd.f32 %v3935, %v3948
    %3950 = vdwg.mxu0
    %3951 = vmatpush.bf16.msra.mxu0 %v2839
    %3952 = vmatpush.bf16.msra.mxu0 %v2831
    %3953 = vmatpush.bf16.msra.mxu0 %v2823
    %3954 = vmatpush.bf16.msra.mxu0 %v2815
    %3955 = vmatpush.bf16.msra.mxu0 %v2807
    %3956 = vmatpush.bf16.msra.mxu0 %v2799
    %3957 = vmatpush.bf16.msra.mxu0 %v2791
    %3958 = vmatpush.bf16.msra.mxu0 %v2783
    %3959 = vmatmul.bf16.gmra.mxu0 %v327
    %v3960 = vpop.f32.mrf.mxu0
    %v3961 = vadd.f32 %v3947, %v3960
    %v3962 = vpop.f32.mrf.mxu0
    %v3963 = vadd.f32 %v3949, %v3962
    %3964 = vdwg.mxu0
    %3965 = vmatpush.bf16.msra.mxu0 %v2903
    %3966 = vmatpush.bf16.msra.mxu0 %v2895
    %3967 = vmatpush.bf16.msra.mxu0 %v2887
    %3968 = vmatpush.bf16.msra.mxu0 %v2879
    %3969 = vmatpush.bf16.msra.mxu0 %v2871
    %3970 = vmatpush.bf16.msra.mxu0 %v2863
    %3971 = vmatpush.bf16.msra.mxu0 %v2855
    %3972 = vmatpush.bf16.msra.mxu0 %v2847
    %3973 = vmatmul.bf16.gmra.mxu0 %v328
    %v3974 = vpop.f32.mrf.mxu0
    %v3975 = vadd.f32 %v3961, %v3974
    %v3976 = vpop.f32.mrf.mxu0
    %v3977 = vadd.f32 %v3963, %v3976
    %3978 = vdwg.mxu0
    %3979 = vmatpush.bf16.msra.mxu0 %v2456
    %3980 = vmatpush.bf16.msra.mxu0 %v2448
    %3981 = vmatpush.bf16.msra.mxu0 %v2440
    %3982 = vmatpush.bf16.msra.mxu0 %v2432
    %3983 = vmatpush.bf16.msra.mxu0 %v2424
    %3984 = vmatpush.bf16.msra.mxu0 %v2416
    %3985 = vmatpush.bf16.msra.mxu0 %v2408
    %3986 = vmatpush.bf16.msra.mxu0 %v2400
    %3987 = vmatmul.bf16.gmra.mxu0 %v321
    %v3988 = vpop.f32.mrf.mxu0
    %v3989 = vadd.f32 %v848, %v3988
    %v3990 = vpop.f32.mrf.mxu0
    %v3991 = vadd.f32 %v848, %v3990
    %3992 = vdwg.mxu0
    %3993 = vmatpush.bf16.msra.mxu0 %v2520
    %3994 = vmatpush.bf16.msra.mxu0 %v2512
    %3995 = vmatpush.bf16.msra.mxu0 %v2504
    %3996 = vmatpush.bf16.msra.mxu0 %v2496
    %3997 = vmatpush.bf16.msra.mxu0 %v2488
    %3998 = vmatpush.bf16.msra.mxu0 %v2480
    %3999 = vmatpush.bf16.msra.mxu0 %v2472
    %4000 = vmatpush.bf16.msra.mxu0 %v2464
    %4001 = vmatmul.bf16.gmra.mxu0 %v322
    %v4002 = vpop.f32.mrf.mxu0
    %v4003 = vadd.f32 %v3989, %v4002
    %v4004 = vpop.f32.mrf.mxu0
    %v4005 = vadd.f32 %v3991, %v4004
    %4006 = vdwg.mxu0
    %4007 = vmatpush.bf16.msra.mxu0 %v2584
    %4008 = vmatpush.bf16.msra.mxu0 %v2576
    %4009 = vmatpush.bf16.msra.mxu0 %v2568
    %4010 = vmatpush.bf16.msra.mxu0 %v2560
    %4011 = vmatpush.bf16.msra.mxu0 %v2552
    %4012 = vmatpush.bf16.msra.mxu0 %v2544
    %4013 = vmatpush.bf16.msra.mxu0 %v2536
    %4014 = vmatpush.bf16.msra.mxu0 %v2528
    %4015 = vmatmul.bf16.gmra.mxu0 %v323
    %v4016 = vpop.f32.mrf.mxu0
    %v4017 = vadd.f32 %v4003, %v4016
    %v4018 = vpop.f32.mrf.mxu0
    %v4019 = vadd.f32 %v4005, %v4018
    %4020 = vdwg.mxu0
    %4021 = vmatpush.bf16.msra.mxu0 %v2648
    %4022 = vmatpush.bf16.msra.mxu0 %v2640
    %4023 = vmatpush.bf16.msra.mxu0 %v2632
    %4024 = vmatpush.bf16.msra.mxu0 %v2624
    %4025 = vmatpush.bf16.msra.mxu0 %v2616
    %4026 = vmatpush.bf16.msra.mxu0 %v2608
    %4027 = vmatpush.bf16.msra.mxu0 %v2600
    %4028 = vmatpush.bf16.msra.mxu0 %v2592
    %4029 = vmatmul.bf16.gmra.mxu0 %v324
    %v4030 = vpop.f32.mrf.mxu0
    %v4031 = vadd.f32 %v4017, %v4030
    %v4032 = vpop.f32.mrf.mxu0
    %v4033 = vadd.f32 %v4019, %v4032
    %4034 = vdwg.mxu0
    %4035 = vmatpush.bf16.msra.mxu0 %v2712
    %4036 = vmatpush.bf16.msra.mxu0 %v2704
    %4037 = vmatpush.bf16.msra.mxu0 %v2696
    %4038 = vmatpush.bf16.msra.mxu0 %v2688
    %4039 = vmatpush.bf16.msra.mxu0 %v2680
    %4040 = vmatpush.bf16.msra.mxu0 %v2672
    %4041 = vmatpush.bf16.msra.mxu0 %v2664
    %4042 = vmatpush.bf16.msra.mxu0 %v2656
    %4043 = vmatmul.bf16.gmra.mxu0 %v325
    %v4044 = vpop.f32.mrf.mxu0
    %v4045 = vadd.f32 %v4031, %v4044
    %v4046 = vpop.f32.mrf.mxu0
    %v4047 = vadd.f32 %v4033, %v4046
    %4048 = vdwg.mxu0
    %4049 = vmatpush.bf16.msra.mxu0 %v2776
    %4050 = vmatpush.bf16.msra.mxu0 %v2768
    %4051 = vmatpush.bf16.msra.mxu0 %v2760
    %4052 = vmatpush.bf16.msra.mxu0 %v2752
    %4053 = vmatpush.bf16.msra.mxu0 %v2744
    %4054 = vmatpush.bf16.msra.mxu0 %v2736
    %4055 = vmatpush.bf16.msra.mxu0 %v2728
    %4056 = vmatpush.bf16.msra.mxu0 %v2720
    %4057 = vmatmul.bf16.gmra.mxu0 %v326
    %v4058 = vpop.f32.mrf.mxu0
    %v4059 = vadd.f32 %v4045, %v4058
    %v4060 = vpop.f32.mrf.mxu0
    %v4061 = vadd.f32 %v4047, %v4060
    %4062 = vdwg.mxu0
    %4063 = vmatpush.bf16.msra.mxu0 %v2840
    %4064 = vmatpush.bf16.msra.mxu0 %v2832
    %4065 = vmatpush.bf16.msra.mxu0 %v2824
    %4066 = vmatpush.bf16.msra.mxu0 %v2816
    %4067 = vmatpush.bf16.msra.mxu0 %v2808
    %4068 = vmatpush.bf16.msra.mxu0 %v2800
    %4069 = vmatpush.bf16.msra.mxu0 %v2792
    %4070 = vmatpush.bf16.msra.mxu0 %v2784
    %4071 = vmatmul.bf16.gmra.mxu0 %v327
    %v4072 = vpop.f32.mrf.mxu0
    %v4073 = vadd.f32 %v4059, %v4072
    %v4074 = vpop.f32.mrf.mxu0
    %v4075 = vadd.f32 %v4061, %v4074
    %4076 = vdwg.mxu0
    %4077 = vmatpush.bf16.msra.mxu0 %v2904
    %4078 = vmatpush.bf16.msra.mxu0 %v2896
    %4079 = vmatpush.bf16.msra.mxu0 %v2888
    %4080 = vmatpush.bf16.msra.mxu0 %v2880
    %4081 = vmatpush.bf16.msra.mxu0 %v2872
    %4082 = vmatpush.bf16.msra.mxu0 %v2864
    %4083 = vmatpush.bf16.msra.mxu0 %v2856
    %4084 = vmatpush.bf16.msra.mxu0 %v2848
    %4085 = vmatmul.bf16.gmra.mxu0 %v328
    %v4086 = vpop.f32.mrf.mxu0
    %v4087 = vadd.f32 %v4073, %v4086
    %v4088 = vpop.f32.mrf.mxu0
    %v4089 = vadd.f32 %v4075, %v4088
    %4090 = vdwg.mxu0
    %4091 = vmatpush.bf16.msra.mxu0 %v2457
    %4092 = vmatpush.bf16.msra.mxu0 %v2449
    %4093 = vmatpush.bf16.msra.mxu0 %v2441
    %4094 = vmatpush.bf16.msra.mxu0 %v2433
    %4095 = vmatpush.bf16.msra.mxu0 %v2425
    %4096 = vmatpush.bf16.msra.mxu0 %v2417
    %4097 = vmatpush.bf16.msra.mxu0 %v2409
    %4098 = vmatpush.bf16.msra.mxu0 %v2401
    %4099 = vmatmul.bf16.gmra.mxu0 %v321
    %v4100 = vpop.f32.mrf.mxu0
    %v4101 = vadd.f32 %v849, %v4100
    %v4102 = vpop.f32.mrf.mxu0
    %v4103 = vadd.f32 %v849, %v4102
    %4104 = vdwg.mxu0
    %4105 = vmatpush.bf16.msra.mxu0 %v2521
    %4106 = vmatpush.bf16.msra.mxu0 %v2513
    %4107 = vmatpush.bf16.msra.mxu0 %v2505
    %4108 = vmatpush.bf16.msra.mxu0 %v2497
    %4109 = vmatpush.bf16.msra.mxu0 %v2489
    %4110 = vmatpush.bf16.msra.mxu0 %v2481
    %4111 = vmatpush.bf16.msra.mxu0 %v2473
    %4112 = vmatpush.bf16.msra.mxu0 %v2465
    %4113 = vmatmul.bf16.gmra.mxu0 %v322
    %v4114 = vpop.f32.mrf.mxu0
    %v4115 = vadd.f32 %v4101, %v4114
    %v4116 = vpop.f32.mrf.mxu0
    %v4117 = vadd.f32 %v4103, %v4116
    %4118 = vdwg.mxu0
    %4119 = vmatpush.bf16.msra.mxu0 %v2585
    %4120 = vmatpush.bf16.msra.mxu0 %v2577
    %4121 = vmatpush.bf16.msra.mxu0 %v2569
    %4122 = vmatpush.bf16.msra.mxu0 %v2561
    %4123 = vmatpush.bf16.msra.mxu0 %v2553
    %4124 = vmatpush.bf16.msra.mxu0 %v2545
    %4125 = vmatpush.bf16.msra.mxu0 %v2537
    %4126 = vmatpush.bf16.msra.mxu0 %v2529
    %4127 = vmatmul.bf16.gmra.mxu0 %v323
    %v4128 = vpop.f32.mrf.mxu0
    %v4129 = vadd.f32 %v4115, %v4128
    %v4130 = vpop.f32.mrf.mxu0
    %v4131 = vadd.f32 %v4117, %v4130
    %4132 = vdwg.mxu0
    %4133 = vmatpush.bf16.msra.mxu0 %v2649
    %4134 = vmatpush.bf16.msra.mxu0 %v2641
    %4135 = vmatpush.bf16.msra.mxu0 %v2633
    %4136 = vmatpush.bf16.msra.mxu0 %v2625
    %4137 = vmatpush.bf16.msra.mxu0 %v2617
    %4138 = vmatpush.bf16.msra.mxu0 %v2609
    %4139 = vmatpush.bf16.msra.mxu0 %v2601
    %4140 = vmatpush.bf16.msra.mxu0 %v2593
    %4141 = vmatmul.bf16.gmra.mxu0 %v324
    %v4142 = vpop.f32.mrf.mxu0
    %v4143 = vadd.f32 %v4129, %v4142
    %v4144 = vpop.f32.mrf.mxu0
    %v4145 = vadd.f32 %v4131, %v4144
    %4146 = vdwg.mxu0
    %4147 = vmatpush.bf16.msra.mxu0 %v2713
    %4148 = vmatpush.bf16.msra.mxu0 %v2705
    %4149 = vmatpush.bf16.msra.mxu0 %v2697
    %4150 = vmatpush.bf16.msra.mxu0 %v2689
    %4151 = vmatpush.bf16.msra.mxu0 %v2681
    %4152 = vmatpush.bf16.msra.mxu0 %v2673
    %4153 = vmatpush.bf16.msra.mxu0 %v2665
    %4154 = vmatpush.bf16.msra.mxu0 %v2657
    %4155 = vmatmul.bf16.gmra.mxu0 %v325
    %v4156 = vpop.f32.mrf.mxu0
    %v4157 = vadd.f32 %v4143, %v4156
    %v4158 = vpop.f32.mrf.mxu0
    %v4159 = vadd.f32 %v4145, %v4158
    %4160 = vdwg.mxu0
    %4161 = vmatpush.bf16.msra.mxu0 %v2777
    %4162 = vmatpush.bf16.msra.mxu0 %v2769
    %4163 = vmatpush.bf16.msra.mxu0 %v2761
    %4164 = vmatpush.bf16.msra.mxu0 %v2753
    %4165 = vmatpush.bf16.msra.mxu0 %v2745
    %4166 = vmatpush.bf16.msra.mxu0 %v2737
    %4167 = vmatpush.bf16.msra.mxu0 %v2729
    %4168 = vmatpush.bf16.msra.mxu0 %v2721
    %4169 = vmatmul.bf16.gmra.mxu0 %v326
    %v4170 = vpop.f32.mrf.mxu0
    %v4171 = vadd.f32 %v4157, %v4170
    %v4172 = vpop.f32.mrf.mxu0
    %v4173 = vadd.f32 %v4159, %v4172
    %4174 = vdwg.mxu0
    %4175 = vmatpush.bf16.msra.mxu0 %v2841
    %4176 = vmatpush.bf16.msra.mxu0 %v2833
    %4177 = vmatpush.bf16.msra.mxu0 %v2825
    %4178 = vmatpush.bf16.msra.mxu0 %v2817
    %4179 = vmatpush.bf16.msra.mxu0 %v2809
    %4180 = vmatpush.bf16.msra.mxu0 %v2801
    %4181 = vmatpush.bf16.msra.mxu0 %v2793
    %4182 = vmatpush.bf16.msra.mxu0 %v2785
    %4183 = vmatmul.bf16.gmra.mxu0 %v327
    %v4184 = vpop.f32.mrf.mxu0
    %v4185 = vadd.f32 %v4171, %v4184
    %v4186 = vpop.f32.mrf.mxu0
    %v4187 = vadd.f32 %v4173, %v4186
    %4188 = vdwg.mxu0
    %4189 = vmatpush.bf16.msra.mxu0 %v2905
    %4190 = vmatpush.bf16.msra.mxu0 %v2897
    %4191 = vmatpush.bf16.msra.mxu0 %v2889
    %4192 = vmatpush.bf16.msra.mxu0 %v2881
    %4193 = vmatpush.bf16.msra.mxu0 %v2873
    %4194 = vmatpush.bf16.msra.mxu0 %v2865
    %4195 = vmatpush.bf16.msra.mxu0 %v2857
    %4196 = vmatpush.bf16.msra.mxu0 %v2849
    %4197 = vmatmul.bf16.gmra.mxu0 %v328
    %v4198 = vpop.f32.mrf.mxu0
    %v4199 = vadd.f32 %v4185, %v4198
    %v4200 = vpop.f32.mrf.mxu0
    %v4201 = vadd.f32 %v4187, %v4200
    %4202 = vdwg.mxu0
    %4203 = vmatpush.bf16.msra.mxu0 %v2458
    %4204 = vmatpush.bf16.msra.mxu0 %v2450
    %4205 = vmatpush.bf16.msra.mxu0 %v2442
    %4206 = vmatpush.bf16.msra.mxu0 %v2434
    %4207 = vmatpush.bf16.msra.mxu0 %v2426
    %4208 = vmatpush.bf16.msra.mxu0 %v2418
    %4209 = vmatpush.bf16.msra.mxu0 %v2410
    %4210 = vmatpush.bf16.msra.mxu0 %v2402
    %4211 = vmatmul.bf16.gmra.mxu0 %v321
    %v4212 = vpop.f32.mrf.mxu0
    %v4213 = vadd.f32 %v850, %v4212
    %v4214 = vpop.f32.mrf.mxu0
    %v4215 = vadd.f32 %v850, %v4214
    %4216 = vdwg.mxu0
    %4217 = vmatpush.bf16.msra.mxu0 %v2522
    %4218 = vmatpush.bf16.msra.mxu0 %v2514
    %4219 = vmatpush.bf16.msra.mxu0 %v2506
    %4220 = vmatpush.bf16.msra.mxu0 %v2498
    %4221 = vmatpush.bf16.msra.mxu0 %v2490
    %4222 = vmatpush.bf16.msra.mxu0 %v2482
    %4223 = vmatpush.bf16.msra.mxu0 %v2474
    %4224 = vmatpush.bf16.msra.mxu0 %v2466
    %4225 = vmatmul.bf16.gmra.mxu0 %v322
    %v4226 = vpop.f32.mrf.mxu0
    %v4227 = vadd.f32 %v4213, %v4226
    %v4228 = vpop.f32.mrf.mxu0
    %v4229 = vadd.f32 %v4215, %v4228
    %4230 = vdwg.mxu0
    %4231 = vmatpush.bf16.msra.mxu0 %v2586
    %4232 = vmatpush.bf16.msra.mxu0 %v2578
    %4233 = vmatpush.bf16.msra.mxu0 %v2570
    %4234 = vmatpush.bf16.msra.mxu0 %v2562
    %4235 = vmatpush.bf16.msra.mxu0 %v2554
    %4236 = vmatpush.bf16.msra.mxu0 %v2546
    %4237 = vmatpush.bf16.msra.mxu0 %v2538
    %4238 = vmatpush.bf16.msra.mxu0 %v2530
    %4239 = vmatmul.bf16.gmra.mxu0 %v323
    %v4240 = vpop.f32.mrf.mxu0
    %v4241 = vadd.f32 %v4227, %v4240
    %v4242 = vpop.f32.mrf.mxu0
    %v4243 = vadd.f32 %v4229, %v4242
    %4244 = vdwg.mxu0
    %4245 = vmatpush.bf16.msra.mxu0 %v2650
    %4246 = vmatpush.bf16.msra.mxu0 %v2642
    %4247 = vmatpush.bf16.msra.mxu0 %v2634
    %4248 = vmatpush.bf16.msra.mxu0 %v2626
    %4249 = vmatpush.bf16.msra.mxu0 %v2618
    %4250 = vmatpush.bf16.msra.mxu0 %v2610
    %4251 = vmatpush.bf16.msra.mxu0 %v2602
    %4252 = vmatpush.bf16.msra.mxu0 %v2594
    %4253 = vmatmul.bf16.gmra.mxu0 %v324
    %v4254 = vpop.f32.mrf.mxu0
    %v4255 = vadd.f32 %v4241, %v4254
    %v4256 = vpop.f32.mrf.mxu0
    %v4257 = vadd.f32 %v4243, %v4256
    %4258 = vdwg.mxu0
    %4259 = vmatpush.bf16.msra.mxu0 %v2714
    %4260 = vmatpush.bf16.msra.mxu0 %v2706
    %4261 = vmatpush.bf16.msra.mxu0 %v2698
    %4262 = vmatpush.bf16.msra.mxu0 %v2690
    %4263 = vmatpush.bf16.msra.mxu0 %v2682
    %4264 = vmatpush.bf16.msra.mxu0 %v2674
    %4265 = vmatpush.bf16.msra.mxu0 %v2666
    %4266 = vmatpush.bf16.msra.mxu0 %v2658
    %4267 = vmatmul.bf16.gmra.mxu0 %v325
    %v4268 = vpop.f32.mrf.mxu0
    %v4269 = vadd.f32 %v4255, %v4268
    %v4270 = vpop.f32.mrf.mxu0
    %v4271 = vadd.f32 %v4257, %v4270
    %4272 = vdwg.mxu0
    %4273 = vmatpush.bf16.msra.mxu0 %v2778
    %4274 = vmatpush.bf16.msra.mxu0 %v2770
    %4275 = vmatpush.bf16.msra.mxu0 %v2762
    %4276 = vmatpush.bf16.msra.mxu0 %v2754
    %4277 = vmatpush.bf16.msra.mxu0 %v2746
    %4278 = vmatpush.bf16.msra.mxu0 %v2738
    %4279 = vmatpush.bf16.msra.mxu0 %v2730
    %4280 = vmatpush.bf16.msra.mxu0 %v2722
    %4281 = vmatmul.bf16.gmra.mxu0 %v326
    %v4282 = vpop.f32.mrf.mxu0
    %v4283 = vadd.f32 %v4269, %v4282
    %v4284 = vpop.f32.mrf.mxu0
    %v4285 = vadd.f32 %v4271, %v4284
    %4286 = vdwg.mxu0
    %4287 = vmatpush.bf16.msra.mxu0 %v2842
    %4288 = vmatpush.bf16.msra.mxu0 %v2834
    %4289 = vmatpush.bf16.msra.mxu0 %v2826
    %4290 = vmatpush.bf16.msra.mxu0 %v2818
    %4291 = vmatpush.bf16.msra.mxu0 %v2810
    %4292 = vmatpush.bf16.msra.mxu0 %v2802
    %4293 = vmatpush.bf16.msra.mxu0 %v2794
    %4294 = vmatpush.bf16.msra.mxu0 %v2786
    %4295 = vmatmul.bf16.gmra.mxu0 %v327
    %v4296 = vpop.f32.mrf.mxu0
    %v4297 = vadd.f32 %v4283, %v4296
    %v4298 = vpop.f32.mrf.mxu0
    %v4299 = vadd.f32 %v4285, %v4298
    %4300 = vdwg.mxu0
    %4301 = vmatpush.bf16.msra.mxu0 %v2906
    %4302 = vmatpush.bf16.msra.mxu0 %v2898
    %4303 = vmatpush.bf16.msra.mxu0 %v2890
    %4304 = vmatpush.bf16.msra.mxu0 %v2882
    %4305 = vmatpush.bf16.msra.mxu0 %v2874
    %4306 = vmatpush.bf16.msra.mxu0 %v2866
    %4307 = vmatpush.bf16.msra.mxu0 %v2858
    %4308 = vmatpush.bf16.msra.mxu0 %v2850
    %4309 = vmatmul.bf16.gmra.mxu0 %v328
    %v4310 = vpop.f32.mrf.mxu0
    %v4311 = vadd.f32 %v4297, %v4310
    %v4312 = vpop.f32.mrf.mxu0
    %v4313 = vadd.f32 %v4299, %v4312
    %4314 = vdwg.mxu0
    %v4315 = vmax.f32 %v3527, 0.0
    %v4316 = vmax.f32 %v3639, 0.0
    %v4317 = vmax.f32 %v3751, 0.0
    %v4318 = vmax.f32 %v3863, 0.0
    %v4319 = vmax.f32 %v3975, 0.0
    %v4320 = vmax.f32 %v4087, 0.0
    %v4321 = vmax.f32 %v4199, 0.0
    %v4322 = vmax.f32 %v4311, 0.0
    %v4323 = vmax.f32 %v3529, 0.0
    %v4324 = vmax.f32 %v3641, 0.0
    %v4325 = vmax.f32 %v3753, 0.0
    %v4326 = vmax.f32 %v3865, 0.0
    %v4327 = vmax.f32 %v3977, 0.0
    %v4328 = vmax.f32 %v4089, 0.0
    %v4329 = vmax.f32 %v4201, 0.0
    %v4330 = vmax.f32 %v4313, 0.0
    %v4331 = vpack.c.bf16 %v4323, %v4315
    %v4332 = vpack.c.bf16 %v4324, %v4316
    %v4333 = vpack.c.bf16 %v4325, %v4317
    %v4334 = vpack.c.bf16 %v4326, %v4318
    %v4335 = vpack.c.bf16 %v4327, %v4319
    %v4336 = vpack.c.bf16 %v4328, %v4320
    %v4337 = vpack.c.bf16 %v4329, %v4321
    %v4338 = vpack.c.bf16 %v4330, %v4322
    %v4339 = vld [vmem:[%s5] sm:$0xff]
    %v4340 = vld [vmem:[%s5 + $0x8] sm:$0xff]
    %v4341 = vld [vmem:[%s5 + $0x10] sm:$0xff]
    %v4342 = vld [vmem:[%s5 + $0x18] sm:$0xff]
    %v4343 = vld [vmem:[%s5 + $0x20] sm:$0xff]
    %v4344 = vld [vmem:[%s5 + $0x28] sm:$0xff]
    %v4345 = vld [vmem:[%s5 + $0x30] sm:$0xff]
    %v4346 = vld [vmem:[%s5 + $0x38] sm:$0xff]
    %v4347 = vld [vmem:[%s5 + $0x40] sm:$0xff]
    %v4348 = vld [vmem:[%s5 + $0x48] sm:$0xff]
    %v4349 = vld [vmem:[%s5 + $0x50] sm:$0xff]
    %v4350 = vld [vmem:[%s5 + $0x58] sm:$0xff]
    %v4351 = vld [vmem:[%s5 + $0x60] sm:$0xff]
    %v4352 = vld [vmem:[%s5 + $0x68] sm:$0xff]
    %v4353 = vld [vmem:[%s5 + $0x70] sm:$0xff]
    %v4354 = vld [vmem:[%s5 + $0x78] sm:$0xff]
    %v4355 = vld [vmem:[%s5 + $0x80] sm:$0xff]
    %v4356 = vld [vmem:[%s5 + $0x88] sm:$0xff]
    %v4357 = vld [vmem:[%s5 + $0x90] sm:$0xff]
    %v4358 = vld [vmem:[%s5 + $0x98] sm:$0xff]
    %v4359 = vld [vmem:[%s5 + $0xa0] sm:$0xff]
    %v4360 = vld [vmem:[%s5 + $0xa8] sm:$0xff]
    %v4361 = vld [vmem:[%s5 + $0xb0] sm:$0xff]
    %v4362 = vld [vmem:[%s5 + $0xb8] sm:$0xff]
    %v4363 = vld [vmem:[%s5 + $0xc0] sm:$0xff]
    %v4364 = vld [vmem:[%s5 + $0xc8] sm:$0xff]
    %v4365 = vld [vmem:[%s5 + $0xd0] sm:$0xff]
    %v4366 = vld [vmem:[%s5 + $0xd8] sm:$0xff]
    %v4367 = vld [vmem:[%s5 + $0xe0] sm:$0xff]
    %v4368 = vld [vmem:[%s5 + $0xe8] sm:$0xff]
    %v4369 = vld [vmem:[%s5 + $0xf0] sm:$0xff]
    %v4370 = vld [vmem:[%s5 + $0xf8] sm:$0xff]
    %v4371 = vld [vmem:[%s5 + $0x100] sm:$0xff]
    %v4372 = vld [vmem:[%s5 + $0x108] sm:$0xff]
    %v4373 = vld [vmem:[%s5 + $0x110] sm:$0xff]
    %v4374 = vld [vmem:[%s5 + $0x118] sm:$0xff]
    %v4375 = vld [vmem:[%s5 + $0x120] sm:$0xff]
    %v4376 = vld [vmem:[%s5 + $0x128] sm:$0xff]
    %v4377 = vld [vmem:[%s5 + $0x130] sm:$0xff]
    %v4378 = vld [vmem:[%s5 + $0x138] sm:$0xff]
    %v4379 = vld [vmem:[%s5 + $0x140] sm:$0xff]
    %v4380 = vld [vmem:[%s5 + $0x148] sm:$0xff]
    %v4381 = vld [vmem:[%s5 + $0x150] sm:$0xff]
    %v4382 = vld [vmem:[%s5 + $0x158] sm:$0xff]
    %v4383 = vld [vmem:[%s5 + $0x160] sm:$0xff]
    %v4384 = vld [vmem:[%s5 + $0x168] sm:$0xff]
    %v4385 = vld [vmem:[%s5 + $0x170] sm:$0xff]
    %v4386 = vld [vmem:[%s5 + $0x178] sm:$0xff]
    %v4387 = vld [vmem:[%s5 + $0x180] sm:$0xff]
    %v4388 = vld [vmem:[%s5 + $0x188] sm:$0xff]
    %v4389 = vld [vmem:[%s5 + $0x190] sm:$0xff]
    %v4390 = vld [vmem:[%s5 + $0x198] sm:$0xff]
    %v4391 = vld [vmem:[%s5 + $0x1a0] sm:$0xff]
    %v4392 = vld [vmem:[%s5 + $0x1a8] sm:$0xff]
    %v4393 = vld [vmem:[%s5 + $0x1b0] sm:$0xff]
    %v4394 = vld [vmem:[%s5 + $0x1b8] sm:$0xff]
    %v4395 = vld [vmem:[%s5 + $0x1c0] sm:$0xff]
    %v4396 = vld [vmem:[%s5 + $0x1c8] sm:$0xff]
    %v4397 = vld [vmem:[%s5 + $0x1d0] sm:$0xff]
    %v4398 = vld [vmem:[%s5 + $0x1d8] sm:$0xff]
    %v4399 = vld [vmem:[%s5 + $0x1e0] sm:$0xff]
    %v4400 = vld [vmem:[%s5 + $0x1e8] sm:$0xff]
    %v4401 = vld [vmem:[%s5 + $0x1f0] sm:$0xff]
    %v4402 = vld [vmem:[%s5 + $0x1f8] sm:$0xff]
    %v4403 = vld [vmem:[%s5 + $0x200] sm:$0xff]
    %v4404 = vld [vmem:[%s5 + $0x208] sm:$0xff]
    %v4405 = vld [vmem:[%s5 + $0x210] sm:$0xff]
    %v4406 = vld [vmem:[%s5 + $0x218] sm:$0xff]
    %v4407 = vld [vmem:[%s5 + $0x220] sm:$0xff]
    %v4408 = vld [vmem:[%s5 + $0x228] sm:$0xff]
    %v4409 = vld [vmem:[%s5 + $0x230] sm:$0xff]
    %v4410 = vld [vmem:[%s5 + $0x238] sm:$0xff]
    %v4411 = vld [vmem:[%s5 + $0x240] sm:$0xff]
    %v4412 = vld [vmem:[%s5 + $0x248] sm:$0xff]
    %v4413 = vld [vmem:[%s5 + $0x250] sm:$0xff]
    %v4414 = vld [vmem:[%s5 + $0x258] sm:$0xff]
    %v4415 = vld [vmem:[%s5 + $0x260] sm:$0xff]
    %v4416 = vld [vmem:[%s5 + $0x268] sm:$0xff]
    %v4417 = vld [vmem:[%s5 + $0x270] sm:$0xff]
    %v4418 = vld [vmem:[%s5 + $0x278] sm:$0xff]
    %v4419 = vld [vmem:[%s5 + $0x280] sm:$0xff]
    %v4420 = vld [vmem:[%s5 + $0x288] sm:$0xff]
    %v4421 = vld [vmem:[%s5 + $0x290] sm:$0xff]
    %v4422 = vld [vmem:[%s5 + $0x298] sm:$0xff]
    %v4423 = vld [vmem:[%s5 + $0x2a0] sm:$0xff]
    %v4424 = vld [vmem:[%s5 + $0x2a8] sm:$0xff]
    %v4425 = vld [vmem:[%s5 + $0x2b0] sm:$0xff]
    %v4426 = vld [vmem:[%s5 + $0x2b8] sm:$0xff]
    %v4427 = vld [vmem:[%s5 + $0x2c0] sm:$0xff]
    %v4428 = vld [vmem:[%s5 + $0x2c8] sm:$0xff]
    %v4429 = vld [vmem:[%s5 + $0x2d0] sm:$0xff]
    %v4430 = vld [vmem:[%s5 + $0x2d8] sm:$0xff]
    %v4431 = vld [vmem:[%s5 + $0x2e0] sm:$0xff]
    %v4432 = vld [vmem:[%s5 + $0x2e8] sm:$0xff]
    %v4433 = vld [vmem:[%s5 + $0x2f0] sm:$0xff]
    %v4434 = vld [vmem:[%s5 + $0x2f8] sm:$0xff]
    %v4435 = vld [vmem:[%s5 + $0x300] sm:$0xff]
    %v4436 = vld [vmem:[%s5 + $0x308] sm:$0xff]
    %v4437 = vld [vmem:[%s5 + $0x310] sm:$0xff]
    %v4438 = vld [vmem:[%s5 + $0x318] sm:$0xff]
    %v4439 = vld [vmem:[%s5 + $0x320] sm:$0xff]
    %v4440 = vld [vmem:[%s5 + $0x328] sm:$0xff]
    %v4441 = vld [vmem:[%s5 + $0x330] sm:$0xff]
    %v4442 = vld [vmem:[%s5 + $0x338] sm:$0xff]
    %v4443 = vld [vmem:[%s5 + $0x340] sm:$0xff]
    %v4444 = vld [vmem:[%s5 + $0x348] sm:$0xff]
    %v4445 = vld [vmem:[%s5 + $0x350] sm:$0xff]
    %v4446 = vld [vmem:[%s5 + $0x358] sm:$0xff]
    %v4447 = vld [vmem:[%s5 + $0x360] sm:$0xff]
    %v4448 = vld [vmem:[%s5 + $0x368] sm:$0xff]
    %v4449 = vld [vmem:[%s5 + $0x370] sm:$0xff]
    %v4450 = vld [vmem:[%s5 + $0x378] sm:$0xff]
    %v4451 = vld [vmem:[%s5 + $0x380] sm:$0xff]
    %v4452 = vld [vmem:[%s5 + $0x388] sm:$0xff]
    %v4453 = vld [vmem:[%s5 + $0x390] sm:$0xff]
    %v4454 = vld [vmem:[%s5 + $0x398] sm:$0xff]
    %v4455 = vld [vmem:[%s5 + $0x3a0] sm:$0xff]
    %v4456 = vld [vmem:[%s5 + $0x3a8] sm:$0xff]
    %v4457 = vld [vmem:[%s5 + $0x3b0] sm:$0xff]
    %v4458 = vld [vmem:[%s5 + $0x3b8] sm:$0xff]
    %v4459 = vld [vmem:[%s5 + $0x3c0] sm:$0xff]
    %v4460 = vld [vmem:[%s5 + $0x3c8] sm:$0xff]
    %v4461 = vld [vmem:[%s5 + $0x3d0] sm:$0xff]
    %v4462 = vld [vmem:[%s5 + $0x3d8] sm:$0xff]
    %v4463 = vld [vmem:[%s5 + $0x3e0] sm:$0xff]
    %v4464 = vld [vmem:[%s5 + $0x3e8] sm:$0xff]
    %v4465 = vld [vmem:[%s5 + $0x3f0] sm:$0xff]
    %v4466 = vld [vmem:[%s5 + $0x3f8] sm:$0xff]
    %v4467 = vld [vmem:[#allocation11] sm:$0x3]
    %v4469 = vperm.slane %v4467, 0
    %v4470 = vperm.slane %v4467, 1
    %v4601 = vunpack.c.l.b16 %v4339
    %v4602 = vunpack.c.h.b16 %v4339
    %v4603 = vunpack.c.l.b16 %v4340
    %v4604 = vunpack.c.h.b16 %v4340
    %v4605 = vunpack.c.l.b16 %v4341
    %v4606 = vunpack.c.h.b16 %v4341
    %v4607 = vunpack.c.l.b16 %v4342
    %v4608 = vunpack.c.h.b16 %v4342
    %v4609 = vunpack.c.l.b16 %v4343
    %v4610 = vunpack.c.h.b16 %v4343
    %v4611 = vunpack.c.l.b16 %v4344
    %v4612 = vunpack.c.h.b16 %v4344
    %v4613 = vunpack.c.l.b16 %v4345
    %v4614 = vunpack.c.h.b16 %v4345
    %v4615 = vunpack.c.l.b16 %v4346
    %v4616 = vunpack.c.h.b16 %v4346
    %v4617 = vunpack.c.l.b16 %v4347
    %v4618 = vunpack.c.h.b16 %v4347
    %v4619 = vunpack.c.l.b16 %v4348
    %v4620 = vunpack.c.h.b16 %v4348
    %v4621 = vunpack.c.l.b16 %v4349
    %v4622 = vunpack.c.h.b16 %v4349
    %v4623 = vunpack.c.l.b16 %v4350
    %v4624 = vunpack.c.h.b16 %v4350
    %v4625 = vunpack.c.l.b16 %v4351
    %v4626 = vunpack.c.h.b16 %v4351
    %v4627 = vunpack.c.l.b16 %v4352
    %v4628 = vunpack.c.h.b16 %v4352
    %v4629 = vunpack.c.l.b16 %v4353
    %v4630 = vunpack.c.h.b16 %v4353
    %v4631 = vunpack.c.l.b16 %v4354
    %v4632 = vunpack.c.h.b16 %v4354
    %v4633 = vunpack.c.l.b16 %v4355
    %v4634 = vunpack.c.h.b16 %v4355
    %v4635 = vunpack.c.l.b16 %v4356
    %v4636 = vunpack.c.h.b16 %v4356
    %v4637 = vunpack.c.l.b16 %v4357
    %v4638 = vunpack.c.h.b16 %v4357
    %v4639 = vunpack.c.l.b16 %v4358
    %v4640 = vunpack.c.h.b16 %v4358
    %v4641 = vunpack.c.l.b16 %v4359
    %v4642 = vunpack.c.h.b16 %v4359
    %v4643 = vunpack.c.l.b16 %v4360
    %v4644 = vunpack.c.h.b16 %v4360
    %v4645 = vunpack.c.l.b16 %v4361
    %v4646 = vunpack.c.h.b16 %v4361
    %v4647 = vunpack.c.l.b16 %v4362
    %v4648 = vunpack.c.h.b16 %v4362
    %v4649 = vunpack.c.l.b16 %v4363
    %v4650 = vunpack.c.h.b16 %v4363
    %v4651 = vunpack.c.l.b16 %v4364
    %v4652 = vunpack.c.h.b16 %v4364
    %v4653 = vunpack.c.l.b16 %v4365
    %v4654 = vunpack.c.h.b16 %v4365
    %v4655 = vunpack.c.l.b16 %v4366
    %v4656 = vunpack.c.h.b16 %v4366
    %v4657 = vunpack.c.l.b16 %v4367
    %v4658 = vunpack.c.h.b16 %v4367
    %v4659 = vunpack.c.l.b16 %v4368
    %v4660 = vunpack.c.h.b16 %v4368
    %v4661 = vunpack.c.l.b16 %v4369
    %v4662 = vunpack.c.h.b16 %v4369
    %v4663 = vunpack.c.l.b16 %v4370
    %v4664 = vunpack.c.h.b16 %v4370
    %v4665 = vunpack.c.l.b16 %v4371
    %v4666 = vunpack.c.h.b16 %v4371
    %v4667 = vunpack.c.l.b16 %v4372
    %v4668 = vunpack.c.h.b16 %v4372
    %v4669 = vunpack.c.l.b16 %v4373
    %v4670 = vunpack.c.h.b16 %v4373
    %v4671 = vunpack.c.l.b16 %v4374
    %v4672 = vunpack.c.h.b16 %v4374
    %v4673 = vunpack.c.l.b16 %v4375
    %v4674 = vunpack.c.h.b16 %v4375
    %v4675 = vunpack.c.l.b16 %v4376
    %v4676 = vunpack.c.h.b16 %v4376
    %v4677 = vunpack.c.l.b16 %v4377
    %v4678 = vunpack.c.h.b16 %v4377
    %v4679 = vunpack.c.l.b16 %v4378
    %v4680 = vunpack.c.h.b16 %v4378
    %v4681 = vunpack.c.l.b16 %v4379
    %v4682 = vunpack.c.h.b16 %v4379
    %v4683 = vunpack.c.l.b16 %v4380
    %v4684 = vunpack.c.h.b16 %v4380
    %v4685 = vunpack.c.l.b16 %v4381
    %v4686 = vunpack.c.h.b16 %v4381
    %v4687 = vunpack.c.l.b16 %v4382
    %v4688 = vunpack.c.h.b16 %v4382
    %v4689 = vunpack.c.l.b16 %v4383
    %v4690 = vunpack.c.h.b16 %v4383
    %v4691 = vunpack.c.l.b16 %v4384
    %v4692 = vunpack.c.h.b16 %v4384
    %v4693 = vunpack.c.l.b16 %v4385
    %v4694 = vunpack.c.h.b16 %v4385
    %v4695 = vunpack.c.l.b16 %v4386
    %v4696 = vunpack.c.h.b16 %v4386
    %v4697 = vunpack.c.l.b16 %v4387
    %v4698 = vunpack.c.h.b16 %v4387
    %v4699 = vunpack.c.l.b16 %v4388
    %v4700 = vunpack.c.h.b16 %v4388
    %v4701 = vunpack.c.l.b16 %v4389
    %v4702 = vunpack.c.h.b16 %v4389
    %v4703 = vunpack.c.l.b16 %v4390
    %v4704 = vunpack.c.h.b16 %v4390
    %v4705 = vunpack.c.l.b16 %v4391
    %v4706 = vunpack.c.h.b16 %v4391
    %v4707 = vunpack.c.l.b16 %v4392
    %v4708 = vunpack.c.h.b16 %v4392
    %v4709 = vunpack.c.l.b16 %v4393
    %v4710 = vunpack.c.h.b16 %v4393
    %v4711 = vunpack.c.l.b16 %v4394
    %v4712 = vunpack.c.h.b16 %v4394
    %v4713 = vunpack.c.l.b16 %v4395
    %v4714 = vunpack.c.h.b16 %v4395
    %v4715 = vunpack.c.l.b16 %v4396
    %v4716 = vunpack.c.h.b16 %v4396
    %v4717 = vunpack.c.l.b16 %v4397
    %v4718 = vunpack.c.h.b16 %v4397
    %v4719 = vunpack.c.l.b16 %v4398
    %v4720 = vunpack.c.h.b16 %v4398
    %v4721 = vunpack.c.l.b16 %v4399
    %v4722 = vunpack.c.h.b16 %v4399
    %v4723 = vunpack.c.l.b16 %v4400
    %v4724 = vunpack.c.h.b16 %v4400
    %v4725 = vunpack.c.l.b16 %v4401
    %v4726 = vunpack.c.h.b16 %v4401
    %v4727 = vunpack.c.l.b16 %v4402
    %v4728 = vunpack.c.h.b16 %v4402
    %v4729 = vunpack.c.l.b16 %v4403
    %v4730 = vunpack.c.h.b16 %v4403
    %v4731 = vunpack.c.l.b16 %v4404
    %v4732 = vunpack.c.h.b16 %v4404
    %v4733 = vunpack.c.l.b16 %v4405
    %v4734 = vunpack.c.h.b16 %v4405
    %v4735 = vunpack.c.l.b16 %v4406
    %v4736 = vunpack.c.h.b16 %v4406
    %v4737 = vunpack.c.l.b16 %v4407
    %v4738 = vunpack.c.h.b16 %v4407
    %v4739 = vunpack.c.l.b16 %v4408
    %v4740 = vunpack.c.h.b16 %v4408
    %v4741 = vunpack.c.l.b16 %v4409
    %v4742 = vunpack.c.h.b16 %v4409
    %v4743 = vunpack.c.l.b16 %v4410
    %v4744 = vunpack.c.h.b16 %v4410
    %v4745 = vunpack.c.l.b16 %v4411
    %v4746 = vunpack.c.h.b16 %v4411
    %v4747 = vunpack.c.l.b16 %v4412
    %v4748 = vunpack.c.h.b16 %v4412
    %v4749 = vunpack.c.l.b16 %v4413
    %v4750 = vunpack.c.h.b16 %v4413
    %v4751 = vunpack.c.l.b16 %v4414
    %v4752 = vunpack.c.h.b16 %v4414
    %v4753 = vunpack.c.l.b16 %v4415
    %v4754 = vunpack.c.h.b16 %v4415
    %v4755 = vunpack.c.l.b16 %v4416
    %v4756 = vunpack.c.h.b16 %v4416
    %v4757 = vunpack.c.l.b16 %v4417
    %v4758 = vunpack.c.h.b16 %v4417
    %v4759 = vunpack.c.l.b16 %v4418
    %v4760 = vunpack.c.h.b16 %v4418
    %v4761 = vunpack.c.l.b16 %v4419
    %v4762 = vunpack.c.h.b16 %v4419
    %v4763 = vunpack.c.l.b16 %v4420
    %v4764 = vunpack.c.h.b16 %v4420
    %v4765 = vunpack.c.l.b16 %v4421
    %v4766 = vunpack.c.h.b16 %v4421
    %v4767 = vunpack.c.l.b16 %v4422
    %v4768 = vunpack.c.h.b16 %v4422
    %v4769 = vunpack.c.l.b16 %v4423
    %v4770 = vunpack.c.h.b16 %v4423
    %v4771 = vunpack.c.l.b16 %v4424
    %v4772 = vunpack.c.h.b16 %v4424
    %v4773 = vunpack.c.l.b16 %v4425
    %v4774 = vunpack.c.h.b16 %v4425
    %v4775 = vunpack.c.l.b16 %v4426
    %v4776 = vunpack.c.h.b16 %v4426
    %v4777 = vunpack.c.l.b16 %v4427
    %v4778 = vunpack.c.h.b16 %v4427
    %v4779 = vunpack.c.l.b16 %v4428
    %v4780 = vunpack.c.h.b16 %v4428
    %v4781 = vunpack.c.l.b16 %v4429
    %v4782 = vunpack.c.h.b16 %v4429
    %v4783 = vunpack.c.l.b16 %v4430
    %v4784 = vunpack.c.h.b16 %v4430
    %v4785 = vunpack.c.l.b16 %v4431
    %v4786 = vunpack.c.h.b16 %v4431
    %v4787 = vunpack.c.l.b16 %v4432
    %v4788 = vunpack.c.h.b16 %v4432
    %v4789 = vunpack.c.l.b16 %v4433
    %v4790 = vunpack.c.h.b16 %v4433
    %v4791 = vunpack.c.l.b16 %v4434
    %v4792 = vunpack.c.h.b16 %v4434
    %v4793 = vunpack.c.l.b16 %v4435
    %v4794 = vunpack.c.h.b16 %v4435
    %v4795 = vunpack.c.l.b16 %v4436
    %v4796 = vunpack.c.h.b16 %v4436
    %v4797 = vunpack.c.l.b16 %v4437
    %v4798 = vunpack.c.h.b16 %v4437
    %v4799 = vunpack.c.l.b16 %v4438
    %v4800 = vunpack.c.h.b16 %v4438
    %v4801 = vunpack.c.l.b16 %v4439
    %v4802 = vunpack.c.h.b16 %v4439
    %v4803 = vunpack.c.l.b16 %v4440
    %v4804 = vunpack.c.h.b16 %v4440
    %v4805 = vunpack.c.l.b16 %v4441
    %v4806 = vunpack.c.h.b16 %v4441
    %v4807 = vunpack.c.l.b16 %v4442
    %v4808 = vunpack.c.h.b16 %v4442
    %v4809 = vunpack.c.l.b16 %v4443
    %v4810 = vunpack.c.h.b16 %v4443
    %v4811 = vunpack.c.l.b16 %v4444
    %v4812 = vunpack.c.h.b16 %v4444
    %v4813 = vunpack.c.l.b16 %v4445
    %v4814 = vunpack.c.h.b16 %v4445
    %v4815 = vunpack.c.l.b16 %v4446
    %v4816 = vunpack.c.h.b16 %v4446
    %v4817 = vunpack.c.l.b16 %v4447
    %v4818 = vunpack.c.h.b16 %v4447
    %v4819 = vunpack.c.l.b16 %v4448
    %v4820 = vunpack.c.h.b16 %v4448
    %v4821 = vunpack.c.l.b16 %v4449
    %v4822 = vunpack.c.h.b16 %v4449
    %v4823 = vunpack.c.l.b16 %v4450
    %v4824 = vunpack.c.h.b16 %v4450
    %v4825 = vunpack.c.l.b16 %v4451
    %v4826 = vunpack.c.h.b16 %v4451
    %v4827 = vunpack.c.l.b16 %v4452
    %v4828 = vunpack.c.h.b16 %v4452
    %v4829 = vunpack.c.l.b16 %v4453
    %v4830 = vunpack.c.h.b16 %v4453
    %v4831 = vunpack.c.l.b16 %v4454
    %v4832 = vunpack.c.h.b16 %v4454
    %v4833 = vunpack.c.l.b16 %v4455
    %v4834 = vunpack.c.h.b16 %v4455
    %v4835 = vunpack.c.l.b16 %v4456
    %v4836 = vunpack.c.h.b16 %v4456
    %v4837 = vunpack.c.l.b16 %v4457
    %v4838 = vunpack.c.h.b16 %v4457
    %v4839 = vunpack.c.l.b16 %v4458
    %v4840 = vunpack.c.h.b16 %v4458
    %v4841 = vunpack.c.l.b16 %v4459
    %v4842 = vunpack.c.h.b16 %v4459
    %v4843 = vunpack.c.l.b16 %v4460
    %v4844 = vunpack.c.h.b16 %v4460
    %v4845 = vunpack.c.l.b16 %v4461
    %v4846 = vunpack.c.h.b16 %v4461
    %v4847 = vunpack.c.l.b16 %v4462
    %v4848 = vunpack.c.h.b16 %v4462
    %v4849 = vunpack.c.l.b16 %v4463
    %v4850 = vunpack.c.h.b16 %v4463
    %v4851 = vunpack.c.l.b16 %v4464
    %v4852 = vunpack.c.h.b16 %v4464
    %v4853 = vunpack.c.l.b16 %v4465
    %v4854 = vunpack.c.h.b16 %v4465
    %v4855 = vunpack.c.l.b16 %v4466
    %v4856 = vunpack.c.h.b16 %v4466
    %v4857 = vpack.c.b16 %v4603, %v4601
    %v4858 = vpack.c.b16 %v4604, %v4602
    %v4859 = vpack.c.b16 %v4607, %v4605
    %v4860 = vpack.c.b16 %v4608, %v4606
    %v4861 = vpack.c.b16 %v4611, %v4609
    %v4862 = vpack.c.b16 %v4612, %v4610
    %v4863 = vpack.c.b16 %v4615, %v4613
    %v4864 = vpack.c.b16 %v4616, %v4614
    %v4865 = vpack.c.b16 %v4619, %v4617
    %v4866 = vpack.c.b16 %v4620, %v4618
    %v4867 = vpack.c.b16 %v4623, %v4621
    %v4868 = vpack.c.b16 %v4624, %v4622
    %v4869 = vpack.c.b16 %v4627, %v4625
    %v4870 = vpack.c.b16 %v4628, %v4626
    %v4871 = vpack.c.b16 %v4631, %v4629
    %v4872 = vpack.c.b16 %v4632, %v4630
    %v4873 = vpack.c.b16 %v4635, %v4633
    %v4874 = vpack.c.b16 %v4636, %v4634
    %v4875 = vpack.c.b16 %v4639, %v4637
    %v4876 = vpack.c.b16 %v4640, %v4638
    %v4877 = vpack.c.b16 %v4643, %v4641
    %v4878 = vpack.c.b16 %v4644, %v4642
    %v4879 = vpack.c.b16 %v4647, %v4645
    %v4880 = vpack.c.b16 %v4648, %v4646
    %v4881 = vpack.c.b16 %v4651, %v4649
    %v4882 = vpack.c.b16 %v4652, %v4650
    %v4883 = vpack.c.b16 %v4655, %v4653
    %v4884 = vpack.c.b16 %v4656, %v4654
    %v4885 = vpack.c.b16 %v4659, %v4657
    %v4886 = vpack.c.b16 %v4660, %v4658
    %v4887 = vpack.c.b16 %v4663, %v4661
    %v4888 = vpack.c.b16 %v4664, %v4662
    %v4889 = vpack.c.b16 %v4667, %v4665
    %v4890 = vpack.c.b16 %v4668, %v4666
    %v4891 = vpack.c.b16 %v4671, %v4669
    %v4892 = vpack.c.b16 %v4672, %v4670
    %v4893 = vpack.c.b16 %v4675, %v4673
    %v4894 = vpack.c.b16 %v4676, %v4674
    %v4895 = vpack.c.b16 %v4679, %v4677
    %v4896 = vpack.c.b16 %v4680, %v4678
    %v4897 = vpack.c.b16 %v4683, %v4681
    %v4898 = vpack.c.b16 %v4684, %v4682
    %v4899 = vpack.c.b16 %v4687, %v4685
    %v4900 = vpack.c.b16 %v4688, %v4686
    %v4901 = vpack.c.b16 %v4691, %v4689
    %v4902 = vpack.c.b16 %v4692, %v4690
    %v4903 = vpack.c.b16 %v4695, %v4693
    %v4904 = vpack.c.b16 %v4696, %v4694
    %v4905 = vpack.c.b16 %v4699, %v4697
    %v4906 = vpack.c.b16 %v4700, %v4698
    %v4907 = vpack.c.b16 %v4703, %v4701
    %v4908 = vpack.c.b16 %v4704, %v4702
    %v4909 = vpack.c.b16 %v4707, %v4705
    %v4910 = vpack.c.b16 %v4708, %v4706
    %v4911 = vpack.c.b16 %v4711, %v4709
    %v4912 = vpack.c.b16 %v4712, %v4710
    %v4913 = vpack.c.b16 %v4715, %v4713
    %v4914 = vpack.c.b16 %v4716, %v4714
    %v4915 = vpack.c.b16 %v4719, %v4717
    %v4916 = vpack.c.b16 %v4720, %v4718
    %v4917 = vpack.c.b16 %v4723, %v4721
    %v4918 = vpack.c.b16 %v4724, %v4722
    %v4919 = vpack.c.b16 %v4727, %v4725
    %v4920 = vpack.c.b16 %v4728, %v4726
    %v4921 = vpack.c.b16 %v4731, %v4729
    %v4922 = vpack.c.b16 %v4732, %v4730
    %v4923 = vpack.c.b16 %v4735, %v4733
    %v4924 = vpack.c.b16 %v4736, %v4734
    %v4925 = vpack.c.b16 %v4739, %v4737
    %v4926 = vpack.c.b16 %v4740, %v4738
    %v4927 = vpack.c.b16 %v4743, %v4741
    %v4928 = vpack.c.b16 %v4744, %v4742
    %v4929 = vpack.c.b16 %v4747, %v4745
    %v4930 = vpack.c.b16 %v4748, %v4746
    %v4931 = vpack.c.b16 %v4751, %v4749
    %v4932 = vpack.c.b16 %v4752, %v4750
    %v4933 = vpack.c.b16 %v4755, %v4753
    %v4934 = vpack.c.b16 %v4756, %v4754
    %v4935 = vpack.c.b16 %v4759, %v4757
    %v4936 = vpack.c.b16 %v4760, %v4758
    %v4937 = vpack.c.b16 %v4763, %v4761
    %v4938 = vpack.c.b16 %v4764, %v4762
    %v4939 = vpack.c.b16 %v4767, %v4765
    %v4940 = vpack.c.b16 %v4768, %v4766
    %v4941 = vpack.c.b16 %v4771, %v4769
    %v4942 = vpack.c.b16 %v4772, %v4770
    %v4943 = vpack.c.b16 %v4775, %v4773
    %v4944 = vpack.c.b16 %v4776, %v4774
    %v4945 = vpack.c.b16 %v4779, %v4777
    %v4946 = vpack.c.b16 %v4780, %v4778
    %v4947 = vpack.c.b16 %v4783, %v4781
    %v4948 = vpack.c.b16 %v4784, %v4782
    %v4949 = vpack.c.b16 %v4787, %v4785
    %v4950 = vpack.c.b16 %v4788, %v4786
    %v4951 = vpack.c.b16 %v4791, %v4789
    %v4952 = vpack.c.b16 %v4792, %v4790
    %v4953 = vpack.c.b16 %v4795, %v4793
    %v4954 = vpack.c.b16 %v4796, %v4794
    %v4955 = vpack.c.b16 %v4799, %v4797
    %v4956 = vpack.c.b16 %v4800, %v4798
    %v4957 = vpack.c.b16 %v4803, %v4801
    %v4958 = vpack.c.b16 %v4804, %v4802
    %v4959 = vpack.c.b16 %v4807, %v4805
    %v4960 = vpack.c.b16 %v4808, %v4806
    %v4961 = vpack.c.b16 %v4811, %v4809
    %v4962 = vpack.c.b16 %v4812, %v4810
    %v4963 = vpack.c.b16 %v4815, %v4813
    %v4964 = vpack.c.b16 %v4816, %v4814
    %v4965 = vpack.c.b16 %v4819, %v4817
    %v4966 = vpack.c.b16 %v4820, %v4818
    %v4967 = vpack.c.b16 %v4823, %v4821
    %v4968 = vpack.c.b16 %v4824, %v4822
    %v4969 = vpack.c.b16 %v4827, %v4825
    %v4970 = vpack.c.b16 %v4828, %v4826
    %v4971 = vpack.c.b16 %v4831, %v4829
    %v4972 = vpack.c.b16 %v4832, %v4830
    %v4973 = vpack.c.b16 %v4835, %v4833
    %v4974 = vpack.c.b16 %v4836, %v4834
    %v4975 = vpack.c.b16 %v4839, %v4837
    %v4976 = vpack.c.b16 %v4840, %v4838
    %v4977 = vpack.c.b16 %v4843, %v4841
    %v4978 = vpack.c.b16 %v4844, %v4842
    %v4979 = vpack.c.b16 %v4847, %v4845
    %v4980 = vpack.c.b16 %v4848, %v4846
    %v4981 = vpack.c.b16 %v4851, %v4849
    %v4982 = vpack.c.b16 %v4852, %v4850
    %v4983 = vpack.c.b16 %v4855, %v4853
    %v4984 = vpack.c.b16 %v4856, %v4854
    %5113 = vmatpush.bf16.msra.mxu0 %v4871
    %5114 = vmatpush.bf16.msra.mxu0 %v4869
    %5115 = vmatpush.bf16.msra.mxu0 %v4867
    %5116 = vmatpush.bf16.msra.mxu0 %v4865
    %5117 = vmatpush.bf16.msra.mxu0 %v4863
    %5118 = vmatpush.bf16.msra.mxu0 %v4861
    %5119 = vmatpush.bf16.msra.mxu0 %v4859
    %5120 = vmatpush.bf16.msra.mxu0 %v4857
    %5121 = vmatmul.bf16.gmra.mxu0 %v4331
    %v5122 = vpop.f32.mrf.mxu0
    %v5123 = vadd.f32 %v4469, %v5122
    %v5124 = vpop.f32.mrf.mxu0
    %v5125 = vadd.f32 %v4469, %v5124
    %5126 = vdwg.mxu0
    %5127 = vmatpush.bf16.msra.mxu0 %v4887
    %5128 = vmatpush.bf16.msra.mxu0 %v4885
    %5129 = vmatpush.bf16.msra.mxu0 %v4883
    %5130 = vmatpush.bf16.msra.mxu0 %v4881
    %5131 = vmatpush.bf16.msra.mxu0 %v4879
    %5132 = vmatpush.bf16.msra.mxu0 %v4877
    %5133 = vmatpush.bf16.msra.mxu0 %v4875
    %5134 = vmatpush.bf16.msra.mxu0 %v4873
    %5135 = vmatmul.bf16.gmra.mxu0 %v4332
    %v5136 = vpop.f32.mrf.mxu0
    %v5137 = vadd.f32 %v5123, %v5136
    %v5138 = vpop.f32.mrf.mxu0
    %v5139 = vadd.f32 %v5125, %v5138
    %5140 = vdwg.mxu0
    %5141 = vmatpush.bf16.msra.mxu0 %v4903
    %5142 = vmatpush.bf16.msra.mxu0 %v4901
    %5143 = vmatpush.bf16.msra.mxu0 %v4899
    %5144 = vmatpush.bf16.msra.mxu0 %v4897
    %5145 = vmatpush.bf16.msra.mxu0 %v4895
    %5146 = vmatpush.bf16.msra.mxu0 %v4893
    %5147 = vmatpush.bf16.msra.mxu0 %v4891
    %5148 = vmatpush.bf16.msra.mxu0 %v4889
    %5149 = vmatmul.bf16.gmra.mxu0 %v4333
    %v5150 = vpop.f32.mrf.mxu0
    %v5151 = vadd.f32 %v5137, %v5150
    %v5152 = vpop.f32.mrf.mxu0
    %v5153 = vadd.f32 %v5139, %v5152
    %5154 = vdwg.mxu0
    %5155 = vmatpush.bf16.msra.mxu0 %v4919
    %5156 = vmatpush.bf16.msra.mxu0 %v4917
    %5157 = vmatpush.bf16.msra.mxu0 %v4915
    %5158 = vmatpush.bf16.msra.mxu0 %v4913
    %5159 = vmatpush.bf16.msra.mxu0 %v4911
    %5160 = vmatpush.bf16.msra.mxu0 %v4909
    %5161 = vmatpush.bf16.msra.mxu0 %v4907
    %5162 = vmatpush.bf16.msra.mxu0 %v4905
    %5163 = vmatmul.bf16.gmra.mxu0 %v4334
    %v5164 = vpop.f32.mrf.mxu0
    %v5165 = vadd.f32 %v5151, %v5164
    %v5166 = vpop.f32.mrf.mxu0
    %v5167 = vadd.f32 %v5153, %v5166
    %5168 = vdwg.mxu0
    %5169 = vmatpush.bf16.msra.mxu0 %v4935
    %5170 = vmatpush.bf16.msra.mxu0 %v4933
    %5171 = vmatpush.bf16.msra.mxu0 %v4931
    %5172 = vmatpush.bf16.msra.mxu0 %v4929
    %5173 = vmatpush.bf16.msra.mxu0 %v4927
    %5174 = vmatpush.bf16.msra.mxu0 %v4925
    %5175 = vmatpush.bf16.msra.mxu0 %v4923
    %5176 = vmatpush.bf16.msra.mxu0 %v4921
    %5177 = vmatmul.bf16.gmra.mxu0 %v4335
    %v5178 = vpop.f32.mrf.mxu0
    %v5179 = vadd.f32 %v5165, %v5178
    %v5180 = vpop.f32.mrf.mxu0
    %v5181 = vadd.f32 %v5167, %v5180
    %5182 = vdwg.mxu0
    %5183 = vmatpush.bf16.msra.mxu0 %v4951
    %5184 = vmatpush.bf16.msra.mxu0 %v4949
    %5185 = vmatpush.bf16.msra.mxu0 %v4947
    %5186 = vmatpush.bf16.msra.mxu0 %v4945
    %5187 = vmatpush.bf16.msra.mxu0 %v4943
    %5188 = vmatpush.bf16.msra.mxu0 %v4941
    %5189 = vmatpush.bf16.msra.mxu0 %v4939
    %5190 = vmatpush.bf16.msra.mxu0 %v4937
    %5191 = vmatmul.bf16.gmra.mxu0 %v4336
    %v5192 = vpop.f32.mrf.mxu0
    %v5193 = vadd.f32 %v5179, %v5192
    %v5194 = vpop.f32.mrf.mxu0
    %v5195 = vadd.f32 %v5181, %v5194
    %5196 = vdwg.mxu0
    %5197 = vmatpush.bf16.msra.mxu0 %v4967
    %5198 = vmatpush.bf16.msra.mxu0 %v4965
    %5199 = vmatpush.bf16.msra.mxu0 %v4963
    %5200 = vmatpush.bf16.msra.mxu0 %v4961
    %5201 = vmatpush.bf16.msra.mxu0 %v4959
    %5202 = vmatpush.bf16.msra.mxu0 %v4957
    %5203 = vmatpush.bf16.msra.mxu0 %v4955
    %5204 = vmatpush.bf16.msra.mxu0 %v4953
    %5205 = vmatmul.bf16.gmra.mxu0 %v4337
    %v5206 = vpop.f32.mrf.mxu0
    %v5207 = vadd.f32 %v5193, %v5206
    %v5208 = vpop.f32.mrf.mxu0
    %v5209 = vadd.f32 %v5195, %v5208
    %5210 = vdwg.mxu0
    %5211 = vmatpush.bf16.msra.mxu0 %v4983
    %5212 = vmatpush.bf16.msra.mxu0 %v4981
    %5213 = vmatpush.bf16.msra.mxu0 %v4979
    %5214 = vmatpush.bf16.msra.mxu0 %v4977
    %5215 = vmatpush.bf16.msra.mxu0 %v4975
    %5216 = vmatpush.bf16.msra.mxu0 %v4973
    %5217 = vmatpush.bf16.msra.mxu0 %v4971
    %5218 = vmatpush.bf16.msra.mxu0 %v4969
    %5219 = vmatmul.bf16.gmra.mxu0 %v4338
    %v5220 = vpop.f32.mrf.mxu0
    %v5221 = vadd.f32 %v5207, %v5220
    %v5222 = vpop.f32.mrf.mxu0
    %v5223 = vadd.f32 %v5209, %v5222
    %5224 = vdwg.mxu0
    %5225 = vmatpush.bf16.msra.mxu0 %v4872
    %5226 = vmatpush.bf16.msra.mxu0 %v4870
    %5227 = vmatpush.bf16.msra.mxu0 %v4868
    %5228 = vmatpush.bf16.msra.mxu0 %v4866
    %5229 = vmatpush.bf16.msra.mxu0 %v4864
    %5230 = vmatpush.bf16.msra.mxu0 %v4862
    %5231 = vmatpush.bf16.msra.mxu0 %v4860
    %5232 = vmatpush.bf16.msra.mxu0 %v4858
    %5233 = vmatmul.bf16.gmra.mxu0 %v4331
    %v5234 = vpop.f32.mrf.mxu0
    %v5235 = vadd.f32 %v4470, %v5234
    %v5236 = vpop.f32.mrf.mxu0
    %v5237 = vadd.f32 %v4470, %v5236
    %5238 = vdwg.mxu0
    %5239 = vmatpush.bf16.msra.mxu0 %v4888
    %5240 = vmatpush.bf16.msra.mxu0 %v4886
    %5241 = vmatpush.bf16.msra.mxu0 %v4884
    %5242 = vmatpush.bf16.msra.mxu0 %v4882
    %5243 = vmatpush.bf16.msra.mxu0 %v4880
    %5244 = vmatpush.bf16.msra.mxu0 %v4878
    %5245 = vmatpush.bf16.msra.mxu0 %v4876
    %5246 = vmatpush.bf16.msra.mxu0 %v4874
    %5247 = vmatmul.bf16.gmra.mxu0 %v4332
    %v5248 = vpop.f32.mrf.mxu0
    %v5249 = vadd.f32 %v5235, %v5248
    %v5250 = vpop.f32.mrf.mxu0
    %v5251 = vadd.f32 %v5237, %v5250
    %5252 = vdwg.mxu0
    %5253 = vmatpush.bf16.msra.mxu0 %v4904
    %5254 = vmatpush.bf16.msra.mxu0 %v4902
    %5255 = vmatpush.bf16.msra.mxu0 %v4900
    %5256 = vmatpush.bf16.msra.mxu0 %v4898
    %5257 = vmatpush.bf16.msra.mxu0 %v4896
    %5258 = vmatpush.bf16.msra.mxu0 %v4894
    %5259 = vmatpush.bf16.msra.mxu0 %v4892
    %5260 = vmatpush.bf16.msra.mxu0 %v4890
    %5261 = vmatmul.bf16.gmra.mxu0 %v4333
    %v5262 = vpop.f32.mrf.mxu0
    %v5263 = vadd.f32 %v5249, %v5262
    %v5264 = vpop.f32.mrf.mxu0
    %v5265 = vadd.f32 %v5251, %v5264
    %5266 = vdwg.mxu0
    %5267 = vmatpush.bf16.msra.mxu0 %v4920
    %5268 = vmatpush.bf16.msra.mxu0 %v4918
    %5269 = vmatpush.bf16.msra.mxu0 %v4916
    %5270 = vmatpush.bf16.msra.mxu0 %v4914
    %5271 = vmatpush.bf16.msra.mxu0 %v4912
    %5272 = vmatpush.bf16.msra.mxu0 %v4910
    %5273 = vmatpush.bf16.msra.mxu0 %v4908
    %5274 = vmatpush.bf16.msra.mxu0 %v4906
    %5275 = vmatmul.bf16.gmra.mxu0 %v4334
    %v5276 = vpop.f32.mrf.mxu0
    %v5277 = vadd.f32 %v5263, %v5276
    %v5278 = vpop.f32.mrf.mxu0
    %v5279 = vadd.f32 %v5265, %v5278
    %5280 = vdwg.mxu0
    %5281 = vmatpush.bf16.msra.mxu0 %v4936
    %5282 = vmatpush.bf16.msra.mxu0 %v4934
    %5283 = vmatpush.bf16.msra.mxu0 %v4932
    %5284 = vmatpush.bf16.msra.mxu0 %v4930
    %5285 = vmatpush.bf16.msra.mxu0 %v4928
    %5286 = vmatpush.bf16.msra.mxu0 %v4926
    %5287 = vmatpush.bf16.msra.mxu0 %v4924
    %5288 = vmatpush.bf16.msra.mxu0 %v4922
    %5289 = vmatmul.bf16.gmra.mxu0 %v4335
    %v5290 = vpop.f32.mrf.mxu0
    %v5291 = vadd.f32 %v5277, %v5290
    %v5292 = vpop.f32.mrf.mxu0
    %v5293 = vadd.f32 %v5279, %v5292
    %5294 = vdwg.mxu0
    %5295 = vmatpush.bf16.msra.mxu0 %v4952
    %5296 = vmatpush.bf16.msra.mxu0 %v4950
    %5297 = vmatpush.bf16.msra.mxu0 %v4948
    %5298 = vmatpush.bf16.msra.mxu0 %v4946
    %5299 = vmatpush.bf16.msra.mxu0 %v4944
    %5300 = vmatpush.bf16.msra.mxu0 %v4942
    %5301 = vmatpush.bf16.msra.mxu0 %v4940
    %5302 = vmatpush.bf16.msra.mxu0 %v4938
    %5303 = vmatmul.bf16.gmra.mxu0 %v4336
    %v5304 = vpop.f32.mrf.mxu0
    %v5305 = vadd.f32 %v5291, %v5304
    %v5306 = vpop.f32.mrf.mxu0
    %v5307 = vadd.f32 %v5293, %v5306
    %5308 = vdwg.mxu0
    %5309 = vmatpush.bf16.msra.mxu0 %v4968
    %5310 = vmatpush.bf16.msra.mxu0 %v4966
    %5311 = vmatpush.bf16.msra.mxu0 %v4964
    %5312 = vmatpush.bf16.msra.mxu0 %v4962
    %5313 = vmatpush.bf16.msra.mxu0 %v4960
    %5314 = vmatpush.bf16.msra.mxu0 %v4958
    %5315 = vmatpush.bf16.msra.mxu0 %v4956
    %5316 = vmatpush.bf16.msra.mxu0 %v4954
    %5317 = vmatmul.bf16.gmra.mxu0 %v4337
    %v5318 = vpop.f32.mrf.mxu0
    %v5319 = vadd.f32 %v5305, %v5318
    %v5320 = vpop.f32.mrf.mxu0
    %v5321 = vadd.f32 %v5307, %v5320
    %5322 = vdwg.mxu0
    %5323 = vmatpush.bf16.msra.mxu0 %v4984
    %5324 = vmatpush.bf16.msra.mxu0 %v4982
    %5325 = vmatpush.bf16.msra.mxu0 %v4980
    %5326 = vmatpush.bf16.msra.mxu0 %v4978
    %5327 = vmatpush.bf16.msra.mxu0 %v4976
    %5328 = vmatpush.bf16.msra.mxu0 %v4974
    %5329 = vmatpush.bf16.msra.mxu0 %v4972
    %5330 = vmatpush.bf16.msra.mxu0 %v4970
    %5331 = vmatmul.bf16.gmra.mxu0 %v4338
    %v5332 = vpop.f32.mrf.mxu0
    %v5333 = vadd.f32 %v5319, %v5332
    %v5334 = vpop.f32.mrf.mxu0
    %v5335 = vadd.f32 %v5321, %v5334
    %5336 = vdwg.mxu0
    %5337 = vst [vmem:[#allocation13] sm:$0xff] %v5221
    %5338 = vst.msk [vmem:[#allocation13 + $0x8] sm:$0xff] %vm189, %v5333
    %5339 = vst [vmem:[#allocation13 + $0x10] sm:$0xff] %v5223
    %5340 = vst.msk [vmem:[#allocation13 + $0x18] sm:$0xff] %vm189, %v5335
    // Predicated region
    $region54: #{tpu_custom_call.1} parent=1 // pred_check
      _
    $region55: #{tpu_custom_call.1} parent=1 // pred_check_branch
      %5342 = sbr.rel (0) target = $region57
    $region56: #{tpu_custom_call.1} parent=1 // pred_region
      %5344 = vsyncadd [#allocation4], 0
      %s5345 = sshll.u32 [#allocation13], 4
      %s5346 = int_to_ptr.vmem [resolvable:$true] %s5345
      %s5347 = sshll.u32 %s7, 4
      %s5348 = int_to_ptr.hbm [resolvable:$true] %s5347
      %5353 = dma.vmem_to_hbm [thread:$0]  %s5346, 512, %s5348, [#allocation4], 256, 256, 16
    $region57: #{tpu_custom_call.1} parent=1 // pred_fallthru
      _
    // Predicated region
    $region58: #{tpu_custom_call.1} parent=1 // pred_check
      _
    $region59: #{tpu_custom_call.1} parent=1 // pred_check_branch
      %5355 = sbr.rel (0) target = $region61
    $region60: #{tpu_custom_call.1} parent=1 // pred_region
      %5357 = dma.done [#allocation4], 512
    $region61: #{tpu_custom_call.1} parent=1 // pred_fallthru
      _
    %5358 = vsyncpa [#allocation3], 1
    %5359 = vsyncpa [#allocation6], 1
    %5360 = vsyncpa [#allocation9], 1
    %5361 = vsyncpa [#allocation12], 1
    %5362 = vsyncpa [#allocation4], 1

</llo_original>
